<compile_context>
chip_gen: v5e
topology: v5e:2x2
jax: 0.10.0
libtpu: 0.0.40
codegen_flags: <defaults>
</compile_context>

<pallas_src>
import jax
import jax.numpy as jnp
from jax import lax
from jax.experimental import pallas as pl
from jax.experimental.pallas import tpu as pltpu

EMBEDDING_DIM = 64
NUM_CLASSES = 24
VOCAB_SIZE = 1283
H1 = 128        # lstm1 hidden size (per direction)
H2 = 64         # lstm2 hidden size (per direction)
OUT_PAD = 128   # lane-dense padded output width (>= NUM_CLASSES)
T_CHUNK_MAX = 16


def _round_up(x, m):
    return (x + m - 1) // m * m


def _pick_b_tile(batch):
    # >=2 batch tiles whenever possible so the "parallel" axis can shard across
    # v7x's two TensorCores; cap at 128 (fills the v5e MXU row stream).
    # TODO(synk): raise the cap to 256 on v6e for large batches (2x256 MXU).
    if batch <= 8:
        return 8
    return min(128, _round_up((batch + 1) // 2, 8))


def bilstm_classifier_kernel(
    gxf_ref,      # (T_CHUNK, B_TILE, 4*H1) bf16  fwd  x@W_ih + b, gates [i,f,o,g]
    gxb_ref,      # (T_CHUNK, B_TILE, 4*H1) bf16  bwd, already time-reversed
    w_hh1f_ref,   # (H1, 4*H1) bf16
    w_hh1b_ref,   # (H1, 4*H1) bf16
    w2_ref,       # (2*H1, 6*H2) bf16  LSTM2 fused cols [i_f|i_b|o_f|o_b|g_f|g_b]
    b2_ref,       # (1, 6*H2) f32
    w_fc_ref,     # (2*H2, 64) bf16
    b_fc_ref,     # (1, 64) f32
    w_out_ref,    # (64, OUT_PAD) bf16  zero-padded beyond NUM_CLASSES
    b_out_ref,    # (1, OUT_PAD) f32
    out_ref,      # (B_TILE, OUT_PAD) f32
    hf_ref, cf_ref, hb_ref, cb_ref,   # (B_TILE, H1) f32 recurrent state scratch
):
    t_blk = pl.program_id(1)
    n_t = pl.num_programs(1)
    t_chunk = gxf_ref.shape[0]

    @pl.when(t_blk == 0)
    def _():
        zeros = jnp.zeros_like(hf_ref)
        hf_ref[...] = zeros
        cf_ref[...] = zeros
        hb_ref[...] = zeros
        cb_ref[...] = zeros

    w_hh1f = w_hh1f_ref[...]
    w_hh1b = w_hh1b_ref[...]

    def cell(gx_t, h, c, w_hh):
        # Gate order [i, f, o, g]: one sigmoid over 3H lanes, one tanh over H.
        # bf16 operands into the MXU, f32 accumulation and f32 nonlinearities.
        # TODO(synk): on v6e/v7x the transcendentals could run in bf16 (halves
        # EUP pushes); kept f32 for v5e portability and numerics.
        gates = gx_t.astype(jnp.float32) + jnp.dot(
            h.astype(jnp.bfloat16), w_hh, preferred_element_type=jnp.float32)
        sg = jax.nn.sigmoid(gates[:, :3 * H1])
        i = sg[:, :H1]
        f = sg[:, H1:2 * H1]
        o = sg[:, 2 * H1:3 * H1]
        g = jnp.tanh(gates[:, 3 * H1:])
        c_new = f * c + i * g
        return o * jnp.tanh(c_new), c_new

    def step(k, carry):
        hf, cf, hb, cb = carry
        hf, cf = cell(gxf_ref[k], hf, cf, w_hh1f)
        hb, cb = cell(gxb_ref[k], hb, cb, w_hh1b)
        return hf, cf, hb, cb

    hf, cf, hb, cb = lax.fori_loop(
        0, t_chunk, step,
        (hf_ref[...], cf_ref[...], hb_ref[...], cb_ref[...]),
        unroll=True)

    hf_ref[...] = hf
    cf_ref[...] = cf
    hb_ref[...] = hb
    cb_ref[...] = cb

    @pl.when(t_blk == n_t - 1)
    def _():
        # LSTM2 over a length-1 sequence with zero initial state: the h@W_hh
        # matmuls and the f-gate contribute exactly zero (removed).  Two dots
        # against the fused weight avoid a lane-concat of hf/hb.
        w2 = w2_ref[...]
        g2 = (jnp.dot(hf.astype(jnp.bfloat16), w2[:H1],
                      preferred_element_type=jnp.float32)
              + jnp.dot(hb.astype(jnp.bfloat16), w2[H1:],
                        preferred_element_type=jnp.float32)
              + b2_ref[...])                                   # (B, 6*H2)
        io = jax.nn.sigmoid(g2[:, :4 * H2])                    # [i_f|i_b|o_f|o_b]
        i2 = io[:, :2 * H2]
        o2 = io[:, 2 * H2:]
        g2t = jnp.tanh(g2[:, 4 * H2:])                         # [g_f|g_b]
        h2 = o2 * jnp.tanh(i2 * g2t)                           # (B, 2*H2) = cat(h2f, h2b)

        # fc + ReLU (dropout identity in eval) + lane-dense padded output head.
        z = jnp.maximum(
            jnp.dot(h2.astype(jnp.bfloat16), w_fc_ref[...],
                    preferred_element_type=jnp.float32) + b_fc_ref[...], 0.0)
        out_ref[...] = (jnp.dot(z.astype(jnp.bfloat16), w_out_ref[...],
                                preferred_element_type=jnp.float32)
                        + b_out_ref[...])


def _reorder_ifog(w, hidden):
    """PyTorch gate order [i, f, g, o] along axis 0 -> [i, f, o, g]."""
    i = w[0 * hidden:1 * hidden]
    f = w[1 * hidden:2 * hidden]
    g = w[2 * hidden:3 * hidden]
    o = w[3 * hidden:4 * hidden]
    return jnp.concatenate([i, f, o, g], axis=0)


def init_params(key):
    """Deterministic synthetic parameters with PyTorch-shaped tensors."""
    ks = iter(jax.random.split(key, 24))

    def u(shape, bound):
        return jax.random.uniform(next(ks), shape, jnp.float32, -bound, bound)

    p = {}
    emb = jax.random.normal(next(ks), (VOCAB_SIZE, EMBEDDING_DIM), jnp.float32)
    p["embedding"] = emb.at[0].set(0.0)          # padding_idx=0 row is zero
    k1 = 1.0 / (H1 ** 0.5)
    for d in ("f", "b"):
        p[f"w_ih1{d}"] = u((4 * H1, EMBEDDING_DIM), k1)
        p[f"w_hh1{d}"] = u((4 * H1, H1), k1)
        p[f"b_ih1{d}"] = u((4 * H1,), k1)
        p[f"b_hh1{d}"] = u((4 * H1,), k1)
    k2 = 1.0 / (H2 ** 0.5)
    for d in ("f", "b"):
        p[f"w_ih2{d}"] = u((4 * H2, 2 * H1), k2)
        p[f"w_hh2{d}"] = u((4 * H2, H2), k2)
        p[f"b_ih2{d}"] = u((4 * H2,), k2)
        p[f"b_hh2{d}"] = u((4 * H2,), k2)
    kf = 1.0 / ((2 * H2) ** 0.5)
    p["w_fc"] = u((64, 2 * H2), kf)
    p["b_fc"] = u((64,), kf)
    ko = 1.0 / (64 ** 0.5)
    p["w_out"] = u((NUM_CLASSES, 64), ko)
    p["b_out"] = u((NUM_CLASSES,), ko)
    return p


@jax.jit
def bilstm_classifier_forward(tokens, params):
    B, T = tokens.shape

    # Embedding gather stays in plain-JAX glue; the serial recurrence (the part
    # XLA cannot pipeline well) is in-kernel.
    emb = jnp.take(params["embedding"], tokens, axis=0)            # (B, T, D)
    x_tm = jnp.transpose(emb, (1, 0, 2)).astype(jnp.bfloat16)      # (T, B, D)

    # ---- LSTM1 params: reorder gates to [i,f,o,g], fold b_ih + b_hh.
    def dir1(d):
        w_ih = _reorder_ifog(params[f"w_ih1{d}"], H1)                      # (4H1, D)
        w_hh = _reorder_ifog(params[f"w_hh1{d}"], H1)                      # (4H1, H1)
        b = _reorder_ifog(params[f"b_ih1{d}"] + params[f"b_hh1{d}"], H1)   # (4H1,)
        return w_ih.T.astype(jnp.bfloat16), w_hh.T.astype(jnp.bfloat16), b

    w_ih1f, w_hh1f, b1f = dir1("f")
    w_ih1b, w_hh1b, b1b = dir1("b")

    # ---- LSTM1 input projection hoisted to XLA (one big embarrassingly
    # parallel GEMM); streamed into the kernel time-chunk by time-chunk so
    # kernel VMEM is O(T_CHUNK) rather than O(T).  Backward slab is stored
    # already time-reversed so both directions index forward in the loop.
    gx_f = (jnp.einsum("tbd,dg->tbg", x_tm, w_ih1f,
                       preferred_element_type=jnp.float32) + b1f)
    gx_b = (jnp.einsum("tbd,dg->tbg", x_tm[::-1], w_ih1b,
                       preferred_element_type=jnp.float32) + b1b)
    gx_f = gx_f.astype(jnp.bfloat16)           # bf16 stream: half the DMA bytes
    gx_b = gx_b.astype(jnp.bfloat16)

    # Tiling / padding.  Zero time-PREFIX padding is an exact no-op from the
    # zero LSTM state (g = tanh(0) = 0 -> c stays 0 -> h stays 0), so ragged T
    # is handled exactly.  Padded batch rows are independent garbage, sliced
    # off below.
    b_tile = _pick_b_tile(B)
    b_pad = _round_up(B, b_tile)
    t_chunk = min(T_CHUNK_MAX, T)
    t_pad = _round_up(T, t_chunk)
    pad = ((t_pad - T, 0), (0, b_pad - B), (0, 0))
    gx_f = jnp.pad(gx_f, pad)
    gx_b = jnp.pad(gx_b, pad)
    n_b = b_pad // b_tile
    n_t = t_pad // t_chunk

    # ---- LSTM2 params: single step from zero state -> W_hh and the f-gate are
    # mathematically dead; keep only i/o/g rows, fused into one matrix with
    # column layout [i_f | i_b | o_f | o_b | g_f | g_b].
    def gate2(d, k):   # k: 0=i, 2=g, 3=o in PyTorch row order
        w = params[f"w_ih2{d}"][k * H2:(k + 1) * H2]                        # (H2, 2H1)
        b = (params[f"b_ih2{d}"] + params[f"b_hh2{d}"])[k * H2:(k + 1) * H2]
        return w, b

    wi_f, bi_f = gate2("f", 0); wi_b, bi_b = gate2("b", 0)
    wo_f, bo_f = gate2("f", 3); wo_b, bo_b = gate2("b", 3)
    wg_f, bg_f = gate2("f", 2); wg_b, bg_b = gate2("b", 2)
    w2 = jnp.concatenate([wi_f, wi_b, wo_f, wo_b, wg_f, wg_b],
                         axis=0).T.astype(jnp.bfloat16)                     # (2H1, 6H2)
    b2 = jnp.concatenate([bi_f, bi_b, bo_f, bo_b, bg_f, bg_b])[None, :]     # (1, 6H2)

    w_fc = params["w_fc"].T.astype(jnp.bfloat16)                            # (2H2, 64)
    b_fc = params["b_fc"][None, :]                                          # (1, 64)
    w_out = jnp.zeros((64, OUT_PAD), jnp.bfloat16).at[:, :NUM_CLASSES].set(
        params["w_out"].T.astype(jnp.bfloat16))
    b_out = jnp.zeros((1, OUT_PAD), jnp.float32).at[:, :NUM_CLASSES].set(
        params["b_out"][None, :])

    def resident(arr):
        # Full-array block, constant index_map: weight stays resident in VMEM.
        # TODO(synk): pipeline_mode=pl.Buffered(1) on these would save ~1 MiB
        # of double-buffer VMEM on v7x; omitted for portability.
        return pl.BlockSpec(arr.shape, lambda b, t: (0, 0))

    gx_spec = pl.BlockSpec((t_chunk, b_tile, 4 * H1), lambda b, t: (t, b, 0))

    # Advisory cost estimate so XLA schedules the embedding gather / output
    # slice around the custom call instead of serializing them.
    flops = (2 * 2 * t_pad * b_pad * H1 * (4 * H1)       # recurrent h@W_hh, 2 dirs
             + 2 * b_pad * (2 * H1) * (6 * H2)            # LSTM2 fused GEMM
             + 2 * b_pad * (2 * H2) * 64                  # fc
             + 2 * b_pad * 64 * OUT_PAD)                  # output head
    transcendentals = 2 * t_pad * b_pad * 5 * H1 + b_pad * 8 * H2
    bytes_accessed = (2 * t_pad * b_pad * (4 * H1) * 2    # gx streams (bf16)
                      + 2 * H1 * (4 * H1) * 2 * 2         # W_hh both dirs
                      + (2 * H1) * (6 * H2) * 2           # w2
                      + b_pad * OUT_PAD * 4)              # output

    out_padded = pl.pallas_call(
        bilstm_classifier_kernel,
        out_shape=jax.ShapeDtypeStruct((b_pad, OUT_PAD), jnp.float32),
        grid_spec=pltpu.PrefetchScalarGridSpec(
            num_scalar_prefetch=0,
            grid=(n_b, n_t),
            in_specs=[
                gx_spec, gx_spec,
                resident(w_hh1f), resident(w_hh1b),
                resident(w2), resident(b2),
                resident(w_fc), resident(b_fc),
                resident(w_out), resident(b_out),
            ],
            out_specs=pl.BlockSpec((b_tile, OUT_PAD), lambda b, t: (b, 0)),
            scratch_shapes=[pltpu.VMEM((b_tile, H1), jnp.float32)] * 4,
        ),
        compiler_params=pltpu.CompilerParams(
            dimension_semantics=("parallel", "arbitrary"),
            vmem_limit_bytes=32 * 1024 * 1024),
        cost_estimate=pl.CostEstimate(
            flops=flops, transcendentals=transcendentals,
            bytes_accessed=bytes_accessed),
    )(gx_f, gx_b, w_hh1f, w_hh1b, w2, b2, w_fc, b_fc, w_out, b_out)

    return out_padded[:B, :NUM_CLASSES]


def reference_forward(tokens, params):
    """Pure-JAX f32 reference mirroring the PyTorch forward (eval mode)."""
    emb = jnp.take(params["embedding"], tokens, axis=0)            # (B, T, D)
    B = tokens.shape[0]

    def cell(x, h, c, w_ih, w_hh, b_ih, b_hh, hidden):
        gates = x @ w_ih.T + h @ w_hh.T + b_ih + b_hh
        i = jax.nn.sigmoid(gates[:, :hidden])
        f = jax.nn.sigmoid(gates[:, hidden:2 * hidden])
        g = jnp.tanh(gates[:, 2 * hidden:3 * hidden])
        o = jax.nn.sigmoid(gates[:, 3 * hidden:])
        c = f * c + i * g
        return o * jnp.tanh(c), c

    def run_dir(xs_tm, w_ih, w_hh, b_ih, b_hh, hidden):
        def body(carry, xt):
            h, c = cell(xt, carry[0], carry[1], w_ih, w_hh, b_ih, b_hh, hidden)
            return (h, c), None
        init = (jnp.zeros((B, hidden), jnp.float32),
                jnp.zeros((B, hidden), jnp.float32))
        (h, _), _ = lax.scan(body, init, xs_tm)
        return h

    xs = jnp.transpose(emb, (1, 0, 2))
    hf = run_dir(xs, params["w_ih1f"], params["w_hh1f"],
                 params["b_ih1f"], params["b_hh1f"], H1)
    hb = run_dir(xs[::-1], params["w_ih1b"], params["w_hh1b"],
                 params["b_ih1b"], params["b_hh1b"], H1)
    h1 = jnp.concatenate([hf, hb], axis=1)

    z2 = jnp.zeros((B, H2), jnp.float32)
    h2f, _ = cell(h1, z2, z2, params["w_ih2f"], params["w_hh2f"],
                  params["b_ih2f"], params["b_hh2f"], H2)
    h2b, _ = cell(h1, z2, z2, params["w_ih2b"], params["w_hh2b"],
                  params["b_ih2b"], params["b_hh2b"], H2)
    h2 = jnp.concatenate([h2f, h2b], axis=1)

    z = jax.nn.relu(h2 @ params["w_fc"].T + params["b_fc"])
    return z @ params["w_out"].T + params["b_out"]


if __name__ == "__main__":
    key = jax.random.PRNGKey(0)
    pkey, tkey = jax.random.split(key)
    params = init_params(pkey)

    # Small base config plus one config that exercises batch/time padding,
    # multiple batch tiles and multiple time chunks.
    for (B, T) in ((2, 8), (24, 40)):
        tokens = jax.random.randint(jax.random.fold_in(tkey, B * 1000 + T),
                                    (B, T), 0, VOCAB_SIZE, dtype=jnp.int32)
        logits = bilstm_classifier_forward(tokens, params)
        logits = jax.block_until_ready(logits)
        assert logits.shape == (B, NUM_CLASSES)

        ref = reference_forward(tokens, params)
        # bf16 matmul operands / bf16 gx storage (f32 accumulation) -> loosened
        # tolerance vs. the f32 reference.
        if not jnp.allclose(logits, ref, rtol=2e-2, atol=2e-2):
            err = float(jnp.max(jnp.abs(logits - ref)))
            raise SystemExit(
                f"Pallas kernel mismatch at B={B}, T={T}: max abs err {err}")

    print("KERNEL_OK")
</pallas_src>

<mosaic_0001>
module attributes {stable_mosaic.version = 11 : i64} {
  func.func @bilstm_classifier_kernel(%arg0: i32, %arg1: i32, %arg2: memref<8x8x512xbf16, #tpu.memory_space<vmem>>, %arg3: memref<8x8x512xbf16, #tpu.memory_space<vmem>>, %arg4: memref<128x512xbf16, #tpu.memory_space<vmem>>, %arg5: memref<128x512xbf16, #tpu.memory_space<vmem>>, %arg6: memref<256x384xbf16, #tpu.memory_space<vmem>>, %arg7: memref<1x384xf32, #tpu.memory_space<vmem>>, %arg8: memref<128x64xbf16, #tpu.memory_space<vmem>>, %arg9: memref<1x64xf32, #tpu.memory_space<vmem>>, %arg10: memref<64x128xbf16, #tpu.memory_space<vmem>>, %arg11: memref<1x128xf32, #tpu.memory_space<vmem>>, %arg12: memref<8x128xf32, #tpu.memory_space<vmem>>, %arg13: memref<8x128xf32, #tpu.memory_space<vmem>>, %arg14: memref<8x128xf32, #tpu.memory_space<vmem>>, %arg15: memref<8x128xf32, #tpu.memory_space<vmem>>, %arg16: memref<8x128xf32, #tpu.memory_space<vmem>>) attributes {dimension_semantics = [#tpu.dimension_semantics<parallel>, #tpu.dimension_semantics<arbitrary>], iteration_bounds = array<i64: 1, 1>, scalar_prefetch = 0 : i64, scratch_operands = 4 : i64, tpu.core_type = #tpu.core_type<tc>, window_params = [{transform_indices = @transform_0, window_bounds = array<i64: 8, 8, 512>}, {transform_indices = @transform_1, window_bounds = array<i64: 8, 8, 512>}, {pipeline_mode = #tpu.pipeline_mode<synchronous>, transform_indices = @transform_2, window_bounds = array<i64: 128, 512>}, {pipeline_mode = #tpu.pipeline_mode<synchronous>, transform_indices = @transform_3, window_bounds = array<i64: 128, 512>}, {pipeline_mode = #tpu.pipeline_mode<synchronous>, transform_indices = @transform_4, window_bounds = array<i64: 256, 384>}, {pipeline_mode = #tpu.pipeline_mode<synchronous>, transform_indices = @transform_5, window_bounds = array<i64: 1, 384>}, {pipeline_mode = #tpu.pipeline_mode<synchronous>, transform_indices = @transform_6, window_bounds = array<i64: 128, 64>}, {pipeline_mode = #tpu.pipeline_mode<synchronous>, transform_indices = @transform_7, window_bounds = array<i64: 1, 64>}, {pipeline_mode = #tpu.pipeline_mode<synchronous>, transform_indices = @transform_8, window_bounds = array<i64: 64, 128>}, {pipeline_mode = #tpu.pipeline_mode<synchronous>, transform_indices = @transform_9, window_bounds = array<i64: 1, 128>}, {transform_indices = @transform_10, window_bounds = array<i64: 8, 128>}]} {
    %c0_i32 = arith.constant 0 : i32
    %0 = arith.cmpi eq, %arg1, %c0_i32 : i32
    %1 = arith.extui %0 : i1 to i32
    %c0_i32_0 = arith.constant 0 : i32
    %2 = arith.cmpi ne, %1, %c0_i32_0 : i32
    scf.if %2 {
      %cst_86 = arith.constant 0.000000e+00 : f32
      %384 = vector.broadcast %cst_86 : f32 to vector<8x128xf32>
      %c0_87 = arith.constant 0 : index
      %c0_88 = arith.constant 0 : index
      %385 = vector.load %arg13[%c0_87, %c0_88] : memref<8x128xf32, #tpu.memory_space<vmem>>, vector<8x128xf32>
      tpu.vector_store %arg13[%c0_87, %c0_88], %384 {strides = array<i32>} : memref<8x128xf32, #tpu.memory_space<vmem>>, vector<8x128xf32>,
      %c0_89 = arith.constant 0 : index
      %c0_90 = arith.constant 0 : index
      %386 = vector.load %arg14[%c0_89, %c0_90] : memref<8x128xf32, #tpu.memory_space<vmem>>, vector<8x128xf32>
      tpu.vector_store %arg14[%c0_89, %c0_90], %384 {strides = array<i32>} : memref<8x128xf32, #tpu.memory_space<vmem>>, vector<8x128xf32>,
      %c0_91 = arith.constant 0 : index
      %c0_92 = arith.constant 0 : index
      %387 = vector.load %arg15[%c0_91, %c0_92] : memref<8x128xf32, #tpu.memory_space<vmem>>, vector<8x128xf32>
      tpu.vector_store %arg15[%c0_91, %c0_92], %384 {strides = array<i32>} : memref<8x128xf32, #tpu.memory_space<vmem>>, vector<8x128xf32>,
      %c0_93 = arith.constant 0 : index
      %c0_94 = arith.constant 0 : index
      %388 = vector.load %arg16[%c0_93, %c0_94] : memref<8x128xf32, #tpu.memory_space<vmem>>, vector<8x128xf32>
      tpu.vector_store %arg16[%c0_93, %c0_94], %384 {strides = array<i32>} : memref<8x128xf32, #tpu.memory_space<vmem>>, vector<8x128xf32>,
    } else {
    }
    %c0 = arith.constant 0 : index
    %c0_1 = arith.constant 0 : index
    %3 = vector.load %arg4[%c0, %c0_1] : memref<128x512xbf16, #tpu.memory_space<vmem>>, vector<128x512xbf16>
    %c0_2 = arith.constant 0 : index
    %c0_3 = arith.constant 0 : index
    %4 = vector.load %arg5[%c0_2, %c0_3] : memref<128x512xbf16, #tpu.memory_space<vmem>>, vector<128x512xbf16>
    %c0_4 = arith.constant 0 : index
    %c0_5 = arith.constant 0 : index
    %5 = vector.load %arg13[%c0_4, %c0_5] : memref<8x128xf32, #tpu.memory_space<vmem>>, vector<8x128xf32>
    %c0_6 = arith.constant 0 : index
    %c0_7 = arith.constant 0 : index
    %6 = vector.load %arg14[%c0_6, %c0_7] : memref<8x128xf32, #tpu.memory_space<vmem>>, vector<8x128xf32>
    %c0_8 = arith.constant 0 : index
    %c0_9 = arith.constant 0 : index
    %7 = vector.load %arg15[%c0_8, %c0_9] : memref<8x128xf32, #tpu.memory_space<vmem>>, vector<8x128xf32>
    %c0_10 = arith.constant 0 : index
    %c0_11 = arith.constant 0 : index
    %8 = vector.load %arg16[%c0_10, %c0_11] : memref<8x128xf32, #tpu.memory_space<vmem>>, vector<8x128xf32>
    %c0_i32_12 = arith.constant 0 : i32
    %9 = arith.index_cast %c0_i32_12 : i32 to index
    %c0_13 = arith.constant 0 : index
    %c0_14 = arith.constant 0 : index
    %10 = vector.load %arg2[%9, %c0_13, %c0_14] : memref<8x8x512xbf16, #tpu.memory_space<vmem>>, vector<1x8x512xbf16>
    %11 = vector.shape_cast %10 : vector<1x8x512xbf16> to vector<8x512xbf16>
    %12 = arith.extf %11 : vector<8x512xbf16> to vector<8x512xf32>
    %13 = arith.truncf %5 : vector<8x128xf32> to vector<8x128xbf16>
    %cst = arith.constant dense<0.000000e+00> : vector<8x512xf32>
    %14 = tpu.matmul %13, %3, %cst {dimension_numbers = #tpu.dot_dimension_numbers<[1], [0], [0], [1], [0, 0, 1, 1], [], []>} : vector<8x128xbf16>, vector<128x512xbf16>, vector<8x512xf32> -> vector<8x512xf32>
    %15 = arith.addf %12, %14 : vector<8x512xf32>
    %16 = vector.extract_strided_slice %15 {offsets = [0, 0], sizes = [8, 384], strides = [1, 1]} : vector<8x512xf32> to vector<8x384xf32>
    %17 = arith.negf %16 : vector<8x384xf32>
    %18 = math.exp %17 : vector<8x384xf32>
    %cst_15 = arith.constant 1.000000e+00 : f32
    %19 = vector.broadcast %cst_15 : f32 to vector<8x384xf32>
    %20 = arith.addf %19, %18 : vector<8x384xf32>
    %21 = arith.divf %19, %20 : vector<8x384xf32>
    %22 = vector.extract_strided_slice %21 {offsets = [0, 0], sizes = [8, 128], strides = [1, 1]} : vector<8x384xf32> to vector<8x128xf32>
    %23 = vector.extract_strided_slice %21 {offsets = [0, 128], sizes = [8, 128], strides = [1, 1]} : vector<8x384xf32> to vector<8x128xf32>
    %24 = vector.extract_strided_slice %21 {offsets = [0, 256], sizes = [8, 128], strides = [1, 1]} : vector<8x384xf32> to vector<8x128xf32>
    %25 = vector.extract_strided_slice %15 {offsets = [0, 384], sizes = [8, 128], strides = [1, 1]} : vector<8x512xf32> to vector<8x128xf32>
    %26 = math.tanh %25 : vector<8x128xf32>
    %27 = arith.mulf %23, %6 : vector<8x128xf32>
    %28 = arith.mulf %22, %26 : vector<8x128xf32>
    %29 = arith.addf %27, %28 : vector<8x128xf32>
    %30 = math.tanh %29 : vector<8x128xf32>
    %31 = arith.mulf %24, %30 : vector<8x128xf32>
    %32 = arith.index_cast %c0_i32_12 : i32 to index
    %c0_16 = arith.constant 0 : index
    %c0_17 = arith.constant 0 : index
    %33 = vector.load %arg3[%32, %c0_16, %c0_17] : memref<8x8x512xbf16, #tpu.memory_space<vmem>>, vector<1x8x512xbf16>
    %34 = vector.shape_cast %33 : vector<1x8x512xbf16> to vector<8x512xbf16>
    %35 = arith.extf %34 : vector<8x512xbf16> to vector<8x512xf32>
    %36 = arith.truncf %7 : vector<8x128xf32> to vector<8x128xbf16>
    %cst_18 = arith.constant dense<0.000000e+00> : vector<8x512xf32>
    %37 = tpu.matmul %36, %4, %cst_18 {dimension_numbers = #tpu.dot_dimension_numbers<[1], [0], [0], [1], [0, 0, 1, 1], [], []>} : vector<8x128xbf16>, vector<128x512xbf16>, vector<8x512xf32> -> vector<8x512xf32>
    %38 = arith.addf %35, %37 : vector<8x512xf32>
    %39 = vector.extract_strided_slice %38 {offsets = [0, 0], sizes = [8, 384], strides = [1, 1]} : vector<8x512xf32> to vector<8x384xf32>
    %40 = arith.negf %39 : vector<8x384xf32>
    %41 = math.exp %40 : vector<8x384xf32>
    %cst_19 = arith.constant 1.000000e+00 : f32
    %42 = vector.broadcast %cst_19 : f32 to vector<8x384xf32>
    %43 = arith.addf %42, %41 : vector<8x384xf32>
    %44 = arith.divf %42, %43 : vector<8x384xf32>
    %45 = vector.extract_strided_slice %44 {offsets = [0, 0], sizes = [8, 128], strides = [1, 1]} : vector<8x384xf32> to vector<8x128xf32>
    %46 = vector.extract_strided_slice %44 {offsets = [0, 128], sizes = [8, 128], strides = [1, 1]} : vector<8x384xf32> to vector<8x128xf32>
    %47 = vector.extract_strided_slice %44 {offsets = [0, 256], sizes = [8, 128], strides = [1, 1]} : vector<8x384xf32> to vector<8x128xf32>
    %48 = vector.extract_strided_slice %38 {offsets = [0, 384], sizes = [8, 128], strides = [1, 1]} : vector<8x512xf32> to vector<8x128xf32>
    %49 = math.tanh %48 : vector<8x128xf32>
    %50 = arith.mulf %46, %8 : vector<8x128xf32>
    %51 = arith.mulf %45, %49 : vector<8x128xf32>
    %52 = arith.addf %50, %51 : vector<8x128xf32>
    %53 = math.tanh %52 : vector<8x128xf32>
    %54 = arith.mulf %47, %53 : vector<8x128xf32>
    %c1_i32 = arith.constant 1 : i32
    %55 = arith.index_cast %c1_i32 : i32 to index
    %c0_20 = arith.constant 0 : index
    %c0_21 = arith.constant 0 : index
    %56 = vector.load %arg2[%55, %c0_20, %c0_21] : memref<8x8x512xbf16, #tpu.memory_space<vmem>>, vector<1x8x512xbf16>
    %57 = vector.shape_cast %56 : vector<1x8x512xbf16> to vector<8x512xbf16>
    %58 = arith.extf %57 : vector<8x512xbf16> to vector<8x512xf32>
    %59 = arith.truncf %31 : vector<8x128xf32> to vector<8x128xbf16>
    %cst_22 = arith.constant dense<0.000000e+00> : vector<8x512xf32>
    %60 = tpu.matmul %59, %3, %cst_22 {dimension_numbers = #tpu.dot_dimension_numbers<[1], [0], [0], [1], [0, 0, 1, 1], [], []>} : vector<8x128xbf16>, vector<128x512xbf16>, vector<8x512xf32> -> vector<8x512xf32>
    %61 = arith.addf %58, %60 : vector<8x512xf32>
    %62 = vector.extract_strided_slice %61 {offsets = [0, 0], sizes = [8, 384], strides = [1, 1]} : vector<8x512xf32> to vector<8x384xf32>
    %63 = arith.negf %62 : vector<8x384xf32>
    %64 = math.exp %63 : vector<8x384xf32>
    %cst_23 = arith.constant 1.000000e+00 : f32
    %65 = vector.broadcast %cst_23 : f32 to vector<8x384xf32>
    %66 = arith.addf %65, %64 : vector<8x384xf32>
    %67 = arith.divf %65, %66 : vector<8x384xf32>
    %68 = vector.extract_strided_slice %67 {offsets = [0, 0], sizes = [8, 128], strides = [1, 1]} : vector<8x384xf32> to vector<8x128xf32>
    %69 = vector.extract_strided_slice %67 {offsets = [0, 128], sizes = [8, 128], strides = [1, 1]} : vector<8x384xf32> to vector<8x128xf32>
    %70 = vector.extract_strided_slice %67 {offsets = [0, 256], sizes = [8, 128], strides = [1, 1]} : vector<8x384xf32> to vector<8x128xf32>
    %71 = vector.extract_strided_slice %61 {offsets = [0, 384], sizes = [8, 128], strides = [1, 1]} : vector<8x512xf32> to vector<8x128xf32>
    %72 = math.tanh %71 : vector<8x128xf32>
    %73 = arith.mulf %69, %29 : vector<8x128xf32>
    %74 = arith.mulf %68, %72 : vector<8x128xf32>
    %75 = arith.addf %73, %74 : vector<8x128xf32>
    %76 = math.tanh %75 : vector<8x128xf32>
    %77 = arith.mulf %70, %76 : vector<8x128xf32>
    %78 = arith.index_cast %c1_i32 : i32 to index
    %c0_24 = arith.constant 0 : index
    %c0_25 = arith.constant 0 : index
    %79 = vector.load %arg3[%78, %c0_24, %c0_25] : memref<8x8x512xbf16, #tpu.memory_space<vmem>>, vector<1x8x512xbf16>
    %80 = vector.shape_cast %79 : vector<1x8x512xbf16> to vector<8x512xbf16>
    %81 = arith.extf %80 : vector<8x512xbf16> to vector<8x512xf32>
    %82 = arith.truncf %54 : vector<8x128xf32> to vector<8x128xbf16>
    %cst_26 = arith.constant dense<0.000000e+00> : vector<8x512xf32>
    %83 = tpu.matmul %82, %4, %cst_26 {dimension_numbers = #tpu.dot_dimension_numbers<[1], [0], [0], [1], [0, 0, 1, 1], [], []>} : vector<8x128xbf16>, vector<128x512xbf16>, vector<8x512xf32> -> vector<8x512xf32>
    %84 = arith.addf %81, %83 : vector<8x512xf32>
    %85 = vector.extract_strided_slice %84 {offsets = [0, 0], sizes = [8, 384], strides = [1, 1]} : vector<8x512xf32> to vector<8x384xf32>
    %86 = arith.negf %85 : vector<8x384xf32>
    %87 = math.exp %86 : vector<8x384xf32>
    %cst_27 = arith.constant 1.000000e+00 : f32
    %88 = vector.broadcast %cst_27 : f32 to vector<8x384xf32>
    %89 = arith.addf %88, %87 : vector<8x384xf32>
    %90 = arith.divf %88, %89 : vector<8x384xf32>
    %91 = vector.extract_strided_slice %90 {offsets = [0, 0], sizes = [8, 128], strides = [1, 1]} : vector<8x384xf32> to vector<8x128xf32>
    %92 = vector.extract_strided_slice %90 {offsets = [0, 128], sizes = [8, 128], strides = [1, 1]} : vector<8x384xf32> to vector<8x128xf32>
    %93 = vector.extract_strided_slice %90 {offsets = [0, 256], sizes = [8, 128], strides = [1, 1]} : vector<8x384xf32> to vector<8x128xf32>
    %94 = vector.extract_strided_slice %84 {offsets = [0, 384], sizes = [8, 128], strides = [1, 1]} : vector<8x512xf32> to vector<8x128xf32>
    %95 = math.tanh %94 : vector<8x128xf32>
    %96 = arith.mulf %92, %52 : vector<8x128xf32>
    %97 = arith.mulf %91, %95 : vector<8x128xf32>
    %98 = arith.addf %96, %97 : vector<8x128xf32>
    %99 = math.tanh %98 : vector<8x128xf32>
    %100 = arith.mulf %93, %99 : vector<8x128xf32>
    %c2_i32 = arith.constant 2 : i32
    %101 = arith.index_cast %c2_i32 : i32 to index
    %c0_28 = arith.constant 0 : index
    %c0_29 = arith.constant 0 : index
    %102 = vector.load %arg2[%101, %c0_28, %c0_29] : memref<8x8x512xbf16, #tpu.memory_space<vmem>>, vector<1x8x512xbf16>
    %103 = vector.shape_cast %102 : vector<1x8x512xbf16> to vector<8x512xbf16>
    %104 = arith.extf %103 : vector<8x512xbf16> to vector<8x512xf32>
    %105 = arith.truncf %77 : vector<8x128xf32> to vector<8x128xbf16>
    %cst_30 = arith.constant dense<0.000000e+00> : vector<8x512xf32>
    %106 = tpu.matmul %105, %3, %cst_30 {dimension_numbers = #tpu.dot_dimension_numbers<[1], [0], [0], [1], [0, 0, 1, 1], [], []>} : vector<8x128xbf16>, vector<128x512xbf16>, vector<8x512xf32> -> vector<8x512xf32>
    %107 = arith.addf %104, %106 : vector<8x512xf32>
    %108 = vector.extract_strided_slice %107 {offsets = [0, 0], sizes = [8, 384], strides = [1, 1]} : vector<8x512xf32> to vector<8x384xf32>
    %109 = arith.negf %108 : vector<8x384xf32>
    %110 = math.exp %109 : vector<8x384xf32>
    %cst_31 = arith.constant 1.000000e+00 : f32
    %111 = vector.broadcast %cst_31 : f32 to vector<8x384xf32>
    %112 = arith.addf %111, %110 : vector<8x384xf32>
    %113 = arith.divf %111, %112 : vector<8x384xf32>
    %114 = vector.extract_strided_slice %113 {offsets = [0, 0], sizes = [8, 128], strides = [1, 1]} : vector<8x384xf32> to vector<8x128xf32>
    %115 = vector.extract_strided_slice %113 {offsets = [0, 128], sizes = [8, 128], strides = [1, 1]} : vector<8x384xf32> to vector<8x128xf32>
    %116 = vector.extract_strided_slice %113 {offsets = [0, 256], sizes = [8, 128], strides = [1, 1]} : vector<8x384xf32> to vector<8x128xf32>
    %117 = vector.extract_strided_slice %107 {offsets = [0, 384], sizes = [8, 128], strides = [1, 1]} : vector<8x512xf32> to vector<8x128xf32>
    %118 = math.tanh %117 : vector<8x128xf32>
    %119 = arith.mulf %115, %75 : vector<8x128xf32>
    %120 = arith.mulf %114, %118 : vector<8x128xf32>
    %121 = arith.addf %119, %120 : vector<8x128xf32>
    %122 = math.tanh %121 : vector<8x128xf32>
    %123 = arith.mulf %116, %122 : vector<8x128xf32>
    %124 = arith.index_cast %c2_i32 : i32 to index
    %c0_32 = arith.constant 0 : index
    %c0_33 = arith.constant 0 : index
    %125 = vector.load %arg3[%124, %c0_32, %c0_33] : memref<8x8x512xbf16, #tpu.memory_space<vmem>>, vector<1x8x512xbf16>
    %126 = vector.shape_cast %125 : vector<1x8x512xbf16> to vector<8x512xbf16>
    %127 = arith.extf %126 : vector<8x512xbf16> to vector<8x512xf32>
    %128 = arith.truncf %100 : vector<8x128xf32> to vector<8x128xbf16>
    %cst_34 = arith.constant dense<0.000000e+00> : vector<8x512xf32>
    %129 = tpu.matmul %128, %4, %cst_34 {dimension_numbers = #tpu.dot_dimension_numbers<[1], [0], [0], [1], [0, 0, 1, 1], [], []>} : vector<8x128xbf16>, vector<128x512xbf16>, vector<8x512xf32> -> vector<8x512xf32>
    %130 = arith.addf %127, %129 : vector<8x512xf32>
    %131 = vector.extract_strided_slice %130 {offsets = [0, 0], sizes = [8, 384], strides = [1, 1]} : vector<8x512xf32> to vector<8x384xf32>
    %132 = arith.negf %131 : vector<8x384xf32>
    %133 = math.exp %132 : vector<8x384xf32>
    %cst_35 = arith.constant 1.000000e+00 : f32
    %134 = vector.broadcast %cst_35 : f32 to vector<8x384xf32>
    %135 = arith.addf %134, %133 : vector<8x384xf32>
    %136 = arith.divf %134, %135 : vector<8x384xf32>
    %137 = vector.extract_strided_slice %136 {offsets = [0, 0], sizes = [8, 128], strides = [1, 1]} : vector<8x384xf32> to vector<8x128xf32>
    %138 = vector.extract_strided_slice %136 {offsets = [0, 128], sizes = [8, 128], strides = [1, 1]} : vector<8x384xf32> to vector<8x128xf32>
    %139 = vector.extract_strided_slice %136 {offsets = [0, 256], sizes = [8, 128], strides = [1, 1]} : vector<8x384xf32> to vector<8x128xf32>
    %140 = vector.extract_strided_slice %130 {offsets = [0, 384], sizes = [8, 128], strides = [1, 1]} : vector<8x512xf32> to vector<8x128xf32>
    %141 = math.tanh %140 : vector<8x128xf32>
    %142 = arith.mulf %138, %98 : vector<8x128xf32>
    %143 = arith.mulf %137, %141 : vector<8x128xf32>
    %144 = arith.addf %142, %143 : vector<8x128xf32>
    %145 = math.tanh %144 : vector<8x128xf32>
    %146 = arith.mulf %139, %145 : vector<8x128xf32>
    %c3_i32 = arith.constant 3 : i32
    %147 = arith.index_cast %c3_i32 : i32 to index
    %c0_36 = arith.constant 0 : index
    %c0_37 = arith.constant 0 : index
    %148 = vector.load %arg2[%147, %c0_36, %c0_37] : memref<8x8x512xbf16, #tpu.memory_space<vmem>>, vector<1x8x512xbf16>
    %149 = vector.shape_cast %148 : vector<1x8x512xbf16> to vector<8x512xbf16>
    %150 = arith.extf %149 : vector<8x512xbf16> to vector<8x512xf32>
    %151 = arith.truncf %123 : vector<8x128xf32> to vector<8x128xbf16>
    %cst_38 = arith.constant dense<0.000000e+00> : vector<8x512xf32>
    %152 = tpu.matmul %151, %3, %cst_38 {dimension_numbers = #tpu.dot_dimension_numbers<[1], [0], [0], [1], [0, 0, 1, 1], [], []>} : vector<8x128xbf16>, vector<128x512xbf16>, vector<8x512xf32> -> vector<8x512xf32>
    %153 = arith.addf %150, %152 : vector<8x512xf32>
    %154 = vector.extract_strided_slice %153 {offsets = [0, 0], sizes = [8, 384], strides = [1, 1]} : vector<8x512xf32> to vector<8x384xf32>
    %155 = arith.negf %154 : vector<8x384xf32>
    %156 = math.exp %155 : vector<8x384xf32>
    %cst_39 = arith.constant 1.000000e+00 : f32
    %157 = vector.broadcast %cst_39 : f32 to vector<8x384xf32>
    %158 = arith.addf %157, %156 : vector<8x384xf32>
    %159 = arith.divf %157, %158 : vector<8x384xf32>
    %160 = vector.extract_strided_slice %159 {offsets = [0, 0], sizes = [8, 128], strides = [1, 1]} : vector<8x384xf32> to vector<8x128xf32>
    %161 = vector.extract_strided_slice %159 {offsets = [0, 128], sizes = [8, 128], strides = [1, 1]} : vector<8x384xf32> to vector<8x128xf32>
    %162 = vector.extract_strided_slice %159 {offsets = [0, 256], sizes = [8, 128], strides = [1, 1]} : vector<8x384xf32> to vector<8x128xf32>
    %163 = vector.extract_strided_slice %153 {offsets = [0, 384], sizes = [8, 128], strides = [1, 1]} : vector<8x512xf32> to vector<8x128xf32>
    %164 = math.tanh %163 : vector<8x128xf32>
    %165 = arith.mulf %161, %121 : vector<8x128xf32>
    %166 = arith.mulf %160, %164 : vector<8x128xf32>
    %167 = arith.addf %165, %166 : vector<8x128xf32>
    %168 = math.tanh %167 : vector<8x128xf32>
    %169 = arith.mulf %162, %168 : vector<8x128xf32>
    %170 = arith.index_cast %c3_i32 : i32 to index
    %c0_40 = arith.constant 0 : index
    %c0_41 = arith.constant 0 : index
    %171 = vector.load %arg3[%170, %c0_40, %c0_41] : memref<8x8x512xbf16, #tpu.memory_space<vmem>>, vector<1x8x512xbf16>
    %172 = vector.shape_cast %171 : vector<1x8x512xbf16> to vector<8x512xbf16>
    %173 = arith.extf %172 : vector<8x512xbf16> to vector<8x512xf32>
    %174 = arith.truncf %146 : vector<8x128xf32> to vector<8x128xbf16>
    %cst_42 = arith.constant dense<0.000000e+00> : vector<8x512xf32>
    %175 = tpu.matmul %174, %4, %cst_42 {dimension_numbers = #tpu.dot_dimension_numbers<[1], [0], [0], [1], [0, 0, 1, 1], [], []>} : vector<8x128xbf16>, vector<128x512xbf16>, vector<8x512xf32> -> vector<8x512xf32>
    %176 = arith.addf %173, %175 : vector<8x512xf32>
    %177 = vector.extract_strided_slice %176 {offsets = [0, 0], sizes = [8, 384], strides = [1, 1]} : vector<8x512xf32> to vector<8x384xf32>
    %178 = arith.negf %177 : vector<8x384xf32>
    %179 = math.exp %178 : vector<8x384xf32>
    %cst_43 = arith.constant 1.000000e+00 : f32
    %180 = vector.broadcast %cst_43 : f32 to vector<8x384xf32>
    %181 = arith.addf %180, %179 : vector<8x384xf32>
    %182 = arith.divf %180, %181 : vector<8x384xf32>
    %183 = vector.extract_strided_slice %182 {offsets = [0, 0], sizes = [8, 128], strides = [1, 1]} : vector<8x384xf32> to vector<8x128xf32>
    %184 = vector.extract_strided_slice %182 {offsets = [0, 128], sizes = [8, 128], strides = [1, 1]} : vector<8x384xf32> to vector<8x128xf32>
    %185 = vector.extract_strided_slice %182 {offsets = [0, 256], sizes = [8, 128], strides = [1, 1]} : vector<8x384xf32> to vector<8x128xf32>
    %186 = vector.extract_strided_slice %176 {offsets = [0, 384], sizes = [8, 128], strides = [1, 1]} : vector<8x512xf32> to vector<8x128xf32>
    %187 = math.tanh %186 : vector<8x128xf32>
    %188 = arith.mulf %184, %144 : vector<8x128xf32>
    %189 = arith.mulf %183, %187 : vector<8x128xf32>
    %190 = arith.addf %188, %189 : vector<8x128xf32>
    %191 = math.tanh %190 : vector<8x128xf32>
    %192 = arith.mulf %185, %191 : vector<8x128xf32>
    %c4_i32 = arith.constant 4 : i32
    %193 = arith.index_cast %c4_i32 : i32 to index
    %c0_44 = arith.constant 0 : index
    %c0_45 = arith.constant 0 : index
    %194 = vector.load %arg2[%193, %c0_44, %c0_45] : memref<8x8x512xbf16, #tpu.memory_space<vmem>>, vector<1x8x512xbf16>
    %195 = vector.shape_cast %194 : vector<1x8x512xbf16> to vector<8x512xbf16>
    %196 = arith.extf %195 : vector<8x512xbf16> to vector<8x512xf32>
    %197 = arith.truncf %169 : vector<8x128xf32> to vector<8x128xbf16>
    %cst_46 = arith.constant dense<0.000000e+00> : vector<8x512xf32>
    %198 = tpu.matmul %197, %3, %cst_46 {dimension_numbers = #tpu.dot_dimension_numbers<[1], [0], [0], [1], [0, 0, 1, 1], [], []>} : vector<8x128xbf16>, vector<128x512xbf16>, vector<8x512xf32> -> vector<8x512xf32>
    %199 = arith.addf %196, %198 : vector<8x512xf32>
    %200 = vector.extract_strided_slice %199 {offsets = [0, 0], sizes = [8, 384], strides = [1, 1]} : vector<8x512xf32> to vector<8x384xf32>
    %201 = arith.negf %200 : vector<8x384xf32>
    %202 = math.exp %201 : vector<8x384xf32>
    %cst_47 = arith.constant 1.000000e+00 : f32
    %203 = vector.broadcast %cst_47 : f32 to vector<8x384xf32>
    %204 = arith.addf %203, %202 : vector<8x384xf32>
    %205 = arith.divf %203, %204 : vector<8x384xf32>
    %206 = vector.extract_strided_slice %205 {offsets = [0, 0], sizes = [8, 128], strides = [1, 1]} : vector<8x384xf32> to vector<8x128xf32>
    %207 = vector.extract_strided_slice %205 {offsets = [0, 128], sizes = [8, 128], strides = [1, 1]} : vector<8x384xf32> to vector<8x128xf32>
    %208 = vector.extract_strided_slice %205 {offsets = [0, 256], sizes = [8, 128], strides = [1, 1]} : vector<8x384xf32> to vector<8x128xf32>
    %209 = vector.extract_strided_slice %199 {offsets = [0, 384], sizes = [8, 128], strides = [1, 1]} : vector<8x512xf32> to vector<8x128xf32>
    %210 = math.tanh %209 : vector<8x128xf32>
    %211 = arith.mulf %207, %167 : vector<8x128xf32>
    %212 = arith.mulf %206, %210 : vector<8x128xf32>
    %213 = arith.addf %211, %212 : vector<8x128xf32>
    %214 = math.tanh %213 : vector<8x128xf32>
    %215 = arith.mulf %208, %214 : vector<8x128xf32>
    %216 = arith.index_cast %c4_i32 : i32 to index
    %c0_48 = arith.constant 0 : index
    %c0_49 = arith.constant 0 : index
    %217 = vector.load %arg3[%216, %c0_48, %c0_49] : memref<8x8x512xbf16, #tpu.memory_space<vmem>>, vector<1x8x512xbf16>
    %218 = vector.shape_cast %217 : vector<1x8x512xbf16> to vector<8x512xbf16>
    %219 = arith.extf %218 : vector<8x512xbf16> to vector<8x512xf32>
    %220 = arith.truncf %192 : vector<8x128xf32> to vector<8x128xbf16>
    %cst_50 = arith.constant dense<0.000000e+00> : vector<8x512xf32>
    %221 = tpu.matmul %220, %4, %cst_50 {dimension_numbers = #tpu.dot_dimension_numbers<[1], [0], [0], [1], [0, 0, 1, 1], [], []>} : vector<8x128xbf16>, vector<128x512xbf16>, vector<8x512xf32> -> vector<8x512xf32>
    %222 = arith.addf %219, %221 : vector<8x512xf32>
    %223 = vector.extract_strided_slice %222 {offsets = [0, 0], sizes = [8, 384], strides = [1, 1]} : vector<8x512xf32> to vector<8x384xf32>
    %224 = arith.negf %223 : vector<8x384xf32>
    %225 = math.exp %224 : vector<8x384xf32>
    %cst_51 = arith.constant 1.000000e+00 : f32
    %226 = vector.broadcast %cst_51 : f32 to vector<8x384xf32>
    %227 = arith.addf %226, %225 : vector<8x384xf32>
    %228 = arith.divf %226, %227 : vector<8x384xf32>
    %229 = vector.extract_strided_slice %228 {offsets = [0, 0], sizes = [8, 128], strides = [1, 1]} : vector<8x384xf32> to vector<8x128xf32>
    %230 = vector.extract_strided_slice %228 {offsets = [0, 128], sizes = [8, 128], strides = [1, 1]} : vector<8x384xf32> to vector<8x128xf32>
    %231 = vector.extract_strided_slice %228 {offsets = [0, 256], sizes = [8, 128], strides = [1, 1]} : vector<8x384xf32> to vector<8x128xf32>
    %232 = vector.extract_strided_slice %222 {offsets = [0, 384], sizes = [8, 128], strides = [1, 1]} : vector<8x512xf32> to vector<8x128xf32>
    %233 = math.tanh %232 : vector<8x128xf32>
    %234 = arith.mulf %230, %190 : vector<8x128xf32>
    %235 = arith.mulf %229, %233 : vector<8x128xf32>
    %236 = arith.addf %234, %235 : vector<8x128xf32>
    %237 = math.tanh %236 : vector<8x128xf32>
    %238 = arith.mulf %231, %237 : vector<8x128xf32>
    %c5_i32 = arith.constant 5 : i32
    %239 = arith.index_cast %c5_i32 : i32 to index
    %c0_52 = arith.constant 0 : index
    %c0_53 = arith.constant 0 : index
    %240 = vector.load %arg2[%239, %c0_52, %c0_53] : memref<8x8x512xbf16, #tpu.memory_space<vmem>>, vector<1x8x512xbf16>
    %241 = vector.shape_cast %240 : vector<1x8x512xbf16> to vector<8x512xbf16>
    %242 = arith.extf %241 : vector<8x512xbf16> to vector<8x512xf32>
    %243 = arith.truncf %215 : vector<8x128xf32> to vector<8x128xbf16>
    %cst_54 = arith.constant dense<0.000000e+00> : vector<8x512xf32>
    %244 = tpu.matmul %243, %3, %cst_54 {dimension_numbers = #tpu.dot_dimension_numbers<[1], [0], [0], [1], [0, 0, 1, 1], [], []>} : vector<8x128xbf16>, vector<128x512xbf16>, vector<8x512xf32> -> vector<8x512xf32>
    %245 = arith.addf %242, %244 : vector<8x512xf32>
    %246 = vector.extract_strided_slice %245 {offsets = [0, 0], sizes = [8, 384], strides = [1, 1]} : vector<8x512xf32> to vector<8x384xf32>
    %247 = arith.negf %246 : vector<8x384xf32>
    %248 = math.exp %247 : vector<8x384xf32>
    %cst_55 = arith.constant 1.000000e+00 : f32
    %249 = vector.broadcast %cst_55 : f32 to vector<8x384xf32>
    %250 = arith.addf %249, %248 : vector<8x384xf32>
    %251 = arith.divf %249, %250 : vector<8x384xf32>
    %252 = vector.extract_strided_slice %251 {offsets = [0, 0], sizes = [8, 128], strides = [1, 1]} : vector<8x384xf32> to vector<8x128xf32>
    %253 = vector.extract_strided_slice %251 {offsets = [0, 128], sizes = [8, 128], strides = [1, 1]} : vector<8x384xf32> to vector<8x128xf32>
    %254 = vector.extract_strided_slice %251 {offsets = [0, 256], sizes = [8, 128], strides = [1, 1]} : vector<8x384xf32> to vector<8x128xf32>
    %255 = vector.extract_strided_slice %245 {offsets = [0, 384], sizes = [8, 128], strides = [1, 1]} : vector<8x512xf32> to vector<8x128xf32>
    %256 = math.tanh %255 : vector<8x128xf32>
    %257 = arith.mulf %253, %213 : vector<8x128xf32>
    %258 = arith.mulf %252, %256 : vector<8x128xf32>
    %259 = arith.addf %257, %258 : vector<8x128xf32>
    %260 = math.tanh %259 : vector<8x128xf32>
    %261 = arith.mulf %254, %260 : vector<8x128xf32>
    %262 = arith.index_cast %c5_i32 : i32 to index
    %c0_56 = arith.constant 0 : index
    %c0_57 = arith.constant 0 : index
    %263 = vector.load %arg3[%262, %c0_56, %c0_57] : memref<8x8x512xbf16, #tpu.memory_space<vmem>>, vector<1x8x512xbf16>
    %264 = vector.shape_cast %263 : vector<1x8x512xbf16> to vector<8x512xbf16>
    %265 = arith.extf %264 : vector<8x512xbf16> to vector<8x512xf32>
    %266 = arith.truncf %238 : vector<8x128xf32> to vector<8x128xbf16>
    %cst_58 = arith.constant dense<0.000000e+00> : vector<8x512xf32>
    %267 = tpu.matmul %266, %4, %cst_58 {dimension_numbers = #tpu.dot_dimension_numbers<[1], [0], [0], [1], [0, 0, 1, 1], [], []>} : vector<8x128xbf16>, vector<128x512xbf16>, vector<8x512xf32> -> vector<8x512xf32>
    %268 = arith.addf %265, %267 : vector<8x512xf32>
    %269 = vector.extract_strided_slice %268 {offsets = [0, 0], sizes = [8, 384], strides = [1, 1]} : vector<8x512xf32> to vector<8x384xf32>
    %270 = arith.negf %269 : vector<8x384xf32>
    %271 = math.exp %270 : vector<8x384xf32>
    %cst_59 = arith.constant 1.000000e+00 : f32
    %272 = vector.broadcast %cst_59 : f32 to vector<8x384xf32>
    %273 = arith.addf %272, %271 : vector<8x384xf32>
    %274 = arith.divf %272, %273 : vector<8x384xf32>
    %275 = vector.extract_strided_slice %274 {offsets = [0, 0], sizes = [8, 128], strides = [1, 1]} : vector<8x384xf32> to vector<8x128xf32>
    %276 = vector.extract_strided_slice %274 {offsets = [0, 128], sizes = [8, 128], strides = [1, 1]} : vector<8x384xf32> to vector<8x128xf32>
    %277 = vector.extract_strided_slice %274 {offsets = [0, 256], sizes = [8, 128], strides = [1, 1]} : vector<8x384xf32> to vector<8x128xf32>
    %278 = vector.extract_strided_slice %268 {offsets = [0, 384], sizes = [8, 128], strides = [1, 1]} : vector<8x512xf32> to vector<8x128xf32>
    %279 = math.tanh %278 : vector<8x128xf32>
    %280 = arith.mulf %276, %236 : vector<8x128xf32>
    %281 = arith.mulf %275, %279 : vector<8x128xf32>
    %282 = arith.addf %280, %281 : vector<8x128xf32>
    %283 = math.tanh %282 : vector<8x128xf32>
    %284 = arith.mulf %277, %283 : vector<8x128xf32>
    %c6_i32 = arith.constant 6 : i32
    %285 = arith.index_cast %c6_i32 : i32 to index
    %c0_60 = arith.constant 0 : index
    %c0_61 = arith.constant 0 : index
    %286 = vector.load %arg2[%285, %c0_60, %c0_61] : memref<8x8x512xbf16, #tpu.memory_space<vmem>>, vector<1x8x512xbf16>
    %287 = vector.shape_cast %286 : vector<1x8x512xbf16> to vector<8x512xbf16>
    %288 = arith.extf %287 : vector<8x512xbf16> to vector<8x512xf32>
    %289 = arith.truncf %261 : vector<8x128xf32> to vector<8x128xbf16>
    %cst_62 = arith.constant dense<0.000000e+00> : vector<8x512xf32>
    %290 = tpu.matmul %289, %3, %cst_62 {dimension_numbers = #tpu.dot_dimension_numbers<[1], [0], [0], [1], [0, 0, 1, 1], [], []>} : vector<8x128xbf16>, vector<128x512xbf16>, vector<8x512xf32> -> vector<8x512xf32>
    %291 = arith.addf %288, %290 : vector<8x512xf32>
    %292 = vector.extract_strided_slice %291 {offsets = [0, 0], sizes = [8, 384], strides = [1, 1]} : vector<8x512xf32> to vector<8x384xf32>
    %293 = arith.negf %292 : vector<8x384xf32>
    %294 = math.exp %293 : vector<8x384xf32>
    %cst_63 = arith.constant 1.000000e+00 : f32
    %295 = vector.broadcast %cst_63 : f32 to vector<8x384xf32>
    %296 = arith.addf %295, %294 : vector<8x384xf32>
    %297 = arith.divf %295, %296 : vector<8x384xf32>
    %298 = vector.extract_strided_slice %297 {offsets = [0, 0], sizes = [8, 128], strides = [1, 1]} : vector<8x384xf32> to vector<8x128xf32>
    %299 = vector.extract_strided_slice %297 {offsets = [0, 128], sizes = [8, 128], strides = [1, 1]} : vector<8x384xf32> to vector<8x128xf32>
    %300 = vector.extract_strided_slice %297 {offsets = [0, 256], sizes = [8, 128], strides = [1, 1]} : vector<8x384xf32> to vector<8x128xf32>
    %301 = vector.extract_strided_slice %291 {offsets = [0, 384], sizes = [8, 128], strides = [1, 1]} : vector<8x512xf32> to vector<8x128xf32>
    %302 = math.tanh %301 : vector<8x128xf32>
    %303 = arith.mulf %299, %259 : vector<8x128xf32>
    %304 = arith.mulf %298, %302 : vector<8x128xf32>
    %305 = arith.addf %303, %304 : vector<8x128xf32>
    %306 = math.tanh %305 : vector<8x128xf32>
    %307 = arith.mulf %300, %306 : vector<8x128xf32>
    %308 = arith.index_cast %c6_i32 : i32 to index
    %c0_64 = arith.constant 0 : index
    %c0_65 = arith.constant 0 : index
    %309 = vector.load %arg3[%308, %c0_64, %c0_65] : memref<8x8x512xbf16, #tpu.memory_space<vmem>>, vector<1x8x512xbf16>
    %310 = vector.shape_cast %309 : vector<1x8x512xbf16> to vector<8x512xbf16>
    %311 = arith.extf %310 : vector<8x512xbf16> to vector<8x512xf32>
    %312 = arith.truncf %284 : vector<8x128xf32> to vector<8x128xbf16>
    %cst_66 = arith.constant dense<0.000000e+00> : vector<8x512xf32>
    %313 = tpu.matmul %312, %4, %cst_66 {dimension_numbers = #tpu.dot_dimension_numbers<[1], [0], [0], [1], [0, 0, 1, 1], [], []>} : vector<8x128xbf16>, vector<128x512xbf16>, vector<8x512xf32> -> vector<8x512xf32>
    %314 = arith.addf %311, %313 : vector<8x512xf32>
    %315 = vector.extract_strided_slice %314 {offsets = [0, 0], sizes = [8, 384], strides = [1, 1]} : vector<8x512xf32> to vector<8x384xf32>
    %316 = arith.negf %315 : vector<8x384xf32>
    %317 = math.exp %316 : vector<8x384xf32>
    %cst_67 = arith.constant 1.000000e+00 : f32
    %318 = vector.broadcast %cst_67 : f32 to vector<8x384xf32>
    %319 = arith.addf %318, %317 : vector<8x384xf32>
    %320 = arith.divf %318, %319 : vector<8x384xf32>
    %321 = vector.extract_strided_slice %320 {offsets = [0, 0], sizes = [8, 128], strides = [1, 1]} : vector<8x384xf32> to vector<8x128xf32>
    %322 = vector.extract_strided_slice %320 {offsets = [0, 128], sizes = [8, 128], strides = [1, 1]} : vector<8x384xf32> to vector<8x128xf32>
    %323 = vector.extract_strided_slice %320 {offsets = [0, 256], sizes = [8, 128], strides = [1, 1]} : vector<8x384xf32> to vector<8x128xf32>
    %324 = vector.extract_strided_slice %314 {offsets = [0, 384], sizes = [8, 128], strides = [1, 1]} : vector<8x512xf32> to vector<8x128xf32>
    %325 = math.tanh %324 : vector<8x128xf32>
    %326 = arith.mulf %322, %282 : vector<8x128xf32>
    %327 = arith.mulf %321, %325 : vector<8x128xf32>
    %328 = arith.addf %326, %327 : vector<8x128xf32>
    %329 = math.tanh %328 : vector<8x128xf32>
    %330 = arith.mulf %323, %329 : vector<8x128xf32>
    %c7_i32 = arith.constant 7 : i32
    %331 = arith.index_cast %c7_i32 : i32 to index
    %c0_68 = arith.constant 0 : index
    %c0_69 = arith.constant 0 : index
    %332 = vector.load %arg2[%331, %c0_68, %c0_69] : memref<8x8x512xbf16, #tpu.memory_space<vmem>>, vector<1x8x512xbf16>
    %333 = vector.shape_cast %332 : vector<1x8x512xbf16> to vector<8x512xbf16>
    %334 = arith.extf %333 : vector<8x512xbf16> to vector<8x512xf32>
    %335 = arith.truncf %307 : vector<8x128xf32> to vector<8x128xbf16>
    %cst_70 = arith.constant dense<0.000000e+00> : vector<8x512xf32>
    %336 = tpu.matmul %335, %3, %cst_70 {dimension_numbers = #tpu.dot_dimension_numbers<[1], [0], [0], [1], [0, 0, 1, 1], [], []>} : vector<8x128xbf16>, vector<128x512xbf16>, vector<8x512xf32> -> vector<8x512xf32>
    %337 = arith.addf %334, %336 : vector<8x512xf32>
    %338 = vector.extract_strided_slice %337 {offsets = [0, 0], sizes = [8, 384], strides = [1, 1]} : vector<8x512xf32> to vector<8x384xf32>
    %339 = arith.negf %338 : vector<8x384xf32>
    %340 = math.exp %339 : vector<8x384xf32>
    %cst_71 = arith.constant 1.000000e+00 : f32
    %341 = vector.broadcast %cst_71 : f32 to vector<8x384xf32>
    %342 = arith.addf %341, %340 : vector<8x384xf32>
    %343 = arith.divf %341, %342 : vector<8x384xf32>
    %344 = vector.extract_strided_slice %343 {offsets = [0, 0], sizes = [8, 128], strides = [1, 1]} : vector<8x384xf32> to vector<8x128xf32>
    %345 = vector.extract_strided_slice %343 {offsets = [0, 128], sizes = [8, 128], strides = [1, 1]} : vector<8x384xf32> to vector<8x128xf32>
    %346 = vector.extract_strided_slice %343 {offsets = [0, 256], sizes = [8, 128], strides = [1, 1]} : vector<8x384xf32> to vector<8x128xf32>
    %347 = vector.extract_strided_slice %337 {offsets = [0, 384], sizes = [8, 128], strides = [1, 1]} : vector<8x512xf32> to vector<8x128xf32>
    %348 = math.tanh %347 : vector<8x128xf32>
    %349 = arith.mulf %345, %305 : vector<8x128xf32>
    %350 = arith.mulf %344, %348 : vector<8x128xf32>
    %351 = arith.addf %349, %350 : vector<8x128xf32>
    %352 = math.tanh %351 : vector<8x128xf32>
    %353 = arith.mulf %346, %352 : vector<8x128xf32>
    %354 = arith.index_cast %c7_i32 : i32 to index
    %c0_72 = arith.constant 0 : index
    %c0_73 = arith.constant 0 : index
    %355 = vector.load %arg3[%354, %c0_72, %c0_73] : memref<8x8x512xbf16, #tpu.memory_space<vmem>>, vector<1x8x512xbf16>
    %356 = vector.shape_cast %355 : vector<1x8x512xbf16> to vector<8x512xbf16>
    %357 = arith.extf %356 : vector<8x512xbf16> to vector<8x512xf32>
    %358 = arith.truncf %330 : vector<8x128xf32> to vector<8x128xbf16>
    %cst_74 = arith.constant dense<0.000000e+00> : vector<8x512xf32>
    %359 = tpu.matmul %358, %4, %cst_74 {dimension_numbers = #tpu.dot_dimension_numbers<[1], [0], [0], [1], [0, 0, 1, 1], [], []>} : vector<8x128xbf16>, vector<128x512xbf16>, vector<8x512xf32> -> vector<8x512xf32>
    %360 = arith.addf %357, %359 : vector<8x512xf32>
    %361 = vector.extract_strided_slice %360 {offsets = [0, 0], sizes = [8, 384], strides = [1, 1]} : vector<8x512xf32> to vector<8x384xf32>
    %362 = arith.negf %361 : vector<8x384xf32>
    %363 = math.exp %362 : vector<8x384xf32>
    %cst_75 = arith.constant 1.000000e+00 : f32
    %364 = vector.broadcast %cst_75 : f32 to vector<8x384xf32>
    %365 = arith.addf %364, %363 : vector<8x384xf32>
    %366 = arith.divf %364, %365 : vector<8x384xf32>
    %367 = vector.extract_strided_slice %366 {offsets = [0, 0], sizes = [8, 128], strides = [1, 1]} : vector<8x384xf32> to vector<8x128xf32>
    %368 = vector.extract_strided_slice %366 {offsets = [0, 128], sizes = [8, 128], strides = [1, 1]} : vector<8x384xf32> to vector<8x128xf32>
    %369 = vector.extract_strided_slice %366 {offsets = [0, 256], sizes = [8, 128], strides = [1, 1]} : vector<8x384xf32> to vector<8x128xf32>
    %370 = vector.extract_strided_slice %360 {offsets = [0, 384], sizes = [8, 128], strides = [1, 1]} : vector<8x512xf32> to vector<8x128xf32>
    %371 = math.tanh %370 : vector<8x128xf32>
    %372 = arith.mulf %368, %328 : vector<8x128xf32>
    %373 = arith.mulf %367, %371 : vector<8x128xf32>
    %374 = arith.addf %372, %373 : vector<8x128xf32>
    %375 = math.tanh %374 : vector<8x128xf32>
    %376 = arith.mulf %369, %375 : vector<8x128xf32>
    %c8_i32 = arith.constant 8 : i32
    %c0_76 = arith.constant 0 : index
    %c0_77 = arith.constant 0 : index
    %377 = vector.load %arg13[%c0_76, %c0_77] : memref<8x128xf32, #tpu.memory_space<vmem>>, vector<8x128xf32>
    tpu.vector_store %arg13[%c0_76, %c0_77], %353 {strides = array<i32>} : memref<8x128xf32, #tpu.memory_space<vmem>>, vector<8x128xf32>,
    %c0_78 = arith.constant 0 : index
    %c0_79 = arith.constant 0 : index
    %378 = vector.load %arg14[%c0_78, %c0_79] : memref<8x128xf32, #tpu.memory_space<vmem>>, vector<8x128xf32>
    tpu.vector_store %arg14[%c0_78, %c0_79], %351 {strides = array<i32>} : memref<8x128xf32, #tpu.memory_space<vmem>>, vector<8x128xf32>,
    %c0_80 = arith.constant 0 : index
    %c0_81 = arith.constant 0 : index
    %379 = vector.load %arg15[%c0_80, %c0_81] : memref<8x128xf32, #tpu.memory_space<vmem>>, vector<8x128xf32>
    tpu.vector_store %arg15[%c0_80, %c0_81], %376 {strides = array<i32>} : memref<8x128xf32, #tpu.memory_space<vmem>>, vector<8x128xf32>,
    %c0_82 = arith.constant 0 : index
    %c0_83 = arith.constant 0 : index
    %380 = vector.load %arg16[%c0_82, %c0_83] : memref<8x128xf32, #tpu.memory_space<vmem>>, vector<8x128xf32>
    tpu.vector_store %arg16[%c0_82, %c0_83], %374 {strides = array<i32>} : memref<8x128xf32, #tpu.memory_space<vmem>>, vector<8x128xf32>,
    %c0_i32_84 = arith.constant 0 : i32
    %381 = arith.cmpi eq, %arg1, %c0_i32_84 : i32
    %382 = arith.extui %381 : i1 to i32
    %c0_i32_85 = arith.constant 0 : i32
    %383 = arith.cmpi ne, %382, %c0_i32_85 : i32
    scf.if %383 {
      %c0_86 = arith.constant 0 : index
      %c0_87 = arith.constant 0 : index
      %384 = vector.load %arg6[%c0_86, %c0_87] : memref<256x384xbf16, #tpu.memory_space<vmem>>, vector<256x384xbf16>
      %385 = arith.truncf %353 : vector<8x128xf32> to vector<8x128xbf16>
      %386 = vector.extract_strided_slice %384 {offsets = [0, 0], sizes = [128, 384], strides = [1, 1]} : vector<256x384xbf16> to vector<128x384xbf16>
      %cst_88 = arith.constant dense<0.000000e+00> : vector<8x384xf32>
      %387 = tpu.matmul %385, %386, %cst_88 {dimension_numbers = #tpu.dot_dimension_numbers<[1], [0], [0], [1], [0, 0, 1, 1], [], []>} : vector<8x128xbf16>, vector<128x384xbf16>, vector<8x384xf32> -> vector<8x384xf32>
      %388 = arith.truncf %376 : vector<8x128xf32> to vector<8x128xbf16>
      %389 = vector.extract_strided_slice %384 {offsets = [128, 0], sizes = [128, 384], strides = [1, 1]} : vector<256x384xbf16> to vector<128x384xbf16>
      %cst_89 = arith.constant dense<0.000000e+00> : vector<8x384xf32>
      %390 = tpu.matmul %388, %389, %cst_89 {dimension_numbers = #tpu.dot_dimension_numbers<[1], [0], [0], [1], [0, 0, 1, 1], [], []>} : vector<8x128xbf16>, vector<128x384xbf16>, vector<8x384xf32> -> vector<8x384xf32>
      %391 = arith.addf %387, %390 : vector<8x384xf32>
      %c0_90 = arith.constant 0 : index
      %c0_91 = arith.constant 0 : index
      %392 = vector.load %arg7[%c0_90, %c0_91] : memref<1x384xf32, #tpu.memory_space<vmem>>, vector<1x384xf32>
      %393 = vector.broadcast %392 : vector<1x384xf32> to vector<8x384xf32>
      %394 = arith.addf %391, %393 : vector<8x384xf32>
      %395 = vector.extract_strided_slice %394 {offsets = [0, 0], sizes = [8, 256], strides = [1, 1]} : vector<8x384xf32> to vector<8x256xf32>
      %396 = arith.negf %395 : vector<8x256xf32>
      %397 = math.exp %396 : vector<8x256xf32>
      %cst_92 = arith.constant 1.000000e+00 : f32
      %398 = vector.broadcast %cst_92 : f32 to vector<8x256xf32>
      %399 = arith.addf %398, %397 : vector<8x256xf32>
      %400 = arith.divf %398, %399 : vector<8x256xf32>
      %401 = vector.extract_strided_slice %400 {offsets = [0, 0], sizes = [8, 128], strides = [1, 1]} : vector<8x256xf32> to vector<8x128xf32>
      %402 = vector.extract_strided_slice %400 {offsets = [0, 128], sizes = [8, 128], strides = [1, 1]} : vector<8x256xf32> to vector<8x128xf32>
      %403 = vector.extract_strided_slice %394 {offsets = [0, 256], sizes = [8, 128], strides = [1, 1]} : vector<8x384xf32> to vector<8x128xf32>
      %404 = math.tanh %403 : vector<8x128xf32>
      %405 = arith.mulf %401, %404 : vector<8x128xf32>
      %406 = math.tanh %405 : vector<8x128xf32>
      %407 = arith.mulf %402, %406 : vector<8x128xf32>
      %408 = arith.truncf %407 : vector<8x128xf32> to vector<8x128xbf16>
      %c0_93 = arith.constant 0 : index
      %c0_94 = arith.constant 0 : index
      %409 = vector.load %arg8[%c0_93, %c0_94] : memref<128x64xbf16, #tpu.memory_space<vmem>>, vector<128x64xbf16>
      %cst_95 = arith.constant dense<0.000000e+00> : vector<8x64xf32>
      %410 = tpu.matmul %408, %409, %cst_95 {dimension_numbers = #tpu.dot_dimension_numbers<[1], [0], [0], [1], [0, 0, 1, 1], [], []>} : vector<8x128xbf16>, vector<128x64xbf16>, vector<8x64xf32> -> vector<8x64xf32>
      %c0_96 = arith.constant 0 : index
      %c0_97 = arith.constant 0 : index
      %411 = vector.load %arg9[%c0_96, %c0_97] : memref<1x64xf32, #tpu.memory_space<vmem>>, vector<1x64xf32>
      %412 = vector.broadcast %411 : vector<1x64xf32> to vector<8x64xf32>
      %413 = arith.addf %410, %412 : vector<8x64xf32>
      %cst_98 = arith.constant 0.000000e+00 : f32
      %414 = vector.broadcast %cst_98 : f32 to vector<8x64xf32>
      %415 = arith.maximumf %413, %414 : vector<8x64xf32>
      %416 = arith.truncf %415 : vector<8x64xf32> to vector<8x64xbf16>
      %c0_99 = arith.constant 0 : index
      %c0_100 = arith.constant 0 : index
      %417 = vector.load %arg10[%c0_99, %c0_100] : memref<64x128xbf16, #tpu.memory_space<vmem>>, vector<64x128xbf16>
      %cst_101 = arith.constant dense<0.000000e+00> : vector<8x128xf32>
      %418 = tpu.matmul %416, %417, %cst_101 {dimension_numbers = #tpu.dot_dimension_numbers<[1], [0], [0], [1], [0, 0, 1, 1], [], []>} : vector<8x64xbf16>, vector<64x128xbf16>, vector<8x128xf32> -> vector<8x128xf32>
      %c0_102 = arith.constant 0 : index
      %c0_103 = arith.constant 0 : index
      %419 = vector.load %arg11[%c0_102, %c0_103] : memref<1x128xf32, #tpu.memory_space<vmem>>, vector<1x128xf32>
      %420 = vector.broadcast %419 : vector<1x128xf32> to vector<8x128xf32>
      %421 = arith.addf %418, %420 : vector<8x128xf32>
      %c0_104 = arith.constant 0 : index
      %c0_105 = arith.constant 0 : index
      %422 = vector.load %arg12[%c0_104, %c0_105] : memref<8x128xf32, #tpu.memory_space<vmem>>, vector<8x128xf32>
      tpu.vector_store %arg12[%c0_104, %c0_105], %421 {strides = array<i32>} : memref<8x128xf32, #tpu.memory_space<vmem>>, vector<8x128xf32>,
    } else {
    }
    return
  }
  func.func @transform_0(%arg0: i32, %arg1: i32) -> (i32, i32, i32) {
    %c0_i32 = arith.constant 0 : i32
    %c0_i32_0 = arith.constant 0 : i32
    return %arg1, %arg0, %c0_i32 : i32, i32, i32
  }
  func.func @transform_1(%arg0: i32, %arg1: i32) -> (i32, i32, i32) {
    %c0_i32 = arith.constant 0 : i32
    %c0_i32_0 = arith.constant 0 : i32
    return %arg1, %arg0, %c0_i32 : i32, i32, i32
  }
  func.func @transform_2(%arg0: i32, %arg1: i32) -> (i32, i32) {
    %c0_i32 = arith.constant 0 : i32
    %c0_i32_0 = arith.constant 0 : i32
    %c0_i32_1 = arith.constant 0 : i32
    return %c0_i32, %c0_i32_0 : i32, i32
  }
  func.func @transform_3(%arg0: i32, %arg1: i32) -> (i32, i32) {
    %c0_i32 = arith.constant 0 : i32
    %c0_i32_0 = arith.constant 0 : i32
    %c0_i32_1 = arith.constant 0 : i32
    return %c0_i32, %c0_i32_0 : i32, i32
  }
  func.func @transform_4(%arg0: i32, %arg1: i32) -> (i32, i32) {
    %c0_i32 = arith.constant 0 : i32
    %c0_i32_0 = arith.constant 0 : i32
    %c0_i32_1 = arith.constant 0 : i32
    return %c0_i32, %c0_i32_0 : i32, i32
  }
  func.func @transform_5(%arg0: i32, %arg1: i32) -> (i32, i32) {
    %c0_i32 = arith.constant 0 : i32
    %c0_i32_0 = arith.constant 0 : i32
    %c0_i32_1 = arith.constant 0 : i32
    return %c0_i32, %c0_i32_0 : i32, i32
  }
  func.func @transform_6(%arg0: i32, %arg1: i32) -> (i32, i32) {
    %c0_i32 = arith.constant 0 : i32
    %c0_i32_0 = arith.constant 0 : i32
    %c0_i32_1 = arith.constant 0 : i32
    return %c0_i32, %c0_i32_0 : i32, i32
  }
  func.func @transform_7(%arg0: i32, %arg1: i32) -> (i32, i32) {
    %c0_i32 = arith.constant 0 : i32
    %c0_i32_0 = arith.constant 0 : i32
    %c0_i32_1 = arith.constant 0 : i32
    return %c0_i32, %c0_i32_0 : i32, i32
  }
  func.func @transform_8(%arg0: i32, %arg1: i32) -> (i32, i32) {
    %c0_i32 = arith.constant 0 : i32
    %c0_i32_0 = arith.constant 0 : i32
    %c0_i32_1 = arith.constant 0 : i32
    return %c0_i32, %c0_i32_0 : i32, i32
  }
  func.func @transform_9(%arg0: i32, %arg1: i32) -> (i32, i32) {
    %c0_i32 = arith.constant 0 : i32
    %c0_i32_0 = arith.constant 0 : i32
    %c0_i32_1 = arith.constant 0 : i32
    return %c0_i32, %c0_i32_0 : i32, i32
  }
  func.func @transform_10(%arg0: i32, %arg1: i32) -> (i32, i32) {
    %c0_i32 = arith.constant 0 : i32
    %c0_i32_0 = arith.constant 0 : i32
    return %arg0, %c0_i32 : i32, i32
  }
}

</mosaic_0001>

<llo_original>
// kernel: bilstm_classifier_forward.1
$region0: #{bilstm_classifier_forward.1}
  #allocation0 [shape = 'u32[]', space=smem, size = 0x4, offset = 0x4, fixed_abs, tag = 'smem constant byte address 0x4 - core index']
  #allocation1 [shape = 'u32[72,128]{1,0:T(1,128)}', space=vmem, size = 0x9000, scoped, tag = 'internal scratch']
  #allocation2 [shape = 'f32[8,128]{1,0:T(8,128)}', space=vmem, size = 0x1000, scoped, tag = 'scratch operand']
  #allocation3 [shape = 'f32[8,128]{1,0:T(8,128)}', space=vmem, size = 0x1000, scoped, tag = 'scratch operand']
  #allocation4 [shape = 'f32[8,128]{1,0:T(8,128)}', space=vmem, size = 0x1000, scoped, tag = 'scratch operand']
  #allocation5 [shape = 'f32[8,128]{1,0:T(8,128)}', space=vmem, size = 0x1000, scoped, tag = 'scratch operand']
  %s0 = inlined_call_operand.vmem [shape: bf16[8,8,512], index: 0, kind: input, shape index: {}]
  %s1 = inlined_call_operand.vmem [shape: bf16[8,8,512], index: 1, kind: input, shape index: {}]
  %s2 = inlined_call_operand.vmem [shape: bf16[128,512], index: 2, kind: input, shape index: {}]
  %s3 = inlined_call_operand.vmem [shape: bf16[128,512], index: 3, kind: input, shape index: {}]
  %s4 = inlined_call_operand.vmem [shape: bf16[256,384], index: 4, kind: input, shape index: {}]
  %s5 = inlined_call_operand.vmem [shape: f32[1,384], index: 5, kind: input, shape index: {}]
  %s6 = inlined_call_operand.vmem [shape: bf16[128,64], index: 6, kind: input, shape index: {}]
  %s7 = inlined_call_operand.vmem [shape: f32[1,64], index: 7, kind: input, shape index: {}]
  %s8 = inlined_call_operand.vmem [shape: bf16[64,128], index: 8, kind: input, shape index: {}]
  %s9 = inlined_call_operand.vmem [shape: f32[1,128], index: 9, kind: input, shape index: {}]
  %s10 = inlined_call_operand.vmem [shape: f32[8,128], index: 10, kind: output, shape index: {}]
  %s11 = sld [smem:[#allocation0]]
  $region58: #{bilstm_classifier_forward.1} parent=0
    _
  %s13 = ssub.s32 1, %s11
  %s14 = scalar_select 0, %s13, %s11
  // Predicated region
  $region2: #{bilstm_classifier_forward.1} parent=0 // pred_check
    _
  $region3: #{bilstm_classifier_forward.1} parent=0 // pred_check_branch
    %16 = sbr.rel (0) target = $region5
  $region4: #{bilstm_classifier_forward.1} parent=0 // pred_region
    _
  $region5: #{bilstm_classifier_forward.1} parent=0 // pred_fallthru
    _
  // Predicated region
  $region6: #{bilstm_classifier_forward.1} parent=0 // pred_check
    _
  $region7: #{bilstm_classifier_forward.1} parent=0 // pred_check_branch
    %18 = sbr.rel (0) target = $region9
  $region8: #{bilstm_classifier_forward.1} parent=0 // pred_region
    _
  $region9: #{bilstm_classifier_forward.1} parent=0 // pred_fallthru
    _
  // Predicated region
  $region10: #{bilstm_classifier_forward.1} parent=0 // pred_check
    _
  $region11: #{bilstm_classifier_forward.1} parent=0 // pred_check_branch
    %20 = sbr.rel (0) target = $region13
  $region12: #{bilstm_classifier_forward.1} parent=0 // pred_region
    _
  $region13: #{bilstm_classifier_forward.1} parent=0 // pred_fallthru
    _
  // Predicated region
  $region14: #{bilstm_classifier_forward.1} parent=0 // pred_check
    _
  $region15: #{bilstm_classifier_forward.1} parent=0 // pred_check_branch
    %22 = sbr.rel (0) target = $region17
  $region16: #{bilstm_classifier_forward.1} parent=0 // pred_region
    _
  $region17: #{bilstm_classifier_forward.1} parent=0 // pred_fallthru
    _
  // Predicated region
  $region18: #{bilstm_classifier_forward.1} parent=0 // pred_check
    _
  $region19: #{bilstm_classifier_forward.1} parent=0 // pred_check_branch
    %24 = sbr.rel (0) target = $region21
  $region20: #{bilstm_classifier_forward.1} parent=0 // pred_region
    _
  $region21: #{bilstm_classifier_forward.1} parent=0 // pred_fallthru
    _
  // Predicated region
  $region22: #{bilstm_classifier_forward.1} parent=0 // pred_check
    _
  $region23: #{bilstm_classifier_forward.1} parent=0 // pred_check_branch
    %26 = sbr.rel (0) target = $region25
  $region24: #{bilstm_classifier_forward.1} parent=0 // pred_region
    _
  $region25: #{bilstm_classifier_forward.1} parent=0 // pred_fallthru
    _
  // Predicated region
  $region26: #{bilstm_classifier_forward.1} parent=0 // pred_check
    _
  $region27: #{bilstm_classifier_forward.1} parent=0 // pred_check_branch
    %28 = sbr.rel (0) target = $region29
  $region28: #{bilstm_classifier_forward.1} parent=0 // pred_region
    _
  $region29: #{bilstm_classifier_forward.1} parent=0 // pred_fallthru
    _
  // Predicated region
  $region30: #{bilstm_classifier_forward.1} parent=0 // pred_check
    _
  $region31: #{bilstm_classifier_forward.1} parent=0 // pred_check_branch
    %30 = sbr.rel (0) target = $region33
  $region32: #{bilstm_classifier_forward.1} parent=0 // pred_region
    _
  $region33: #{bilstm_classifier_forward.1} parent=0 // pred_fallthru
    _
  // Predicated region
  $region34: #{bilstm_classifier_forward.1} parent=0 // pred_check
    _
  $region35: #{bilstm_classifier_forward.1} parent=0 // pred_check_branch
    %32 = sbr.rel (0) target = $region37
  $region36: #{bilstm_classifier_forward.1} parent=0 // pred_region
    _
  $region37: #{bilstm_classifier_forward.1} parent=0 // pred_fallthru
    _
  // Predicated region
  $region38: #{bilstm_classifier_forward.1} parent=0 // pred_check
    _
  $region39: #{bilstm_classifier_forward.1} parent=0 // pred_check_branch
    %34 = sbr.rel (0) target = $region41
  $region40: #{bilstm_classifier_forward.1} parent=0 // pred_region
    _
  $region41: #{bilstm_classifier_forward.1} parent=0 // pred_fallthru
    _
  %p36 = scmp.eq.s32.totalorder 0, 0
  // Predicated region
  $region42: #{bilstm_classifier_forward.1} parent=0 // pred_check
    %p37 = pneg %p36
  $region43: #{bilstm_classifier_forward.1} parent=0 // pred_check_branch
    %39 = sbr.rel (%p37) target = $region45
  $region44: #{bilstm_classifier_forward.1} parent=0 // pred_region
    %40 = vst [vmem:[#allocation2] sm:$0xff] 0.0
    %41 = vst [vmem:[#allocation3] sm:$0xff] 0.0
    %42 = vst [vmem:[#allocation4] sm:$0xff] 0.0
    %43 = vst [vmem:[#allocation5] sm:$0xff] 0.0
  $region45: #{bilstm_classifier_forward.1} parent=0 // pred_fallthru
    _
  %v44 = vld [vmem:[%s2] sm:$0xff]
  %v45 = vld [vmem:[%s2 + $0x8] sm:$0xff]
  %v46 = vld [vmem:[%s2 + $0x10] sm:$0xff]
  %v47 = vld [vmem:[%s2 + $0x18] sm:$0xff]
  %v48 = vld [vmem:[%s2 + $0x20] sm:$0xff]
  %v49 = vld [vmem:[%s2 + $0x28] sm:$0xff]
  %v50 = vld [vmem:[%s2 + $0x30] sm:$0xff]
  %v51 = vld [vmem:[%s2 + $0x38] sm:$0xff]
  %v52 = vld [vmem:[%s2 + $0x40] sm:$0xff]
  %v53 = vld [vmem:[%s2 + $0x48] sm:$0xff]
  %v54 = vld [vmem:[%s2 + $0x50] sm:$0xff]
  %v55 = vld [vmem:[%s2 + $0x58] sm:$0xff]
  %v56 = vld [vmem:[%s2 + $0x60] sm:$0xff]
  %v57 = vld [vmem:[%s2 + $0x68] sm:$0xff]
  %v58 = vld [vmem:[%s2 + $0x70] sm:$0xff]
  %v59 = vld [vmem:[%s2 + $0x78] sm:$0xff]
  %v60 = vld [vmem:[%s2 + $0x80] sm:$0xff]
  %v61 = vld [vmem:[%s2 + $0x88] sm:$0xff]
  %v62 = vld [vmem:[%s2 + $0x90] sm:$0xff]
  %v63 = vld [vmem:[%s2 + $0x98] sm:$0xff]
  %v64 = vld [vmem:[%s2 + $0xa0] sm:$0xff]
  %v65 = vld [vmem:[%s2 + $0xa8] sm:$0xff]
  %v66 = vld [vmem:[%s2 + $0xb0] sm:$0xff]
  %v67 = vld [vmem:[%s2 + $0xb8] sm:$0xff]
  %v68 = vld [vmem:[%s2 + $0xc0] sm:$0xff]
  %v69 = vld [vmem:[%s2 + $0xc8] sm:$0xff]
  %v70 = vld [vmem:[%s2 + $0xd0] sm:$0xff]
  %v71 = vld [vmem:[%s2 + $0xd8] sm:$0xff]
  %v72 = vld [vmem:[%s2 + $0xe0] sm:$0xff]
  %v73 = vld [vmem:[%s2 + $0xe8] sm:$0xff]
  %v74 = vld [vmem:[%s2 + $0xf0] sm:$0xff]
  %v75 = vld [vmem:[%s2 + $0xf8] sm:$0xff]
  %v76 = vld [vmem:[%s3] sm:$0xff]
  %v77 = vld [vmem:[%s3 + $0x8] sm:$0xff]
  %v78 = vld [vmem:[%s3 + $0x10] sm:$0xff]
  %v79 = vld [vmem:[%s3 + $0x18] sm:$0xff]
  %v80 = vld [vmem:[%s3 + $0x20] sm:$0xff]
  %v81 = vld [vmem:[%s3 + $0x28] sm:$0xff]
  %v82 = vld [vmem:[%s3 + $0x30] sm:$0xff]
  %v83 = vld [vmem:[%s3 + $0x38] sm:$0xff]
  %v84 = vld [vmem:[%s3 + $0x40] sm:$0xff]
  %v85 = vld [vmem:[%s3 + $0x48] sm:$0xff]
  %v86 = vld [vmem:[%s3 + $0x50] sm:$0xff]
  %v87 = vld [vmem:[%s3 + $0x58] sm:$0xff]
  %v88 = vld [vmem:[%s3 + $0x60] sm:$0xff]
  %v89 = vld [vmem:[%s3 + $0x68] sm:$0xff]
  %v90 = vld [vmem:[%s3 + $0x70] sm:$0xff]
  %v91 = vld [vmem:[%s3 + $0x78] sm:$0xff]
  %v92 = vld [vmem:[%s3 + $0x80] sm:$0xff]
  %v93 = vld [vmem:[%s3 + $0x88] sm:$0xff]
  %v94 = vld [vmem:[%s3 + $0x90] sm:$0xff]
  %v95 = vld [vmem:[%s3 + $0x98] sm:$0xff]
  %v96 = vld [vmem:[%s3 + $0xa0] sm:$0xff]
  %v97 = vld [vmem:[%s3 + $0xa8] sm:$0xff]
  %v98 = vld [vmem:[%s3 + $0xb0] sm:$0xff]
  %v99 = vld [vmem:[%s3 + $0xb8] sm:$0xff]
  %v100 = vld [vmem:[%s3 + $0xc0] sm:$0xff]
  %v101 = vld [vmem:[%s3 + $0xc8] sm:$0xff]
  %v102 = vld [vmem:[%s3 + $0xd0] sm:$0xff]
  %v103 = vld [vmem:[%s3 + $0xd8] sm:$0xff]
  %v104 = vld [vmem:[%s3 + $0xe0] sm:$0xff]
  %v105 = vld [vmem:[%s3 + $0xe8] sm:$0xff]
  %v106 = vld [vmem:[%s3 + $0xf0] sm:$0xff]
  %v107 = vld [vmem:[%s3 + $0xf8] sm:$0xff]
  %v108 = vld [vmem:[#allocation2] sm:$0xff]
  %v109 = vld [vmem:[#allocation3] sm:$0xff]
  %v110 = vld [vmem:[#allocation4] sm:$0xff]
  %v111 = vld [vmem:[#allocation5] sm:$0xff]
  %v112 = vld [vmem:[%s0] sm:$0xff]
  %v113 = vld [vmem:[%s0 + $0x8] sm:$0xff]
  %v114 = vunpack.c.l.bf16 %v112
  %v115 = vunpack.c.h.bf16 %v112
  %v116 = vunpack.c.l.bf16 %v113
  %v117 = vunpack.c.h.bf16 %v113
  %v118 = vpack.c.bf16 %v108, %v108
  %v151 = vunpack.c.l.b16 %v44
  %v152 = vunpack.c.h.b16 %v44
  %v153 = vunpack.c.l.b16 %v45
  %v154 = vunpack.c.h.b16 %v45
  %v155 = vunpack.c.l.b16 %v46
  %v156 = vunpack.c.h.b16 %v46
  %v157 = vunpack.c.l.b16 %v47
  %v158 = vunpack.c.h.b16 %v47
  %v159 = vunpack.c.l.b16 %v48
  %v160 = vunpack.c.h.b16 %v48
  %v161 = vunpack.c.l.b16 %v49
  %v162 = vunpack.c.h.b16 %v49
  %v163 = vunpack.c.l.b16 %v50
  %v164 = vunpack.c.h.b16 %v50
  %v165 = vunpack.c.l.b16 %v51
  %v166 = vunpack.c.h.b16 %v51
  %v167 = vunpack.c.l.b16 %v52
  %v168 = vunpack.c.h.b16 %v52
  %v169 = vunpack.c.l.b16 %v53
  %v170 = vunpack.c.h.b16 %v53
  %v171 = vunpack.c.l.b16 %v54
  %v172 = vunpack.c.h.b16 %v54
  %v173 = vunpack.c.l.b16 %v55
  %v174 = vunpack.c.h.b16 %v55
  %v175 = vunpack.c.l.b16 %v56
  %v176 = vunpack.c.h.b16 %v56
  %v177 = vunpack.c.l.b16 %v57
  %v178 = vunpack.c.h.b16 %v57
  %v179 = vunpack.c.l.b16 %v58
  %v180 = vunpack.c.h.b16 %v58
  %v181 = vunpack.c.l.b16 %v59
  %v182 = vunpack.c.h.b16 %v59
  %v183 = vunpack.c.l.b16 %v60
  %v184 = vunpack.c.h.b16 %v60
  %v185 = vunpack.c.l.b16 %v61
  %v186 = vunpack.c.h.b16 %v61
  %v187 = vunpack.c.l.b16 %v62
  %v188 = vunpack.c.h.b16 %v62
  %v189 = vunpack.c.l.b16 %v63
  %v190 = vunpack.c.h.b16 %v63
  %v191 = vunpack.c.l.b16 %v64
  %v192 = vunpack.c.h.b16 %v64
  %v193 = vunpack.c.l.b16 %v65
  %v194 = vunpack.c.h.b16 %v65
  %v195 = vunpack.c.l.b16 %v66
  %v196 = vunpack.c.h.b16 %v66
  %v197 = vunpack.c.l.b16 %v67
  %v198 = vunpack.c.h.b16 %v67
  %v199 = vunpack.c.l.b16 %v68
  %v200 = vunpack.c.h.b16 %v68
  %v201 = vunpack.c.l.b16 %v69
  %v202 = vunpack.c.h.b16 %v69
  %v203 = vunpack.c.l.b16 %v70
  %v204 = vunpack.c.h.b16 %v70
  %v205 = vunpack.c.l.b16 %v71
  %v206 = vunpack.c.h.b16 %v71
  %v207 = vunpack.c.l.b16 %v72
  %v208 = vunpack.c.h.b16 %v72
  %v209 = vunpack.c.l.b16 %v73
  %v210 = vunpack.c.h.b16 %v73
  %v211 = vunpack.c.l.b16 %v74
  %v212 = vunpack.c.h.b16 %v74
  %v213 = vunpack.c.l.b16 %v75
  %v214 = vunpack.c.h.b16 %v75
  %v215 = vpack.c.b16 %v155, %v151
  %v216 = vpack.c.b16 %v156, %v152
  %v217 = vpack.c.b16 %v157, %v153
  %v218 = vpack.c.b16 %v158, %v154
  %v219 = vpack.c.b16 %v163, %v159
  %v220 = vpack.c.b16 %v164, %v160
  %v221 = vpack.c.b16 %v165, %v161
  %v222 = vpack.c.b16 %v166, %v162
  %v223 = vpack.c.b16 %v171, %v167
  %v224 = vpack.c.b16 %v172, %v168
  %v225 = vpack.c.b16 %v173, %v169
  %v226 = vpack.c.b16 %v174, %v170
  %v227 = vpack.c.b16 %v179, %v175
  %v228 = vpack.c.b16 %v180, %v176
  %v229 = vpack.c.b16 %v181, %v177
  %v230 = vpack.c.b16 %v182, %v178
  %v231 = vpack.c.b16 %v187, %v183
  %v232 = vpack.c.b16 %v188, %v184
  %v233 = vpack.c.b16 %v189, %v185
  %v234 = vpack.c.b16 %v190, %v186
  %v235 = vpack.c.b16 %v195, %v191
  %v236 = vpack.c.b16 %v196, %v192
  %v237 = vpack.c.b16 %v197, %v193
  %v238 = vpack.c.b16 %v198, %v194
  %v239 = vpack.c.b16 %v203, %v199
  %v240 = vpack.c.b16 %v204, %v200
  %v241 = vpack.c.b16 %v205, %v201
  %v242 = vpack.c.b16 %v206, %v202
  %v243 = vpack.c.b16 %v211, %v207
  %v244 = vpack.c.b16 %v212, %v208
  %v245 = vpack.c.b16 %v213, %v209
  %v246 = vpack.c.b16 %v214, %v210
  %279 = vmatpush.bf16.msra.mxu0 %v243
  %280 = vmatpush.bf16.msra.mxu0 %v239
  %281 = vmatpush.bf16.msra.mxu0 %v235
  %282 = vmatpush.bf16.msra.mxu0 %v231
  %283 = vmatpush.bf16.msra.mxu0 %v227
  %284 = vmatpush.bf16.msra.mxu0 %v223
  %285 = vmatpush.bf16.msra.mxu0 %v219
  %286 = vmatpush.bf16.msra.mxu0 %v215
  %287 = vmatmul.bf16.gmra.mxu0 %v118
  %v288 = vpop.f32.mrf.mxu0
  %v289 = vadd.f32 0.0, %v288
  %v290 = vpop.f32.mrf.mxu0
  %291 = vdwg.mxu0
  %292 = vmatpush.bf16.msra.mxu0 %v244
  %293 = vmatpush.bf16.msra.mxu0 %v240
  %294 = vmatpush.bf16.msra.mxu0 %v236
  %295 = vmatpush.bf16.msra.mxu0 %v232
  %296 = vmatpush.bf16.msra.mxu0 %v228
  %297 = vmatpush.bf16.msra.mxu0 %v224
  %298 = vmatpush.bf16.msra.mxu0 %v220
  %299 = vmatpush.bf16.msra.mxu0 %v216
  %300 = vmatmul.bf16.gmra.mxu0 %v118
  %v301 = vpop.f32.mrf.mxu0
  %v302 = vadd.f32 0.0, %v301
  %v303 = vpop.f32.mrf.mxu0
  %304 = vdwg.mxu0
  %305 = vmatpush.bf16.msra.mxu0 %v245
  %306 = vmatpush.bf16.msra.mxu0 %v241
  %307 = vmatpush.bf16.msra.mxu0 %v237
  %308 = vmatpush.bf16.msra.mxu0 %v233
  %309 = vmatpush.bf16.msra.mxu0 %v229
  %310 = vmatpush.bf16.msra.mxu0 %v225
  %311 = vmatpush.bf16.msra.mxu0 %v221
  %312 = vmatpush.bf16.msra.mxu0 %v217
  %313 = vmatmul.bf16.gmra.mxu0 %v118
  %v314 = vpop.f32.mrf.mxu0
  %v315 = vadd.f32 0.0, %v314
  %v316 = vpop.f32.mrf.mxu0
  %317 = vdwg.mxu0
  %318 = vmatpush.bf16.msra.mxu0 %v246
  %319 = vmatpush.bf16.msra.mxu0 %v242
  %320 = vmatpush.bf16.msra.mxu0 %v238
  %321 = vmatpush.bf16.msra.mxu0 %v234
  %322 = vmatpush.bf16.msra.mxu0 %v230
  %323 = vmatpush.bf16.msra.mxu0 %v226
  %324 = vmatpush.bf16.msra.mxu0 %v222
  %325 = vmatpush.bf16.msra.mxu0 %v218
  %326 = vmatmul.bf16.gmra.mxu0 %v118
  %v327 = vpop.f32.mrf.mxu0
  %v328 = vadd.f32 0.0, %v327
  %v329 = vpop.f32.mrf.mxu0
  %330 = vdwg.mxu0
  %v331 = vadd.f32 %v114, %v289
  %v332 = vadd.f32 %v115, %v302
  %v333 = vadd.f32 %v116, %v315
  %v334 = vadd.f32 %v117, %v328
  %v335 = vxor.u32 %v331, 2147483648
  %v336 = vxor.u32 %v332, 2147483648
  %v337 = vxor.u32 %v333, 2147483648
  %v338 = vmul.f32 %v335, 1.442695
  %v339 = vpow.pop %v338
  %v340 = vmul.f32 %v336, 1.442695
  %v341 = vpow.pop %v340
  %v342 = vmul.f32 %v337, 1.442695
  %v343 = vpow.pop %v342
  %v344 = vadd.f32 %v339, 1.0
  %v345 = vadd.f32 %v341, 1.0
  %v346 = vadd.f32 %v343, 1.0
  %v347 = vrcp.pop %v344
  %v348 = vmul.f32 %v344, %v347
  %v349 = vsub.f32 1.0, %v348
  %v350 = vmul.f32 %v347, %v349
  %v351 = vadd.f32 %v347, %v350
  %vm352 = vweird.f32 %v344
  %vm353 = vweird.f32 %v347
  %vm354 = vmor %vm352, %vm353
  %v355 = vsel %vm354, %v347, %v351
  %v356 = vand.u32 2147483647, %v344
  %vm357 = vcmp.eq.f32.partialorder %v356, 8.507059e+37
  %v358 = vand.u32 %v344, 2147483648
  %v359 = vor.u32 1.1754944e-38, %v358
  %v360 = vsel %vm357, %v359, %v355
  %v361 = vmul.f32 1.0, %v360
  %v362 = vrcp.pop %v345
  %v363 = vmul.f32 %v345, %v362
  %v364 = vsub.f32 1.0, %v363
  %v365 = vmul.f32 %v362, %v364
  %v366 = vadd.f32 %v362, %v365
  %vm367 = vweird.f32 %v345
  %vm368 = vweird.f32 %v362
  %vm369 = vmor %vm367, %vm368
  %v370 = vsel %vm369, %v362, %v366
  %v371 = vand.u32 2147483647, %v345
  %vm372 = vcmp.eq.f32.partialorder %v371, 8.507059e+37
  %v373 = vand.u32 %v345, 2147483648
  %v374 = vor.u32 1.1754944e-38, %v373
  %v375 = vsel %vm372, %v374, %v370
  %v376 = vmul.f32 1.0, %v375
  %v377 = vrcp.pop %v346
  %v378 = vmul.f32 %v346, %v377
  %v379 = vsub.f32 1.0, %v378
  %v380 = vmul.f32 %v377, %v379
  %v381 = vadd.f32 %v377, %v380
  %vm382 = vweird.f32 %v346
  %vm383 = vweird.f32 %v377
  %vm384 = vmor %vm382, %vm383
  %v385 = vsel %vm384, %v377, %v381
  %v386 = vand.u32 2147483647, %v346
  %vm387 = vcmp.eq.f32.partialorder %v386, 8.507059e+37
  %v388 = vand.u32 %v346, 2147483648
  %v389 = vor.u32 1.1754944e-38, %v388
  %v390 = vsel %vm387, %v389, %v385
  %v391 = vmul.f32 1.0, %v390
  %v392 = vtanh.pop %v334
  %v393 = vmul.f32 %v376, %v109
  %v394 = vmul.f32 %v361, %v392
  %v395 = vadd.f32 %v393, %v394
  %v396 = vtanh.pop %v395
  %v397 = vmul.f32 %v391, %v396
  %v398 = vld [vmem:[%s1] sm:$0xff]
  %v399 = vld [vmem:[%s1 + $0x8] sm:$0xff]
  %v400 = vunpack.c.l.bf16 %v398
  %v401 = vunpack.c.h.bf16 %v398
  %v402 = vunpack.c.l.bf16 %v399
  %v403 = vunpack.c.h.bf16 %v399
  %v404 = vpack.c.bf16 %v110, %v110
  %v437 = vunpack.c.l.b16 %v76
  %v438 = vunpack.c.h.b16 %v76
  %v439 = vunpack.c.l.b16 %v77
  %v440 = vunpack.c.h.b16 %v77
  %v441 = vunpack.c.l.b16 %v78
  %v442 = vunpack.c.h.b16 %v78
  %v443 = vunpack.c.l.b16 %v79
  %v444 = vunpack.c.h.b16 %v79
  %v445 = vunpack.c.l.b16 %v80
  %v446 = vunpack.c.h.b16 %v80
  %v447 = vunpack.c.l.b16 %v81
  %v448 = vunpack.c.h.b16 %v81
  %v449 = vunpack.c.l.b16 %v82
  %v450 = vunpack.c.h.b16 %v82
  %v451 = vunpack.c.l.b16 %v83
  %v452 = vunpack.c.h.b16 %v83
  %v453 = vunpack.c.l.b16 %v84
  %v454 = vunpack.c.h.b16 %v84
  %v455 = vunpack.c.l.b16 %v85
  %v456 = vunpack.c.h.b16 %v85
  %v457 = vunpack.c.l.b16 %v86
  %v458 = vunpack.c.h.b16 %v86
  %v459 = vunpack.c.l.b16 %v87
  %v460 = vunpack.c.h.b16 %v87
  %v461 = vunpack.c.l.b16 %v88
  %v462 = vunpack.c.h.b16 %v88
  %v463 = vunpack.c.l.b16 %v89
  %v464 = vunpack.c.h.b16 %v89
  %v465 = vunpack.c.l.b16 %v90
  %v466 = vunpack.c.h.b16 %v90
  %v467 = vunpack.c.l.b16 %v91
  %v468 = vunpack.c.h.b16 %v91
  %v469 = vunpack.c.l.b16 %v92
  %v470 = vunpack.c.h.b16 %v92
  %v471 = vunpack.c.l.b16 %v93
  %v472 = vunpack.c.h.b16 %v93
  %v473 = vunpack.c.l.b16 %v94
  %v474 = vunpack.c.h.b16 %v94
  %v475 = vunpack.c.l.b16 %v95
  %v476 = vunpack.c.h.b16 %v95
  %v477 = vunpack.c.l.b16 %v96
  %v478 = vunpack.c.h.b16 %v96
  %v479 = vunpack.c.l.b16 %v97
  %v480 = vunpack.c.h.b16 %v97
  %v481 = vunpack.c.l.b16 %v98
  %v482 = vunpack.c.h.b16 %v98
  %v483 = vunpack.c.l.b16 %v99
  %v484 = vunpack.c.h.b16 %v99
  %v485 = vunpack.c.l.b16 %v100
  %v486 = vunpack.c.h.b16 %v100
  %v487 = vunpack.c.l.b16 %v101
  %v488 = vunpack.c.h.b16 %v101
  %v489 = vunpack.c.l.b16 %v102
  %v490 = vunpack.c.h.b16 %v102
  %v491 = vunpack.c.l.b16 %v103
  %v492 = vunpack.c.h.b16 %v103
  %v493 = vunpack.c.l.b16 %v104
  %v494 = vunpack.c.h.b16 %v104
  %v495 = vunpack.c.l.b16 %v105
  %v496 = vunpack.c.h.b16 %v105
  %v497 = vunpack.c.l.b16 %v106
  %v498 = vunpack.c.h.b16 %v106
  %v499 = vunpack.c.l.b16 %v107
  %v500 = vunpack.c.h.b16 %v107
  %v501 = vpack.c.b16 %v441, %v437
  %v502 = vpack.c.b16 %v442, %v438
  %v503 = vpack.c.b16 %v443, %v439
  %v504 = vpack.c.b16 %v444, %v440
  %v505 = vpack.c.b16 %v449, %v445
  %v506 = vpack.c.b16 %v450, %v446
  %v507 = vpack.c.b16 %v451, %v447
  %v508 = vpack.c.b16 %v452, %v448
  %v509 = vpack.c.b16 %v457, %v453
  %v510 = vpack.c.b16 %v458, %v454
  %v511 = vpack.c.b16 %v459, %v455
  %v512 = vpack.c.b16 %v460, %v456
  %v513 = vpack.c.b16 %v465, %v461
  %v514 = vpack.c.b16 %v466, %v462
  %v515 = vpack.c.b16 %v467, %v463
  %v516 = vpack.c.b16 %v468, %v464
  %v517 = vpack.c.b16 %v473, %v469
  %v518 = vpack.c.b16 %v474, %v470
  %v519 = vpack.c.b16 %v475, %v471
  %v520 = vpack.c.b16 %v476, %v472
  %v521 = vpack.c.b16 %v481, %v477
  %v522 = vpack.c.b16 %v482, %v478
  %v523 = vpack.c.b16 %v483, %v479
  %v524 = vpack.c.b16 %v484, %v480
  %v525 = vpack.c.b16 %v489, %v485
  %v526 = vpack.c.b16 %v490, %v486
  %v527 = vpack.c.b16 %v491, %v487
  %v528 = vpack.c.b16 %v492, %v488
  %v529 = vpack.c.b16 %v497, %v493
  %v530 = vpack.c.b16 %v498, %v494
  %v531 = vpack.c.b16 %v499, %v495
  %v532 = vpack.c.b16 %v500, %v496
  %565 = vmatpush.bf16.msra.mxu0 %v529
  %566 = vmatpush.bf16.msra.mxu0 %v525
  %567 = vmatpush.bf16.msra.mxu0 %v521
  %568 = vmatpush.bf16.msra.mxu0 %v517
  %569 = vmatpush.bf16.msra.mxu0 %v513
  %570 = vmatpush.bf16.msra.mxu0 %v509
  %571 = vmatpush.bf16.msra.mxu0 %v505
  %572 = vmatpush.bf16.msra.mxu0 %v501
  %573 = vmatmul.bf16.gmra.mxu0 %v404
  %v574 = vpop.f32.mrf.mxu0
  %v575 = vadd.f32 0.0, %v574
  %v576 = vpop.f32.mrf.mxu0
  %577 = vdwg.mxu0
  %578 = vmatpush.bf16.msra.mxu0 %v530
  %579 = vmatpush.bf16.msra.mxu0 %v526
  %580 = vmatpush.bf16.msra.mxu0 %v522
  %581 = vmatpush.bf16.msra.mxu0 %v518
  %582 = vmatpush.bf16.msra.mxu0 %v514
  %583 = vmatpush.bf16.msra.mxu0 %v510
  %584 = vmatpush.bf16.msra.mxu0 %v506
  %585 = vmatpush.bf16.msra.mxu0 %v502
  %586 = vmatmul.bf16.gmra.mxu0 %v404
  %v587 = vpop.f32.mrf.mxu0
  %v588 = vadd.f32 0.0, %v587
  %v589 = vpop.f32.mrf.mxu0
  %590 = vdwg.mxu0
  %591 = vmatpush.bf16.msra.mxu0 %v531
  %592 = vmatpush.bf16.msra.mxu0 %v527
  %593 = vmatpush.bf16.msra.mxu0 %v523
  %594 = vmatpush.bf16.msra.mxu0 %v519
  %595 = vmatpush.bf16.msra.mxu0 %v515
  %596 = vmatpush.bf16.msra.mxu0 %v511
  %597 = vmatpush.bf16.msra.mxu0 %v507
  %598 = vmatpush.bf16.msra.mxu0 %v503
  %599 = vmatmul.bf16.gmra.mxu0 %v404
  %v600 = vpop.f32.mrf.mxu0
  %v601 = vadd.f32 0.0, %v600
  %v602 = vpop.f32.mrf.mxu0
  %603 = vdwg.mxu0
  %604 = vmatpush.bf16.msra.mxu0 %v532
  %605 = vmatpush.bf16.msra.mxu0 %v528
  %606 = vmatpush.bf16.msra.mxu0 %v524
  %607 = vmatpush.bf16.msra.mxu0 %v520
  %608 = vmatpush.bf16.msra.mxu0 %v516
  %609 = vmatpush.bf16.msra.mxu0 %v512
  %610 = vmatpush.bf16.msra.mxu0 %v508
  %611 = vmatpush.bf16.msra.mxu0 %v504
  %612 = vmatmul.bf16.gmra.mxu0 %v404
  %v613 = vpop.f32.mrf.mxu0
  %v614 = vadd.f32 0.0, %v613
  %v615 = vpop.f32.mrf.mxu0
  %616 = vdwg.mxu0
  %v617 = vadd.f32 %v400, %v575
  %v618 = vadd.f32 %v401, %v588
  %v619 = vadd.f32 %v402, %v601
  %v620 = vadd.f32 %v403, %v614
  %v621 = vxor.u32 %v617, 2147483648
  %v622 = vxor.u32 %v618, 2147483648
  %v623 = vxor.u32 %v619, 2147483648
  %v624 = vmul.f32 %v621, 1.442695
  %v625 = vpow.pop %v624
  %v626 = vmul.f32 %v622, 1.442695
  %v627 = vpow.pop %v626
  %v628 = vmul.f32 %v623, 1.442695
  %v629 = vpow.pop %v628
  %v630 = vadd.f32 %v625, 1.0
  %v631 = vadd.f32 %v627, 1.0
  %v632 = vadd.f32 %v629, 1.0
  %v633 = vrcp.pop %v630
  %v634 = vmul.f32 %v630, %v633
  %v635 = vsub.f32 1.0, %v634
  %v636 = vmul.f32 %v633, %v635
  %v637 = vadd.f32 %v633, %v636
  %vm638 = vweird.f32 %v630
  %vm639 = vweird.f32 %v633
  %vm640 = vmor %vm638, %vm639
  %v641 = vsel %vm640, %v633, %v637
  %v642 = vand.u32 2147483647, %v630
  %vm643 = vcmp.eq.f32.partialorder %v642, 8.507059e+37
  %v644 = vand.u32 %v630, 2147483648
  %v645 = vor.u32 1.1754944e-38, %v644
  %v646 = vsel %vm643, %v645, %v641
  %v647 = vmul.f32 1.0, %v646
  %v648 = vrcp.pop %v631
  %v649 = vmul.f32 %v631, %v648
  %v650 = vsub.f32 1.0, %v649
  %v651 = vmul.f32 %v648, %v650
  %v652 = vadd.f32 %v648, %v651
  %vm653 = vweird.f32 %v631
  %vm654 = vweird.f32 %v648
  %vm655 = vmor %vm653, %vm654
  %v656 = vsel %vm655, %v648, %v652
  %v657 = vand.u32 2147483647, %v631
  %vm658 = vcmp.eq.f32.partialorder %v657, 8.507059e+37
  %v659 = vand.u32 %v631, 2147483648
  %v660 = vor.u32 1.1754944e-38, %v659
  %v661 = vsel %vm658, %v660, %v656
  %v662 = vmul.f32 1.0, %v661
  %v663 = vrcp.pop %v632
  %v664 = vmul.f32 %v632, %v663
  %v665 = vsub.f32 1.0, %v664
  %v666 = vmul.f32 %v663, %v665
  %v667 = vadd.f32 %v663, %v666
  %vm668 = vweird.f32 %v632
  %vm669 = vweird.f32 %v663
  %vm670 = vmor %vm668, %vm669
  %v671 = vsel %vm670, %v663, %v667
  %v672 = vand.u32 2147483647, %v632
  %vm673 = vcmp.eq.f32.partialorder %v672, 8.507059e+37
  %v674 = vand.u32 %v632, 2147483648
  %v675 = vor.u32 1.1754944e-38, %v674
  %v676 = vsel %vm673, %v675, %v671
  %v677 = vmul.f32 1.0, %v676
  %v678 = vtanh.pop %v620
  %v679 = vmul.f32 %v662, %v111
  %v680 = vmul.f32 %v647, %v678
  %v681 = vadd.f32 %v679, %v680
  %v682 = vtanh.pop %v681
  %v683 = vmul.f32 %v677, %v682
  %s684 = scalar_lea.vmem %s0, 16
  %v685 = vld [vmem:[%s684] sm:$0xff]
  %v686 = vld [vmem:[%s684 + $0x8] sm:$0xff]
  %v687 = vunpack.c.l.bf16 %v685
  %v688 = vunpack.c.h.bf16 %v685
  %v689 = vunpack.c.l.bf16 %v686
  %v690 = vunpack.c.h.bf16 %v686
  %v691 = vpack.c.bf16 %v397, %v397
  %692 = vmatpush.bf16.msra.mxu0 %v243
  %693 = vmatpush.bf16.msra.mxu0 %v239
  %694 = vmatpush.bf16.msra.mxu0 %v235
  %695 = vmatpush.bf16.msra.mxu0 %v231
  %696 = vmatpush.bf16.msra.mxu0 %v227
  %697 = vmatpush.bf16.msra.mxu0 %v223
  %698 = vmatpush.bf16.msra.mxu0 %v219
  %699 = vmatpush.bf16.msra.mxu0 %v215
  %700 = vmatmul.bf16.gmra.mxu0 %v691
  %v701 = vpop.f32.mrf.mxu0
  %v702 = vadd.f32 0.0, %v701
  %v703 = vpop.f32.mrf.mxu0
  %704 = vdwg.mxu0
  %705 = vmatpush.bf16.msra.mxu0 %v244
  %706 = vmatpush.bf16.msra.mxu0 %v240
  %707 = vmatpush.bf16.msra.mxu0 %v236
  %708 = vmatpush.bf16.msra.mxu0 %v232
  %709 = vmatpush.bf16.msra.mxu0 %v228
  %710 = vmatpush.bf16.msra.mxu0 %v224
  %711 = vmatpush.bf16.msra.mxu0 %v220
  %712 = vmatpush.bf16.msra.mxu0 %v216
  %713 = vmatmul.bf16.gmra.mxu0 %v691
  %v714 = vpop.f32.mrf.mxu0
  %v715 = vadd.f32 0.0, %v714
  %v716 = vpop.f32.mrf.mxu0
  %717 = vdwg.mxu0
  %718 = vmatpush.bf16.msra.mxu0 %v245
  %719 = vmatpush.bf16.msra.mxu0 %v241
  %720 = vmatpush.bf16.msra.mxu0 %v237
  %721 = vmatpush.bf16.msra.mxu0 %v233
  %722 = vmatpush.bf16.msra.mxu0 %v229
  %723 = vmatpush.bf16.msra.mxu0 %v225
  %724 = vmatpush.bf16.msra.mxu0 %v221
  %725 = vmatpush.bf16.msra.mxu0 %v217
  %726 = vmatmul.bf16.gmra.mxu0 %v691
  %v727 = vpop.f32.mrf.mxu0
  %v728 = vadd.f32 0.0, %v727
  %v729 = vpop.f32.mrf.mxu0
  %730 = vdwg.mxu0
  %731 = vmatpush.bf16.msra.mxu0 %v246
  %732 = vmatpush.bf16.msra.mxu0 %v242
  %733 = vmatpush.bf16.msra.mxu0 %v238
  %734 = vmatpush.bf16.msra.mxu0 %v234
  %735 = vmatpush.bf16.msra.mxu0 %v230
  %736 = vmatpush.bf16.msra.mxu0 %v226
  %737 = vmatpush.bf16.msra.mxu0 %v222
  %738 = vmatpush.bf16.msra.mxu0 %v218
  %739 = vmatmul.bf16.gmra.mxu0 %v691
  %v740 = vpop.f32.mrf.mxu0
  %v741 = vadd.f32 0.0, %v740
  %v742 = vpop.f32.mrf.mxu0
  %743 = vdwg.mxu0
  %v744 = vadd.f32 %v687, %v702
  %v745 = vadd.f32 %v688, %v715
  %v746 = vadd.f32 %v689, %v728
  %v747 = vadd.f32 %v690, %v741
  %v748 = vxor.u32 %v744, 2147483648
  %v749 = vxor.u32 %v745, 2147483648
  %v750 = vxor.u32 %v746, 2147483648
  %v751 = vmul.f32 %v748, 1.442695
  %v752 = vpow.pop %v751
  %v753 = vmul.f32 %v749, 1.442695
  %v754 = vpow.pop %v753
  %v755 = vmul.f32 %v750, 1.442695
  %v756 = vpow.pop %v755
  %v757 = vadd.f32 %v752, 1.0
  %v758 = vadd.f32 %v754, 1.0
  %v759 = vadd.f32 %v756, 1.0
  %v760 = vrcp.pop %v757
  %v761 = vmul.f32 %v757, %v760
  %v762 = vsub.f32 1.0, %v761
  %v763 = vmul.f32 %v760, %v762
  %v764 = vadd.f32 %v760, %v763
  %vm765 = vweird.f32 %v757
  %vm766 = vweird.f32 %v760
  %vm767 = vmor %vm765, %vm766
  %v768 = vsel %vm767, %v760, %v764
  %v769 = vand.u32 2147483647, %v757
  %vm770 = vcmp.eq.f32.partialorder %v769, 8.507059e+37
  %v771 = vand.u32 %v757, 2147483648
  %v772 = vor.u32 1.1754944e-38, %v771
  %v773 = vsel %vm770, %v772, %v768
  %v774 = vmul.f32 1.0, %v773
  %v775 = vrcp.pop %v758
  %v776 = vmul.f32 %v758, %v775
  %v777 = vsub.f32 1.0, %v776
  %v778 = vmul.f32 %v775, %v777
  %v779 = vadd.f32 %v775, %v778
  %vm780 = vweird.f32 %v758
  %vm781 = vweird.f32 %v775
  %vm782 = vmor %vm780, %vm781
  %v783 = vsel %vm782, %v775, %v779
  %v784 = vand.u32 2147483647, %v758
  %vm785 = vcmp.eq.f32.partialorder %v784, 8.507059e+37
  %v786 = vand.u32 %v758, 2147483648
  %v787 = vor.u32 1.1754944e-38, %v786
  %v788 = vsel %vm785, %v787, %v783
  %v789 = vmul.f32 1.0, %v788
  %v790 = vrcp.pop %v759
  %v791 = vmul.f32 %v759, %v790
  %v792 = vsub.f32 1.0, %v791
  %v793 = vmul.f32 %v790, %v792
  %v794 = vadd.f32 %v790, %v793
  %vm795 = vweird.f32 %v759
  %vm796 = vweird.f32 %v790
  %vm797 = vmor %vm795, %vm796
  %v798 = vsel %vm797, %v790, %v794
  %v799 = vand.u32 2147483647, %v759
  %vm800 = vcmp.eq.f32.partialorder %v799, 8.507059e+37
  %v801 = vand.u32 %v759, 2147483648
  %v802 = vor.u32 1.1754944e-38, %v801
  %v803 = vsel %vm800, %v802, %v798
  %v804 = vmul.f32 1.0, %v803
  %v805 = vtanh.pop %v747
  %v806 = vmul.f32 %v789, %v395
  %v807 = vmul.f32 %v774, %v805
  %v808 = vadd.f32 %v806, %v807
  %v809 = vtanh.pop %v808
  %v810 = vmul.f32 %v804, %v809
  %s811 = scalar_lea.vmem %s1, 16
  %v812 = vld [vmem:[%s811] sm:$0xff]
  %v813 = vld [vmem:[%s811 + $0x8] sm:$0xff]
  %v814 = vunpack.c.l.bf16 %v812
  %v815 = vunpack.c.h.bf16 %v812
  %v816 = vunpack.c.l.bf16 %v813
  %v817 = vunpack.c.h.bf16 %v813
  %v818 = vpack.c.bf16 %v683, %v683
  %819 = vmatpush.bf16.msra.mxu0 %v529
  %820 = vmatpush.bf16.msra.mxu0 %v525
  %821 = vmatpush.bf16.msra.mxu0 %v521
  %822 = vmatpush.bf16.msra.mxu0 %v517
  %823 = vmatpush.bf16.msra.mxu0 %v513
  %824 = vmatpush.bf16.msra.mxu0 %v509
  %825 = vmatpush.bf16.msra.mxu0 %v505
  %826 = vmatpush.bf16.msra.mxu0 %v501
  %827 = vmatmul.bf16.gmra.mxu0 %v818
  %v828 = vpop.f32.mrf.mxu0
  %v829 = vadd.f32 0.0, %v828
  %v830 = vpop.f32.mrf.mxu0
  %831 = vdwg.mxu0
  %832 = vmatpush.bf16.msra.mxu0 %v530
  %833 = vmatpush.bf16.msra.mxu0 %v526
  %834 = vmatpush.bf16.msra.mxu0 %v522
  %835 = vmatpush.bf16.msra.mxu0 %v518
  %836 = vmatpush.bf16.msra.mxu0 %v514
  %837 = vmatpush.bf16.msra.mxu0 %v510
  %838 = vmatpush.bf16.msra.mxu0 %v506
  %839 = vmatpush.bf16.msra.mxu0 %v502
  %840 = vmatmul.bf16.gmra.mxu0 %v818
  %v841 = vpop.f32.mrf.mxu0
  %v842 = vadd.f32 0.0, %v841
  %v843 = vpop.f32.mrf.mxu0
  %844 = vdwg.mxu0
  %845 = vmatpush.bf16.msra.mxu0 %v531
  %846 = vmatpush.bf16.msra.mxu0 %v527
  %847 = vmatpush.bf16.msra.mxu0 %v523
  %848 = vmatpush.bf16.msra.mxu0 %v519
  %849 = vmatpush.bf16.msra.mxu0 %v515
  %850 = vmatpush.bf16.msra.mxu0 %v511
  %851 = vmatpush.bf16.msra.mxu0 %v507
  %852 = vmatpush.bf16.msra.mxu0 %v503
  %853 = vmatmul.bf16.gmra.mxu0 %v818
  %v854 = vpop.f32.mrf.mxu0
  %v855 = vadd.f32 0.0, %v854
  %v856 = vpop.f32.mrf.mxu0
  %857 = vdwg.mxu0
  %858 = vmatpush.bf16.msra.mxu0 %v532
  %859 = vmatpush.bf16.msra.mxu0 %v528
  %860 = vmatpush.bf16.msra.mxu0 %v524
  %861 = vmatpush.bf16.msra.mxu0 %v520
  %862 = vmatpush.bf16.msra.mxu0 %v516
  %863 = vmatpush.bf16.msra.mxu0 %v512
  %864 = vmatpush.bf16.msra.mxu0 %v508
  %865 = vmatpush.bf16.msra.mxu0 %v504
  %866 = vmatmul.bf16.gmra.mxu0 %v818
  %v867 = vpop.f32.mrf.mxu0
  %v868 = vadd.f32 0.0, %v867
  %v869 = vpop.f32.mrf.mxu0
  %870 = vdwg.mxu0
  %v871 = vadd.f32 %v814, %v829
  %v872 = vadd.f32 %v815, %v842
  %v873 = vadd.f32 %v816, %v855
  %v874 = vadd.f32 %v817, %v868
  %v875 = vxor.u32 %v871, 2147483648
  %v876 = vxor.u32 %v872, 2147483648
  %v877 = vxor.u32 %v873, 2147483648
  %v878 = vmul.f32 %v875, 1.442695
  %v879 = vpow.pop %v878
  %v880 = vmul.f32 %v876, 1.442695
  %v881 = vpow.pop %v880
  %v882 = vmul.f32 %v877, 1.442695
  %v883 = vpow.pop %v882
  %v884 = vadd.f32 %v879, 1.0
  %v885 = vadd.f32 %v881, 1.0
  %v886 = vadd.f32 %v883, 1.0
  %v887 = vrcp.pop %v884
  %v888 = vmul.f32 %v884, %v887
  %v889 = vsub.f32 1.0, %v888
  %v890 = vmul.f32 %v887, %v889
  %v891 = vadd.f32 %v887, %v890
  %vm892 = vweird.f32 %v884
  %vm893 = vweird.f32 %v887
  %vm894 = vmor %vm892, %vm893
  %v895 = vsel %vm894, %v887, %v891
  %v896 = vand.u32 2147483647, %v884
  %vm897 = vcmp.eq.f32.partialorder %v896, 8.507059e+37
  %v898 = vand.u32 %v884, 2147483648
  %v899 = vor.u32 1.1754944e-38, %v898
  %v900 = vsel %vm897, %v899, %v895
  %v901 = vmul.f32 1.0, %v900
  %v902 = vrcp.pop %v885
  %v903 = vmul.f32 %v885, %v902
  %v904 = vsub.f32 1.0, %v903
  %v905 = vmul.f32 %v902, %v904
  %v906 = vadd.f32 %v902, %v905
  %vm907 = vweird.f32 %v885
  %vm908 = vweird.f32 %v902
  %vm909 = vmor %vm907, %vm908
  %v910 = vsel %vm909, %v902, %v906
  %v911 = vand.u32 2147483647, %v885
  %vm912 = vcmp.eq.f32.partialorder %v911, 8.507059e+37
  %v913 = vand.u32 %v885, 2147483648
  %v914 = vor.u32 1.1754944e-38, %v913
  %v915 = vsel %vm912, %v914, %v910
  %v916 = vmul.f32 1.0, %v915
  %v917 = vrcp.pop %v886
  %v918 = vmul.f32 %v886, %v917
  %v919 = vsub.f32 1.0, %v918
  %v920 = vmul.f32 %v917, %v919
  %v921 = vadd.f32 %v917, %v920
  %vm922 = vweird.f32 %v886
  %vm923 = vweird.f32 %v917
  %vm924 = vmor %vm922, %vm923
  %v925 = vsel %vm924, %v917, %v921
  %v926 = vand.u32 2147483647, %v886
  %vm927 = vcmp.eq.f32.partialorder %v926, 8.507059e+37
  %v928 = vand.u32 %v886, 2147483648
  %v929 = vor.u32 1.1754944e-38, %v928
  %v930 = vsel %vm927, %v929, %v925
  %v931 = vmul.f32 1.0, %v930
  %v932 = vtanh.pop %v874
  %v933 = vmul.f32 %v916, %v681
  %v934 = vmul.f32 %v901, %v932
  %v935 = vadd.f32 %v933, %v934
  %v936 = vtanh.pop %v935
  %v937 = vmul.f32 %v931, %v936
  %s938 = scalar_lea.vmem %s0, 32
  %v939 = vld [vmem:[%s938] sm:$0xff]
  %v940 = vld [vmem:[%s938 + $0x8] sm:$0xff]
  %v941 = vunpack.c.l.bf16 %v939
  %v942 = vunpack.c.h.bf16 %v939
  %v943 = vunpack.c.l.bf16 %v940
  %v944 = vunpack.c.h.bf16 %v940
  %v945 = vpack.c.bf16 %v810, %v810
  %946 = vmatpush.bf16.msra.mxu0 %v243
  %947 = vmatpush.bf16.msra.mxu0 %v239
  %948 = vmatpush.bf16.msra.mxu0 %v235
  %949 = vmatpush.bf16.msra.mxu0 %v231
  %950 = vmatpush.bf16.msra.mxu0 %v227
  %951 = vmatpush.bf16.msra.mxu0 %v223
  %952 = vmatpush.bf16.msra.mxu0 %v219
  %953 = vmatpush.bf16.msra.mxu0 %v215
  %954 = vmatmul.bf16.gmra.mxu0 %v945
  %v955 = vpop.f32.mrf.mxu0
  %v956 = vadd.f32 0.0, %v955
  %v957 = vpop.f32.mrf.mxu0
  %958 = vdwg.mxu0
  %959 = vmatpush.bf16.msra.mxu0 %v244
  %960 = vmatpush.bf16.msra.mxu0 %v240
  %961 = vmatpush.bf16.msra.mxu0 %v236
  %962 = vmatpush.bf16.msra.mxu0 %v232
  %963 = vmatpush.bf16.msra.mxu0 %v228
  %964 = vmatpush.bf16.msra.mxu0 %v224
  %965 = vmatpush.bf16.msra.mxu0 %v220
  %966 = vmatpush.bf16.msra.mxu0 %v216
  %967 = vmatmul.bf16.gmra.mxu0 %v945
  %v968 = vpop.f32.mrf.mxu0
  %v969 = vadd.f32 0.0, %v968
  %v970 = vpop.f32.mrf.mxu0
  %971 = vdwg.mxu0
  %972 = vmatpush.bf16.msra.mxu0 %v245
  %973 = vmatpush.bf16.msra.mxu0 %v241
  %974 = vmatpush.bf16.msra.mxu0 %v237
  %975 = vmatpush.bf16.msra.mxu0 %v233
  %976 = vmatpush.bf16.msra.mxu0 %v229
  %977 = vmatpush.bf16.msra.mxu0 %v225
  %978 = vmatpush.bf16.msra.mxu0 %v221
  %979 = vmatpush.bf16.msra.mxu0 %v217
  %980 = vmatmul.bf16.gmra.mxu0 %v945
  %v981 = vpop.f32.mrf.mxu0
  %v982 = vadd.f32 0.0, %v981
  %v983 = vpop.f32.mrf.mxu0
  %984 = vdwg.mxu0
  %985 = vmatpush.bf16.msra.mxu0 %v246
  %986 = vmatpush.bf16.msra.mxu0 %v242
  %987 = vmatpush.bf16.msra.mxu0 %v238
  %988 = vmatpush.bf16.msra.mxu0 %v234
  %989 = vmatpush.bf16.msra.mxu0 %v230
  %990 = vmatpush.bf16.msra.mxu0 %v226
  %991 = vmatpush.bf16.msra.mxu0 %v222
  %992 = vmatpush.bf16.msra.mxu0 %v218
  %993 = vmatmul.bf16.gmra.mxu0 %v945
  %v994 = vpop.f32.mrf.mxu0
  %v995 = vadd.f32 0.0, %v994
  %v996 = vpop.f32.mrf.mxu0
  %997 = vdwg.mxu0
  %v998 = vadd.f32 %v941, %v956
  %v999 = vadd.f32 %v942, %v969
  %v1000 = vadd.f32 %v943, %v982
  %v1001 = vadd.f32 %v944, %v995
  %v1002 = vxor.u32 %v998, 2147483648
  %v1003 = vxor.u32 %v999, 2147483648
  %v1004 = vxor.u32 %v1000, 2147483648
  %v1005 = vmul.f32 %v1002, 1.442695
  %v1006 = vpow.pop %v1005
  %v1007 = vmul.f32 %v1003, 1.442695
  %v1008 = vpow.pop %v1007
  %v1009 = vmul.f32 %v1004, 1.442695
  %v1010 = vpow.pop %v1009
  %v1011 = vadd.f32 %v1006, 1.0
  %v1012 = vadd.f32 %v1008, 1.0
  %v1013 = vadd.f32 %v1010, 1.0
  %v1014 = vrcp.pop %v1011
  %v1015 = vmul.f32 %v1011, %v1014
  %v1016 = vsub.f32 1.0, %v1015
  %v1017 = vmul.f32 %v1014, %v1016
  %v1018 = vadd.f32 %v1014, %v1017
  %vm1019 = vweird.f32 %v1011
  %vm1020 = vweird.f32 %v1014
  %vm1021 = vmor %vm1019, %vm1020
  %v1022 = vsel %vm1021, %v1014, %v1018
  %v1023 = vand.u32 2147483647, %v1011
  %vm1024 = vcmp.eq.f32.partialorder %v1023, 8.507059e+37
  %v1025 = vand.u32 %v1011, 2147483648
  %v1026 = vor.u32 1.1754944e-38, %v1025
  %v1027 = vsel %vm1024, %v1026, %v1022
  %v1028 = vmul.f32 1.0, %v1027
  %v1029 = vrcp.pop %v1012
  %v1030 = vmul.f32 %v1012, %v1029
  %v1031 = vsub.f32 1.0, %v1030
  %v1032 = vmul.f32 %v1029, %v1031
  %v1033 = vadd.f32 %v1029, %v1032
  %vm1034 = vweird.f32 %v1012
  %vm1035 = vweird.f32 %v1029
  %vm1036 = vmor %vm1034, %vm1035
  %v1037 = vsel %vm1036, %v1029, %v1033
  %v1038 = vand.u32 2147483647, %v1012
  %vm1039 = vcmp.eq.f32.partialorder %v1038, 8.507059e+37
  %v1040 = vand.u32 %v1012, 2147483648
  %v1041 = vor.u32 1.1754944e-38, %v1040
  %v1042 = vsel %vm1039, %v1041, %v1037
  %v1043 = vmul.f32 1.0, %v1042
  %v1044 = vrcp.pop %v1013
  %v1045 = vmul.f32 %v1013, %v1044
  %v1046 = vsub.f32 1.0, %v1045
  %v1047 = vmul.f32 %v1044, %v1046
  %v1048 = vadd.f32 %v1044, %v1047
  %vm1049 = vweird.f32 %v1013
  %vm1050 = vweird.f32 %v1044
  %vm1051 = vmor %vm1049, %vm1050
  %v1052 = vsel %vm1051, %v1044, %v1048
  %v1053 = vand.u32 2147483647, %v1013
  %vm1054 = vcmp.eq.f32.partialorder %v1053, 8.507059e+37
  %v1055 = vand.u32 %v1013, 2147483648
  %v1056 = vor.u32 1.1754944e-38, %v1055
  %v1057 = vsel %vm1054, %v1056, %v1052
  %v1058 = vmul.f32 1.0, %v1057
  %v1059 = vtanh.pop %v1001
  %v1060 = vmul.f32 %v1043, %v808
  %v1061 = vmul.f32 %v1028, %v1059
  %v1062 = vadd.f32 %v1060, %v1061
  %v1063 = vtanh.pop %v1062
  %v1064 = vmul.f32 %v1058, %v1063
  %s1065 = scalar_lea.vmem %s1, 32
  %v1066 = vld [vmem:[%s1065] sm:$0xff]
  %v1067 = vld [vmem:[%s1065 + $0x8] sm:$0xff]
  %v1068 = vunpack.c.l.bf16 %v1066
  %v1069 = vunpack.c.h.bf16 %v1066
  %v1070 = vunpack.c.l.bf16 %v1067
  %v1071 = vunpack.c.h.bf16 %v1067
  %v1072 = vpack.c.bf16 %v937, %v937
  %1073 = vmatpush.bf16.msra.mxu0 %v529
  %1074 = vmatpush.bf16.msra.mxu0 %v525
  %1075 = vmatpush.bf16.msra.mxu0 %v521
  %1076 = vmatpush.bf16.msra.mxu0 %v517
  %1077 = vmatpush.bf16.msra.mxu0 %v513
  %1078 = vmatpush.bf16.msra.mxu0 %v509
  %1079 = vmatpush.bf16.msra.mxu0 %v505
  %1080 = vmatpush.bf16.msra.mxu0 %v501
  %1081 = vmatmul.bf16.gmra.mxu0 %v1072
  %v1082 = vpop.f32.mrf.mxu0
  %v1083 = vadd.f32 0.0, %v1082
  %v1084 = vpop.f32.mrf.mxu0
  %1085 = vdwg.mxu0
  %1086 = vmatpush.bf16.msra.mxu0 %v530
  %1087 = vmatpush.bf16.msra.mxu0 %v526
  %1088 = vmatpush.bf16.msra.mxu0 %v522
  %1089 = vmatpush.bf16.msra.mxu0 %v518
  %1090 = vmatpush.bf16.msra.mxu0 %v514
  %1091 = vmatpush.bf16.msra.mxu0 %v510
  %1092 = vmatpush.bf16.msra.mxu0 %v506
  %1093 = vmatpush.bf16.msra.mxu0 %v502
  %1094 = vmatmul.bf16.gmra.mxu0 %v1072
  %v1095 = vpop.f32.mrf.mxu0
  %v1096 = vadd.f32 0.0, %v1095
  %v1097 = vpop.f32.mrf.mxu0
  %1098 = vdwg.mxu0
  %1099 = vmatpush.bf16.msra.mxu0 %v531
  %1100 = vmatpush.bf16.msra.mxu0 %v527
  %1101 = vmatpush.bf16.msra.mxu0 %v523
  %1102 = vmatpush.bf16.msra.mxu0 %v519
  %1103 = vmatpush.bf16.msra.mxu0 %v515
  %1104 = vmatpush.bf16.msra.mxu0 %v511
  %1105 = vmatpush.bf16.msra.mxu0 %v507
  %1106 = vmatpush.bf16.msra.mxu0 %v503
  %1107 = vmatmul.bf16.gmra.mxu0 %v1072
  %v1108 = vpop.f32.mrf.mxu0
  %v1109 = vadd.f32 0.0, %v1108
  %v1110 = vpop.f32.mrf.mxu0
  %1111 = vdwg.mxu0
  %1112 = vmatpush.bf16.msra.mxu0 %v532
  %1113 = vmatpush.bf16.msra.mxu0 %v528
  %1114 = vmatpush.bf16.msra.mxu0 %v524
  %1115 = vmatpush.bf16.msra.mxu0 %v520
  %1116 = vmatpush.bf16.msra.mxu0 %v516
  %1117 = vmatpush.bf16.msra.mxu0 %v512
  %1118 = vmatpush.bf16.msra.mxu0 %v508
  %1119 = vmatpush.bf16.msra.mxu0 %v504
  %1120 = vmatmul.bf16.gmra.mxu0 %v1072
  %v1121 = vpop.f32.mrf.mxu0
  %v1122 = vadd.f32 0.0, %v1121
  %v1123 = vpop.f32.mrf.mxu0
  %1124 = vdwg.mxu0
  %v1125 = vadd.f32 %v1068, %v1083
  %v1126 = vadd.f32 %v1069, %v1096
  %v1127 = vadd.f32 %v1070, %v1109
  %v1128 = vadd.f32 %v1071, %v1122
  %v1129 = vxor.u32 %v1125, 2147483648
  %v1130 = vxor.u32 %v1126, 2147483648
  %v1131 = vxor.u32 %v1127, 2147483648
  %v1132 = vmul.f32 %v1129, 1.442695
  %v1133 = vpow.pop %v1132
  %v1134 = vmul.f32 %v1130, 1.442695
  %v1135 = vpow.pop %v1134
  %v1136 = vmul.f32 %v1131, 1.442695
  %v1137 = vpow.pop %v1136
  %v1138 = vadd.f32 %v1133, 1.0
  %v1139 = vadd.f32 %v1135, 1.0
  %v1140 = vadd.f32 %v1137, 1.0
  %v1141 = vrcp.pop %v1138
  %v1142 = vmul.f32 %v1138, %v1141
  %v1143 = vsub.f32 1.0, %v1142
  %v1144 = vmul.f32 %v1141, %v1143
  %v1145 = vadd.f32 %v1141, %v1144
  %vm1146 = vweird.f32 %v1138
  %vm1147 = vweird.f32 %v1141
  %vm1148 = vmor %vm1146, %vm1147
  %v1149 = vsel %vm1148, %v1141, %v1145
  %v1150 = vand.u32 2147483647, %v1138
  %vm1151 = vcmp.eq.f32.partialorder %v1150, 8.507059e+37
  %v1152 = vand.u32 %v1138, 2147483648
  %v1153 = vor.u32 1.1754944e-38, %v1152
  %v1154 = vsel %vm1151, %v1153, %v1149
  %v1155 = vmul.f32 1.0, %v1154
  %v1156 = vrcp.pop %v1139
  %v1157 = vmul.f32 %v1139, %v1156
  %v1158 = vsub.f32 1.0, %v1157
  %v1159 = vmul.f32 %v1156, %v1158
  %v1160 = vadd.f32 %v1156, %v1159
  %vm1161 = vweird.f32 %v1139
  %vm1162 = vweird.f32 %v1156
  %vm1163 = vmor %vm1161, %vm1162
  %v1164 = vsel %vm1163, %v1156, %v1160
  %v1165 = vand.u32 2147483647, %v1139
  %vm1166 = vcmp.eq.f32.partialorder %v1165, 8.507059e+37
  %v1167 = vand.u32 %v1139, 2147483648
  %v1168 = vor.u32 1.1754944e-38, %v1167
  %v1169 = vsel %vm1166, %v1168, %v1164
  %v1170 = vmul.f32 1.0, %v1169
  %v1171 = vrcp.pop %v1140
  %v1172 = vmul.f32 %v1140, %v1171
  %v1173 = vsub.f32 1.0, %v1172
  %v1174 = vmul.f32 %v1171, %v1173
  %v1175 = vadd.f32 %v1171, %v1174
  %vm1176 = vweird.f32 %v1140
  %vm1177 = vweird.f32 %v1171
  %vm1178 = vmor %vm1176, %vm1177
  %v1179 = vsel %vm1178, %v1171, %v1175
  %v1180 = vand.u32 2147483647, %v1140
  %vm1181 = vcmp.eq.f32.partialorder %v1180, 8.507059e+37
  %v1182 = vand.u32 %v1140, 2147483648
  %v1183 = vor.u32 1.1754944e-38, %v1182
  %v1184 = vsel %vm1181, %v1183, %v1179
  %v1185 = vmul.f32 1.0, %v1184
  %v1186 = vtanh.pop %v1128
  %v1187 = vmul.f32 %v1170, %v935
  %v1188 = vmul.f32 %v1155, %v1186
  %v1189 = vadd.f32 %v1187, %v1188
  %v1190 = vtanh.pop %v1189
  %v1191 = vmul.f32 %v1185, %v1190
  %s1192 = scalar_lea.vmem %s0, 48
  %v1193 = vld [vmem:[%s1192] sm:$0xff]
  %v1194 = vld [vmem:[%s1192 + $0x8] sm:$0xff]
  %v1195 = vunpack.c.l.bf16 %v1193
  %v1196 = vunpack.c.h.bf16 %v1193
  %v1197 = vunpack.c.l.bf16 %v1194
  %v1198 = vunpack.c.h.bf16 %v1194
  %v1199 = vpack.c.bf16 %v1064, %v1064
  %1200 = vmatpush.bf16.msra.mxu0 %v243
  %1201 = vmatpush.bf16.msra.mxu0 %v239
  %1202 = vmatpush.bf16.msra.mxu0 %v235
  %1203 = vmatpush.bf16.msra.mxu0 %v231
  %1204 = vmatpush.bf16.msra.mxu0 %v227
  %1205 = vmatpush.bf16.msra.mxu0 %v223
  %1206 = vmatpush.bf16.msra.mxu0 %v219
  %1207 = vmatpush.bf16.msra.mxu0 %v215
  %1208 = vmatmul.bf16.gmra.mxu0 %v1199
  %v1209 = vpop.f32.mrf.mxu0
  %v1210 = vadd.f32 0.0, %v1209
  %v1211 = vpop.f32.mrf.mxu0
  %1212 = vdwg.mxu0
  %1213 = vmatpush.bf16.msra.mxu0 %v244
  %1214 = vmatpush.bf16.msra.mxu0 %v240
  %1215 = vmatpush.bf16.msra.mxu0 %v236
  %1216 = vmatpush.bf16.msra.mxu0 %v232
  %1217 = vmatpush.bf16.msra.mxu0 %v228
  %1218 = vmatpush.bf16.msra.mxu0 %v224
  %1219 = vmatpush.bf16.msra.mxu0 %v220
  %1220 = vmatpush.bf16.msra.mxu0 %v216
  %1221 = vmatmul.bf16.gmra.mxu0 %v1199
  %v1222 = vpop.f32.mrf.mxu0
  %v1223 = vadd.f32 0.0, %v1222
  %v1224 = vpop.f32.mrf.mxu0
  %1225 = vdwg.mxu0
  %1226 = vmatpush.bf16.msra.mxu0 %v245
  %1227 = vmatpush.bf16.msra.mxu0 %v241
  %1228 = vmatpush.bf16.msra.mxu0 %v237
  %1229 = vmatpush.bf16.msra.mxu0 %v233
  %1230 = vmatpush.bf16.msra.mxu0 %v229
  %1231 = vmatpush.bf16.msra.mxu0 %v225
  %1232 = vmatpush.bf16.msra.mxu0 %v221
  %1233 = vmatpush.bf16.msra.mxu0 %v217
  %1234 = vmatmul.bf16.gmra.mxu0 %v1199
  %v1235 = vpop.f32.mrf.mxu0
  %v1236 = vadd.f32 0.0, %v1235
  %v1237 = vpop.f32.mrf.mxu0
  %1238 = vdwg.mxu0
  %1239 = vmatpush.bf16.msra.mxu0 %v246
  %1240 = vmatpush.bf16.msra.mxu0 %v242
  %1241 = vmatpush.bf16.msra.mxu0 %v238
  %1242 = vmatpush.bf16.msra.mxu0 %v234
  %1243 = vmatpush.bf16.msra.mxu0 %v230
  %1244 = vmatpush.bf16.msra.mxu0 %v226
  %1245 = vmatpush.bf16.msra.mxu0 %v222
  %1246 = vmatpush.bf16.msra.mxu0 %v218
  %1247 = vmatmul.bf16.gmra.mxu0 %v1199
  %v1248 = vpop.f32.mrf.mxu0
  %v1249 = vadd.f32 0.0, %v1248
  %v1250 = vpop.f32.mrf.mxu0
  %1251 = vdwg.mxu0
  %v1252 = vadd.f32 %v1195, %v1210
  %v1253 = vadd.f32 %v1196, %v1223
  %v1254 = vadd.f32 %v1197, %v1236
  %v1255 = vadd.f32 %v1198, %v1249
  %v1256 = vxor.u32 %v1252, 2147483648
  %v1257 = vxor.u32 %v1253, 2147483648
  %v1258 = vxor.u32 %v1254, 2147483648
  %v1259 = vmul.f32 %v1256, 1.442695
  %v1260 = vpow.pop %v1259
  %v1261 = vmul.f32 %v1257, 1.442695
  %v1262 = vpow.pop %v1261
  %v1263 = vmul.f32 %v1258, 1.442695
  %v1264 = vpow.pop %v1263
  %v1265 = vadd.f32 %v1260, 1.0
  %v1266 = vadd.f32 %v1262, 1.0
  %v1267 = vadd.f32 %v1264, 1.0
  %v1268 = vrcp.pop %v1265
  %v1269 = vmul.f32 %v1265, %v1268
  %v1270 = vsub.f32 1.0, %v1269
  %v1271 = vmul.f32 %v1268, %v1270
  %v1272 = vadd.f32 %v1268, %v1271
  %vm1273 = vweird.f32 %v1265
  %vm1274 = vweird.f32 %v1268
  %vm1275 = vmor %vm1273, %vm1274
  %v1276 = vsel %vm1275, %v1268, %v1272
  %v1277 = vand.u32 2147483647, %v1265
  %vm1278 = vcmp.eq.f32.partialorder %v1277, 8.507059e+37
  %v1279 = vand.u32 %v1265, 2147483648
  %v1280 = vor.u32 1.1754944e-38, %v1279
  %v1281 = vsel %vm1278, %v1280, %v1276
  %v1282 = vmul.f32 1.0, %v1281
  %v1283 = vrcp.pop %v1266
  %v1284 = vmul.f32 %v1266, %v1283
  %v1285 = vsub.f32 1.0, %v1284
  %v1286 = vmul.f32 %v1283, %v1285
  %v1287 = vadd.f32 %v1283, %v1286
  %vm1288 = vweird.f32 %v1266
  %vm1289 = vweird.f32 %v1283
  %vm1290 = vmor %vm1288, %vm1289
  %v1291 = vsel %vm1290, %v1283, %v1287
  %v1292 = vand.u32 2147483647, %v1266
  %vm1293 = vcmp.eq.f32.partialorder %v1292, 8.507059e+37
  %v1294 = vand.u32 %v1266, 2147483648
  %v1295 = vor.u32 1.1754944e-38, %v1294
  %v1296 = vsel %vm1293, %v1295, %v1291
  %v1297 = vmul.f32 1.0, %v1296
  %v1298 = vrcp.pop %v1267
  %v1299 = vmul.f32 %v1267, %v1298
  %v1300 = vsub.f32 1.0, %v1299
  %v1301 = vmul.f32 %v1298, %v1300
  %v1302 = vadd.f32 %v1298, %v1301
  %vm1303 = vweird.f32 %v1267
  %vm1304 = vweird.f32 %v1298
  %vm1305 = vmor %vm1303, %vm1304
  %v1306 = vsel %vm1305, %v1298, %v1302
  %v1307 = vand.u32 2147483647, %v1267
  %vm1308 = vcmp.eq.f32.partialorder %v1307, 8.507059e+37
  %v1309 = vand.u32 %v1267, 2147483648
  %v1310 = vor.u32 1.1754944e-38, %v1309
  %v1311 = vsel %vm1308, %v1310, %v1306
  %v1312 = vmul.f32 1.0, %v1311
  %v1313 = vtanh.pop %v1255
  %v1314 = vmul.f32 %v1297, %v1062
  %v1315 = vmul.f32 %v1282, %v1313
  %v1316 = vadd.f32 %v1314, %v1315
  %v1317 = vtanh.pop %v1316
  %v1318 = vmul.f32 %v1312, %v1317
  %s1319 = scalar_lea.vmem %s1, 48
  %v1320 = vld [vmem:[%s1319] sm:$0xff]
  %v1321 = vld [vmem:[%s1319 + $0x8] sm:$0xff]
  %v1322 = vunpack.c.l.bf16 %v1320
  %v1323 = vunpack.c.h.bf16 %v1320
  %v1324 = vunpack.c.l.bf16 %v1321
  %v1325 = vunpack.c.h.bf16 %v1321
  %v1326 = vpack.c.bf16 %v1191, %v1191
  %1327 = vmatpush.bf16.msra.mxu0 %v529
  %1328 = vmatpush.bf16.msra.mxu0 %v525
  %1329 = vmatpush.bf16.msra.mxu0 %v521
  %1330 = vmatpush.bf16.msra.mxu0 %v517
  %1331 = vmatpush.bf16.msra.mxu0 %v513
  %1332 = vmatpush.bf16.msra.mxu0 %v509
  %1333 = vmatpush.bf16.msra.mxu0 %v505
  %1334 = vmatpush.bf16.msra.mxu0 %v501
  %1335 = vmatmul.bf16.gmra.mxu0 %v1326
  %v1336 = vpop.f32.mrf.mxu0
  %v1337 = vadd.f32 0.0, %v1336
  %v1338 = vpop.f32.mrf.mxu0
  %1339 = vdwg.mxu0
  %1340 = vmatpush.bf16.msra.mxu0 %v530
  %1341 = vmatpush.bf16.msra.mxu0 %v526
  %1342 = vmatpush.bf16.msra.mxu0 %v522
  %1343 = vmatpush.bf16.msra.mxu0 %v518
  %1344 = vmatpush.bf16.msra.mxu0 %v514
  %1345 = vmatpush.bf16.msra.mxu0 %v510
  %1346 = vmatpush.bf16.msra.mxu0 %v506
  %1347 = vmatpush.bf16.msra.mxu0 %v502
  %1348 = vmatmul.bf16.gmra.mxu0 %v1326
  %v1349 = vpop.f32.mrf.mxu0
  %v1350 = vadd.f32 0.0, %v1349
  %v1351 = vpop.f32.mrf.mxu0
  %1352 = vdwg.mxu0
  %1353 = vmatpush.bf16.msra.mxu0 %v531
  %1354 = vmatpush.bf16.msra.mxu0 %v527
  %1355 = vmatpush.bf16.msra.mxu0 %v523
  %1356 = vmatpush.bf16.msra.mxu0 %v519
  %1357 = vmatpush.bf16.msra.mxu0 %v515
  %1358 = vmatpush.bf16.msra.mxu0 %v511
  %1359 = vmatpush.bf16.msra.mxu0 %v507
  %1360 = vmatpush.bf16.msra.mxu0 %v503
  %1361 = vmatmul.bf16.gmra.mxu0 %v1326
  %v1362 = vpop.f32.mrf.mxu0
  %v1363 = vadd.f32 0.0, %v1362
  %v1364 = vpop.f32.mrf.mxu0
  %1365 = vdwg.mxu0
  %1366 = vmatpush.bf16.msra.mxu0 %v532
  %1367 = vmatpush.bf16.msra.mxu0 %v528
  %1368 = vmatpush.bf16.msra.mxu0 %v524
  %1369 = vmatpush.bf16.msra.mxu0 %v520
  %1370 = vmatpush.bf16.msra.mxu0 %v516
  %1371 = vmatpush.bf16.msra.mxu0 %v512
  %1372 = vmatpush.bf16.msra.mxu0 %v508
  %1373 = vmatpush.bf16.msra.mxu0 %v504
  %1374 = vmatmul.bf16.gmra.mxu0 %v1326
  %v1375 = vpop.f32.mrf.mxu0
  %v1376 = vadd.f32 0.0, %v1375
  %v1377 = vpop.f32.mrf.mxu0
  %1378 = vdwg.mxu0
  %v1379 = vadd.f32 %v1322, %v1337
  %v1380 = vadd.f32 %v1323, %v1350
  %v1381 = vadd.f32 %v1324, %v1363
  %v1382 = vadd.f32 %v1325, %v1376
  %v1383 = vxor.u32 %v1379, 2147483648
  %v1384 = vxor.u32 %v1380, 2147483648
  %v1385 = vxor.u32 %v1381, 2147483648
  %v1386 = vmul.f32 %v1383, 1.442695
  %v1387 = vpow.pop %v1386
  %v1388 = vmul.f32 %v1384, 1.442695
  %v1389 = vpow.pop %v1388
  %v1390 = vmul.f32 %v1385, 1.442695
  %v1391 = vpow.pop %v1390
  %v1392 = vadd.f32 %v1387, 1.0
  %v1393 = vadd.f32 %v1389, 1.0
  %v1394 = vadd.f32 %v1391, 1.0
  %v1395 = vrcp.pop %v1392
  %v1396 = vmul.f32 %v1392, %v1395
  %v1397 = vsub.f32 1.0, %v1396
  %v1398 = vmul.f32 %v1395, %v1397
  %v1399 = vadd.f32 %v1395, %v1398
  %vm1400 = vweird.f32 %v1392
  %vm1401 = vweird.f32 %v1395
  %vm1402 = vmor %vm1400, %vm1401
  %v1403 = vsel %vm1402, %v1395, %v1399
  %v1404 = vand.u32 2147483647, %v1392
  %vm1405 = vcmp.eq.f32.partialorder %v1404, 8.507059e+37
  %v1406 = vand.u32 %v1392, 2147483648
  %v1407 = vor.u32 1.1754944e-38, %v1406
  %v1408 = vsel %vm1405, %v1407, %v1403
  %v1409 = vmul.f32 1.0, %v1408
  %v1410 = vrcp.pop %v1393
  %v1411 = vmul.f32 %v1393, %v1410
  %v1412 = vsub.f32 1.0, %v1411
  %v1413 = vmul.f32 %v1410, %v1412
  %v1414 = vadd.f32 %v1410, %v1413
  %vm1415 = vweird.f32 %v1393
  %vm1416 = vweird.f32 %v1410
  %vm1417 = vmor %vm1415, %vm1416
  %v1418 = vsel %vm1417, %v1410, %v1414
  %v1419 = vand.u32 2147483647, %v1393
  %vm1420 = vcmp.eq.f32.partialorder %v1419, 8.507059e+37
  %v1421 = vand.u32 %v1393, 2147483648
  %v1422 = vor.u32 1.1754944e-38, %v1421
  %v1423 = vsel %vm1420, %v1422, %v1418
  %v1424 = vmul.f32 1.0, %v1423
  %v1425 = vrcp.pop %v1394
  %v1426 = vmul.f32 %v1394, %v1425
  %v1427 = vsub.f32 1.0, %v1426
  %v1428 = vmul.f32 %v1425, %v1427
  %v1429 = vadd.f32 %v1425, %v1428
  %vm1430 = vweird.f32 %v1394
  %vm1431 = vweird.f32 %v1425
  %vm1432 = vmor %vm1430, %vm1431
  %v1433 = vsel %vm1432, %v1425, %v1429
  %v1434 = vand.u32 2147483647, %v1394
  %vm1435 = vcmp.eq.f32.partialorder %v1434, 8.507059e+37
  %v1436 = vand.u32 %v1394, 2147483648
  %v1437 = vor.u32 1.1754944e-38, %v1436
  %v1438 = vsel %vm1435, %v1437, %v1433
  %v1439 = vmul.f32 1.0, %v1438
  %v1440 = vtanh.pop %v1382
  %v1441 = vmul.f32 %v1424, %v1189
  %v1442 = vmul.f32 %v1409, %v1440
  %v1443 = vadd.f32 %v1441, %v1442
  %v1444 = vtanh.pop %v1443
  %v1445 = vmul.f32 %v1439, %v1444
  %s1446 = scalar_lea.vmem %s0, 64
  %v1447 = vld [vmem:[%s1446] sm:$0xff]
  %v1448 = vld [vmem:[%s1446 + $0x8] sm:$0xff]
  %v1449 = vunpack.c.l.bf16 %v1447
  %v1450 = vunpack.c.h.bf16 %v1447
  %v1451 = vunpack.c.l.bf16 %v1448
  %v1452 = vunpack.c.h.bf16 %v1448
  %v1453 = vpack.c.bf16 %v1318, %v1318
  %1454 = vmatpush.bf16.msra.mxu0 %v243
  %1455 = vmatpush.bf16.msra.mxu0 %v239
  %1456 = vmatpush.bf16.msra.mxu0 %v235
  %1457 = vmatpush.bf16.msra.mxu0 %v231
  %1458 = vmatpush.bf16.msra.mxu0 %v227
  %1459 = vmatpush.bf16.msra.mxu0 %v223
  %1460 = vmatpush.bf16.msra.mxu0 %v219
  %1461 = vmatpush.bf16.msra.mxu0 %v215
  %1462 = vmatmul.bf16.gmra.mxu0 %v1453
  %v1463 = vpop.f32.mrf.mxu0
  %v1464 = vadd.f32 0.0, %v1463
  %v1465 = vpop.f32.mrf.mxu0
  %1466 = vdwg.mxu0
  %1467 = vmatpush.bf16.msra.mxu0 %v244
  %1468 = vmatpush.bf16.msra.mxu0 %v240
  %1469 = vmatpush.bf16.msra.mxu0 %v236
  %1470 = vmatpush.bf16.msra.mxu0 %v232
  %1471 = vmatpush.bf16.msra.mxu0 %v228
  %1472 = vmatpush.bf16.msra.mxu0 %v224
  %1473 = vmatpush.bf16.msra.mxu0 %v220
  %1474 = vmatpush.bf16.msra.mxu0 %v216
  %1475 = vmatmul.bf16.gmra.mxu0 %v1453
  %v1476 = vpop.f32.mrf.mxu0
  %v1477 = vadd.f32 0.0, %v1476
  %v1478 = vpop.f32.mrf.mxu0
  %1479 = vdwg.mxu0
  %1480 = vmatpush.bf16.msra.mxu0 %v245
  %1481 = vmatpush.bf16.msra.mxu0 %v241
  %1482 = vmatpush.bf16.msra.mxu0 %v237
  %1483 = vmatpush.bf16.msra.mxu0 %v233
  %1484 = vmatpush.bf16.msra.mxu0 %v229
  %1485 = vmatpush.bf16.msra.mxu0 %v225
  %1486 = vmatpush.bf16.msra.mxu0 %v221
  %1487 = vmatpush.bf16.msra.mxu0 %v217
  %1488 = vmatmul.bf16.gmra.mxu0 %v1453
  %v1489 = vpop.f32.mrf.mxu0
  %v1490 = vadd.f32 0.0, %v1489
  %v1491 = vpop.f32.mrf.mxu0
  %1492 = vdwg.mxu0
  %1493 = vmatpush.bf16.msra.mxu0 %v246
  %1494 = vmatpush.bf16.msra.mxu0 %v242
  %1495 = vmatpush.bf16.msra.mxu0 %v238
  %1496 = vmatpush.bf16.msra.mxu0 %v234
  %1497 = vmatpush.bf16.msra.mxu0 %v230
  %1498 = vmatpush.bf16.msra.mxu0 %v226
  %1499 = vmatpush.bf16.msra.mxu0 %v222
  %1500 = vmatpush.bf16.msra.mxu0 %v218
  %1501 = vmatmul.bf16.gmra.mxu0 %v1453
  %v1502 = vpop.f32.mrf.mxu0
  %v1503 = vadd.f32 0.0, %v1502
  %v1504 = vpop.f32.mrf.mxu0
  %1505 = vdwg.mxu0
  %v1506 = vadd.f32 %v1449, %v1464
  %v1507 = vadd.f32 %v1450, %v1477
  %v1508 = vadd.f32 %v1451, %v1490
  %v1509 = vadd.f32 %v1452, %v1503
  %v1510 = vxor.u32 %v1506, 2147483648
  %v1511 = vxor.u32 %v1507, 2147483648
  %v1512 = vxor.u32 %v1508, 2147483648
  %v1513 = vmul.f32 %v1510, 1.442695
  %v1514 = vpow.pop %v1513
  %v1515 = vmul.f32 %v1511, 1.442695
  %v1516 = vpow.pop %v1515
  %v1517 = vmul.f32 %v1512, 1.442695
  %v1518 = vpow.pop %v1517
  %v1519 = vadd.f32 %v1514, 1.0
  %v1520 = vadd.f32 %v1516, 1.0
  %v1521 = vadd.f32 %v1518, 1.0
  %v1522 = vrcp.pop %v1519
  %v1523 = vmul.f32 %v1519, %v1522
  %v1524 = vsub.f32 1.0, %v1523
  %v1525 = vmul.f32 %v1522, %v1524
  %v1526 = vadd.f32 %v1522, %v1525
  %vm1527 = vweird.f32 %v1519
  %vm1528 = vweird.f32 %v1522
  %vm1529 = vmor %vm1527, %vm1528
  %v1530 = vsel %vm1529, %v1522, %v1526
  %v1531 = vand.u32 2147483647, %v1519
  %vm1532 = vcmp.eq.f32.partialorder %v1531, 8.507059e+37
  %v1533 = vand.u32 %v1519, 2147483648
  %v1534 = vor.u32 1.1754944e-38, %v1533
  %v1535 = vsel %vm1532, %v1534, %v1530
  %v1536 = vmul.f32 1.0, %v1535
  %v1537 = vrcp.pop %v1520
  %v1538 = vmul.f32 %v1520, %v1537
  %v1539 = vsub.f32 1.0, %v1538
  %v1540 = vmul.f32 %v1537, %v1539
  %v1541 = vadd.f32 %v1537, %v1540
  %vm1542 = vweird.f32 %v1520
  %vm1543 = vweird.f32 %v1537
  %vm1544 = vmor %vm1542, %vm1543
  %v1545 = vsel %vm1544, %v1537, %v1541
  %v1546 = vand.u32 2147483647, %v1520
  %vm1547 = vcmp.eq.f32.partialorder %v1546, 8.507059e+37
  %v1548 = vand.u32 %v1520, 2147483648
  %v1549 = vor.u32 1.1754944e-38, %v1548
  %v1550 = vsel %vm1547, %v1549, %v1545
  %v1551 = vmul.f32 1.0, %v1550
  %v1552 = vrcp.pop %v1521
  %v1553 = vmul.f32 %v1521, %v1552
  %v1554 = vsub.f32 1.0, %v1553
  %v1555 = vmul.f32 %v1552, %v1554
  %v1556 = vadd.f32 %v1552, %v1555
  %vm1557 = vweird.f32 %v1521
  %vm1558 = vweird.f32 %v1552
  %vm1559 = vmor %vm1557, %vm1558
  %v1560 = vsel %vm1559, %v1552, %v1556
  %v1561 = vand.u32 2147483647, %v1521
  %vm1562 = vcmp.eq.f32.partialorder %v1561, 8.507059e+37
  %v1563 = vand.u32 %v1521, 2147483648
  %v1564 = vor.u32 1.1754944e-38, %v1563
  %v1565 = vsel %vm1562, %v1564, %v1560
  %v1566 = vmul.f32 1.0, %v1565
  %v1567 = vtanh.pop %v1509
  %v1568 = vmul.f32 %v1551, %v1316
  %v1569 = vmul.f32 %v1536, %v1567
  %v1570 = vadd.f32 %v1568, %v1569
  %v1571 = vtanh.pop %v1570
  %v1572 = vmul.f32 %v1566, %v1571
  %s1573 = scalar_lea.vmem %s1, 64
  %v1574 = vld [vmem:[%s1573] sm:$0xff]
  %v1575 = vld [vmem:[%s1573 + $0x8] sm:$0xff]
  %v1576 = vunpack.c.l.bf16 %v1574
  %v1577 = vunpack.c.h.bf16 %v1574
  %v1578 = vunpack.c.l.bf16 %v1575
  %v1579 = vunpack.c.h.bf16 %v1575
  %v1580 = vpack.c.bf16 %v1445, %v1445
  %1581 = vmatpush.bf16.msra.mxu0 %v529
  %1582 = vmatpush.bf16.msra.mxu0 %v525
  %1583 = vmatpush.bf16.msra.mxu0 %v521
  %1584 = vmatpush.bf16.msra.mxu0 %v517
  %1585 = vmatpush.bf16.msra.mxu0 %v513
  %1586 = vmatpush.bf16.msra.mxu0 %v509
  %1587 = vmatpush.bf16.msra.mxu0 %v505
  %1588 = vmatpush.bf16.msra.mxu0 %v501
  %1589 = vmatmul.bf16.gmra.mxu0 %v1580
  %v1590 = vpop.f32.mrf.mxu0
  %v1591 = vadd.f32 0.0, %v1590
  %v1592 = vpop.f32.mrf.mxu0
  %1593 = vdwg.mxu0
  %1594 = vmatpush.bf16.msra.mxu0 %v530
  %1595 = vmatpush.bf16.msra.mxu0 %v526
  %1596 = vmatpush.bf16.msra.mxu0 %v522
  %1597 = vmatpush.bf16.msra.mxu0 %v518
  %1598 = vmatpush.bf16.msra.mxu0 %v514
  %1599 = vmatpush.bf16.msra.mxu0 %v510
  %1600 = vmatpush.bf16.msra.mxu0 %v506
  %1601 = vmatpush.bf16.msra.mxu0 %v502
  %1602 = vmatmul.bf16.gmra.mxu0 %v1580
  %v1603 = vpop.f32.mrf.mxu0
  %v1604 = vadd.f32 0.0, %v1603
  %v1605 = vpop.f32.mrf.mxu0
  %1606 = vdwg.mxu0
  %1607 = vmatpush.bf16.msra.mxu0 %v531
  %1608 = vmatpush.bf16.msra.mxu0 %v527
  %1609 = vmatpush.bf16.msra.mxu0 %v523
  %1610 = vmatpush.bf16.msra.mxu0 %v519
  %1611 = vmatpush.bf16.msra.mxu0 %v515
  %1612 = vmatpush.bf16.msra.mxu0 %v511
  %1613 = vmatpush.bf16.msra.mxu0 %v507
  %1614 = vmatpush.bf16.msra.mxu0 %v503
  %1615 = vmatmul.bf16.gmra.mxu0 %v1580
  %v1616 = vpop.f32.mrf.mxu0
  %v1617 = vadd.f32 0.0, %v1616
  %v1618 = vpop.f32.mrf.mxu0
  %1619 = vdwg.mxu0
  %1620 = vmatpush.bf16.msra.mxu0 %v532
  %1621 = vmatpush.bf16.msra.mxu0 %v528
  %1622 = vmatpush.bf16.msra.mxu0 %v524
  %1623 = vmatpush.bf16.msra.mxu0 %v520
  %1624 = vmatpush.bf16.msra.mxu0 %v516
  %1625 = vmatpush.bf16.msra.mxu0 %v512
  %1626 = vmatpush.bf16.msra.mxu0 %v508
  %1627 = vmatpush.bf16.msra.mxu0 %v504
  %1628 = vmatmul.bf16.gmra.mxu0 %v1580
  %v1629 = vpop.f32.mrf.mxu0
  %v1630 = vadd.f32 0.0, %v1629
  %v1631 = vpop.f32.mrf.mxu0
  %1632 = vdwg.mxu0
  %v1633 = vadd.f32 %v1576, %v1591
  %v1634 = vadd.f32 %v1577, %v1604
  %v1635 = vadd.f32 %v1578, %v1617
  %v1636 = vadd.f32 %v1579, %v1630
  %v1637 = vxor.u32 %v1633, 2147483648
  %v1638 = vxor.u32 %v1634, 2147483648
  %v1639 = vxor.u32 %v1635, 2147483648
  %v1640 = vmul.f32 %v1637, 1.442695
  %v1641 = vpow.pop %v1640
  %v1642 = vmul.f32 %v1638, 1.442695
  %v1643 = vpow.pop %v1642
  %v1644 = vmul.f32 %v1639, 1.442695
  %v1645 = vpow.pop %v1644
  %v1646 = vadd.f32 %v1641, 1.0
  %v1647 = vadd.f32 %v1643, 1.0
  %v1648 = vadd.f32 %v1645, 1.0
  %v1649 = vrcp.pop %v1646
  %v1650 = vmul.f32 %v1646, %v1649
  %v1651 = vsub.f32 1.0, %v1650
  %v1652 = vmul.f32 %v1649, %v1651
  %v1653 = vadd.f32 %v1649, %v1652
  %vm1654 = vweird.f32 %v1646
  %vm1655 = vweird.f32 %v1649
  %vm1656 = vmor %vm1654, %vm1655
  %v1657 = vsel %vm1656, %v1649, %v1653
  %v1658 = vand.u32 2147483647, %v1646
  %vm1659 = vcmp.eq.f32.partialorder %v1658, 8.507059e+37
  %v1660 = vand.u32 %v1646, 2147483648
  %v1661 = vor.u32 1.1754944e-38, %v1660
  %v1662 = vsel %vm1659, %v1661, %v1657
  %v1663 = vmul.f32 1.0, %v1662
  %v1664 = vrcp.pop %v1647
  %v1665 = vmul.f32 %v1647, %v1664
  %v1666 = vsub.f32 1.0, %v1665
  %v1667 = vmul.f32 %v1664, %v1666
  %v1668 = vadd.f32 %v1664, %v1667
  %vm1669 = vweird.f32 %v1647
  %vm1670 = vweird.f32 %v1664
  %vm1671 = vmor %vm1669, %vm1670
  %v1672 = vsel %vm1671, %v1664, %v1668
  %v1673 = vand.u32 2147483647, %v1647
  %vm1674 = vcmp.eq.f32.partialorder %v1673, 8.507059e+37
  %v1675 = vand.u32 %v1647, 2147483648
  %v1676 = vor.u32 1.1754944e-38, %v1675
  %v1677 = vsel %vm1674, %v1676, %v1672
  %v1678 = vmul.f32 1.0, %v1677
  %v1679 = vrcp.pop %v1648
  %v1680 = vmul.f32 %v1648, %v1679
  %v1681 = vsub.f32 1.0, %v1680
  %v1682 = vmul.f32 %v1679, %v1681
  %v1683 = vadd.f32 %v1679, %v1682
  %vm1684 = vweird.f32 %v1648
  %vm1685 = vweird.f32 %v1679
  %vm1686 = vmor %vm1684, %vm1685
  %v1687 = vsel %vm1686, %v1679, %v1683
  %v1688 = vand.u32 2147483647, %v1648
  %vm1689 = vcmp.eq.f32.partialorder %v1688, 8.507059e+37
  %v1690 = vand.u32 %v1648, 2147483648
  %v1691 = vor.u32 1.1754944e-38, %v1690
  %v1692 = vsel %vm1689, %v1691, %v1687
  %v1693 = vmul.f32 1.0, %v1692
  %v1694 = vtanh.pop %v1636
  %v1695 = vmul.f32 %v1678, %v1443
  %v1696 = vmul.f32 %v1663, %v1694
  %v1697 = vadd.f32 %v1695, %v1696
  %v1698 = vtanh.pop %v1697
  %v1699 = vmul.f32 %v1693, %v1698
  %s1700 = scalar_lea.vmem %s0, 80
  %v1701 = vld [vmem:[%s1700] sm:$0xff]
  %v1702 = vld [vmem:[%s1700 + $0x8] sm:$0xff]
  %v1703 = vunpack.c.l.bf16 %v1701
  %v1704 = vunpack.c.h.bf16 %v1701
  %v1705 = vunpack.c.l.bf16 %v1702
  %v1706 = vunpack.c.h.bf16 %v1702
  %v1707 = vpack.c.bf16 %v1572, %v1572
  %1708 = vmatpush.bf16.msra.mxu0 %v243
  %1709 = vmatpush.bf16.msra.mxu0 %v239
  %1710 = vmatpush.bf16.msra.mxu0 %v235
  %1711 = vmatpush.bf16.msra.mxu0 %v231
  %1712 = vmatpush.bf16.msra.mxu0 %v227
  %1713 = vmatpush.bf16.msra.mxu0 %v223
  %1714 = vmatpush.bf16.msra.mxu0 %v219
  %1715 = vmatpush.bf16.msra.mxu0 %v215
  %1716 = vmatmul.bf16.gmra.mxu0 %v1707
  %v1717 = vpop.f32.mrf.mxu0
  %v1718 = vadd.f32 0.0, %v1717
  %v1719 = vpop.f32.mrf.mxu0
  %1720 = vdwg.mxu0
  %1721 = vmatpush.bf16.msra.mxu0 %v244
  %1722 = vmatpush.bf16.msra.mxu0 %v240
  %1723 = vmatpush.bf16.msra.mxu0 %v236
  %1724 = vmatpush.bf16.msra.mxu0 %v232
  %1725 = vmatpush.bf16.msra.mxu0 %v228
  %1726 = vmatpush.bf16.msra.mxu0 %v224
  %1727 = vmatpush.bf16.msra.mxu0 %v220
  %1728 = vmatpush.bf16.msra.mxu0 %v216
  %1729 = vmatmul.bf16.gmra.mxu0 %v1707
  %v1730 = vpop.f32.mrf.mxu0
  %v1731 = vadd.f32 0.0, %v1730
  %v1732 = vpop.f32.mrf.mxu0
  %1733 = vdwg.mxu0
  %1734 = vmatpush.bf16.msra.mxu0 %v245
  %1735 = vmatpush.bf16.msra.mxu0 %v241
  %1736 = vmatpush.bf16.msra.mxu0 %v237
  %1737 = vmatpush.bf16.msra.mxu0 %v233
  %1738 = vmatpush.bf16.msra.mxu0 %v229
  %1739 = vmatpush.bf16.msra.mxu0 %v225
  %1740 = vmatpush.bf16.msra.mxu0 %v221
  %1741 = vmatpush.bf16.msra.mxu0 %v217
  %1742 = vmatmul.bf16.gmra.mxu0 %v1707
  %v1743 = vpop.f32.mrf.mxu0
  %v1744 = vadd.f32 0.0, %v1743
  %v1745 = vpop.f32.mrf.mxu0
  %1746 = vdwg.mxu0
  %1747 = vmatpush.bf16.msra.mxu0 %v246
  %1748 = vmatpush.bf16.msra.mxu0 %v242
  %1749 = vmatpush.bf16.msra.mxu0 %v238
  %1750 = vmatpush.bf16.msra.mxu0 %v234
  %1751 = vmatpush.bf16.msra.mxu0 %v230
  %1752 = vmatpush.bf16.msra.mxu0 %v226
  %1753 = vmatpush.bf16.msra.mxu0 %v222
  %1754 = vmatpush.bf16.msra.mxu0 %v218
  %1755 = vmatmul.bf16.gmra.mxu0 %v1707
  %v1756 = vpop.f32.mrf.mxu0
  %v1757 = vadd.f32 0.0, %v1756
  %v1758 = vpop.f32.mrf.mxu0
  %1759 = vdwg.mxu0
  %v1760 = vadd.f32 %v1703, %v1718
  %v1761 = vadd.f32 %v1704, %v1731
  %v1762 = vadd.f32 %v1705, %v1744
  %v1763 = vadd.f32 %v1706, %v1757
  %v1764 = vxor.u32 %v1760, 2147483648
  %v1765 = vxor.u32 %v1761, 2147483648
  %v1766 = vxor.u32 %v1762, 2147483648
  %v1767 = vmul.f32 %v1764, 1.442695
  %v1768 = vpow.pop %v1767
  %v1769 = vmul.f32 %v1765, 1.442695
  %v1770 = vpow.pop %v1769
  %v1771 = vmul.f32 %v1766, 1.442695
  %v1772 = vpow.pop %v1771
  %v1773 = vadd.f32 %v1768, 1.0
  %v1774 = vadd.f32 %v1770, 1.0
  %v1775 = vadd.f32 %v1772, 1.0
  %v1776 = vrcp.pop %v1773
  %v1777 = vmul.f32 %v1773, %v1776
  %v1778 = vsub.f32 1.0, %v1777
  %v1779 = vmul.f32 %v1776, %v1778
  %v1780 = vadd.f32 %v1776, %v1779
  %vm1781 = vweird.f32 %v1773
  %vm1782 = vweird.f32 %v1776
  %vm1783 = vmor %vm1781, %vm1782
  %v1784 = vsel %vm1783, %v1776, %v1780
  %v1785 = vand.u32 2147483647, %v1773
  %vm1786 = vcmp.eq.f32.partialorder %v1785, 8.507059e+37
  %v1787 = vand.u32 %v1773, 2147483648
  %v1788 = vor.u32 1.1754944e-38, %v1787
  %v1789 = vsel %vm1786, %v1788, %v1784
  %v1790 = vmul.f32 1.0, %v1789
  %v1791 = vrcp.pop %v1774
  %v1792 = vmul.f32 %v1774, %v1791
  %v1793 = vsub.f32 1.0, %v1792
  %v1794 = vmul.f32 %v1791, %v1793
  %v1795 = vadd.f32 %v1791, %v1794
  %vm1796 = vweird.f32 %v1774
  %vm1797 = vweird.f32 %v1791
  %vm1798 = vmor %vm1796, %vm1797
  %v1799 = vsel %vm1798, %v1791, %v1795
  %v1800 = vand.u32 2147483647, %v1774
  %vm1801 = vcmp.eq.f32.partialorder %v1800, 8.507059e+37
  %v1802 = vand.u32 %v1774, 2147483648
  %v1803 = vor.u32 1.1754944e-38, %v1802
  %v1804 = vsel %vm1801, %v1803, %v1799
  %v1805 = vmul.f32 1.0, %v1804
  %v1806 = vrcp.pop %v1775
  %v1807 = vmul.f32 %v1775, %v1806
  %v1808 = vsub.f32 1.0, %v1807
  %v1809 = vmul.f32 %v1806, %v1808
  %v1810 = vadd.f32 %v1806, %v1809
  %vm1811 = vweird.f32 %v1775
  %vm1812 = vweird.f32 %v1806
  %vm1813 = vmor %vm1811, %vm1812
  %v1814 = vsel %vm1813, %v1806, %v1810
  %v1815 = vand.u32 2147483647, %v1775
  %vm1816 = vcmp.eq.f32.partialorder %v1815, 8.507059e+37
  %v1817 = vand.u32 %v1775, 2147483648
  %v1818 = vor.u32 1.1754944e-38, %v1817
  %v1819 = vsel %vm1816, %v1818, %v1814
  %v1820 = vmul.f32 1.0, %v1819
  %v1821 = vtanh.pop %v1763
  %v1822 = vmul.f32 %v1805, %v1570
  %v1823 = vmul.f32 %v1790, %v1821
  %v1824 = vadd.f32 %v1822, %v1823
  %v1825 = vtanh.pop %v1824
  %v1826 = vmul.f32 %v1820, %v1825
  %s1827 = scalar_lea.vmem %s1, 80
  %v1828 = vld [vmem:[%s1827] sm:$0xff]
  %v1829 = vld [vmem:[%s1827 + $0x8] sm:$0xff]
  %v1830 = vunpack.c.l.bf16 %v1828
  %v1831 = vunpack.c.h.bf16 %v1828
  %v1832 = vunpack.c.l.bf16 %v1829
  %v1833 = vunpack.c.h.bf16 %v1829
  %v1834 = vpack.c.bf16 %v1699, %v1699
  %1835 = vmatpush.bf16.msra.mxu0 %v529
  %1836 = vmatpush.bf16.msra.mxu0 %v525
  %1837 = vmatpush.bf16.msra.mxu0 %v521
  %1838 = vmatpush.bf16.msra.mxu0 %v517
  %1839 = vmatpush.bf16.msra.mxu0 %v513
  %1840 = vmatpush.bf16.msra.mxu0 %v509
  %1841 = vmatpush.bf16.msra.mxu0 %v505
  %1842 = vmatpush.bf16.msra.mxu0 %v501
  %1843 = vmatmul.bf16.gmra.mxu0 %v1834
  %v1844 = vpop.f32.mrf.mxu0
  %v1845 = vadd.f32 0.0, %v1844
  %v1846 = vpop.f32.mrf.mxu0
  %1847 = vdwg.mxu0
  %1848 = vmatpush.bf16.msra.mxu0 %v530
  %1849 = vmatpush.bf16.msra.mxu0 %v526
  %1850 = vmatpush.bf16.msra.mxu0 %v522
  %1851 = vmatpush.bf16.msra.mxu0 %v518
  %1852 = vmatpush.bf16.msra.mxu0 %v514
  %1853 = vmatpush.bf16.msra.mxu0 %v510
  %1854 = vmatpush.bf16.msra.mxu0 %v506
  %1855 = vmatpush.bf16.msra.mxu0 %v502
  %1856 = vmatmul.bf16.gmra.mxu0 %v1834
  %v1857 = vpop.f32.mrf.mxu0
  %v1858 = vadd.f32 0.0, %v1857
  %v1859 = vpop.f32.mrf.mxu0
  %1860 = vdwg.mxu0
  %1861 = vmatpush.bf16.msra.mxu0 %v531
  %1862 = vmatpush.bf16.msra.mxu0 %v527
  %1863 = vmatpush.bf16.msra.mxu0 %v523
  %1864 = vmatpush.bf16.msra.mxu0 %v519
  %1865 = vmatpush.bf16.msra.mxu0 %v515
  %1866 = vmatpush.bf16.msra.mxu0 %v511
  %1867 = vmatpush.bf16.msra.mxu0 %v507
  %1868 = vmatpush.bf16.msra.mxu0 %v503
  %1869 = vmatmul.bf16.gmra.mxu0 %v1834
  %v1870 = vpop.f32.mrf.mxu0
  %v1871 = vadd.f32 0.0, %v1870
  %v1872 = vpop.f32.mrf.mxu0
  %1873 = vdwg.mxu0
  %1874 = vmatpush.bf16.msra.mxu0 %v532
  %1875 = vmatpush.bf16.msra.mxu0 %v528
  %1876 = vmatpush.bf16.msra.mxu0 %v524
  %1877 = vmatpush.bf16.msra.mxu0 %v520
  %1878 = vmatpush.bf16.msra.mxu0 %v516
  %1879 = vmatpush.bf16.msra.mxu0 %v512
  %1880 = vmatpush.bf16.msra.mxu0 %v508
  %1881 = vmatpush.bf16.msra.mxu0 %v504
  %1882 = vmatmul.bf16.gmra.mxu0 %v1834
  %v1883 = vpop.f32.mrf.mxu0
  %v1884 = vadd.f32 0.0, %v1883
  %v1885 = vpop.f32.mrf.mxu0
  %1886 = vdwg.mxu0
  %v1887 = vadd.f32 %v1830, %v1845
  %v1888 = vadd.f32 %v1831, %v1858
  %v1889 = vadd.f32 %v1832, %v1871
  %v1890 = vadd.f32 %v1833, %v1884
  %v1891 = vxor.u32 %v1887, 2147483648
  %v1892 = vxor.u32 %v1888, 2147483648
  %v1893 = vxor.u32 %v1889, 2147483648
  %v1894 = vmul.f32 %v1891, 1.442695
  %v1895 = vpow.pop %v1894
  %v1896 = vmul.f32 %v1892, 1.442695
  %v1897 = vpow.pop %v1896
  %v1898 = vmul.f32 %v1893, 1.442695
  %v1899 = vpow.pop %v1898
  %v1900 = vadd.f32 %v1895, 1.0
  %v1901 = vadd.f32 %v1897, 1.0
  %v1902 = vadd.f32 %v1899, 1.0
  %v1903 = vrcp.pop %v1900
  %v1904 = vmul.f32 %v1900, %v1903
  %v1905 = vsub.f32 1.0, %v1904
  %v1906 = vmul.f32 %v1903, %v1905
  %v1907 = vadd.f32 %v1903, %v1906
  %vm1908 = vweird.f32 %v1900
  %vm1909 = vweird.f32 %v1903
  %vm1910 = vmor %vm1908, %vm1909
  %v1911 = vsel %vm1910, %v1903, %v1907
  %v1912 = vand.u32 2147483647, %v1900
  %vm1913 = vcmp.eq.f32.partialorder %v1912, 8.507059e+37
  %v1914 = vand.u32 %v1900, 2147483648
  %v1915 = vor.u32 1.1754944e-38, %v1914
  %v1916 = vsel %vm1913, %v1915, %v1911
  %v1917 = vmul.f32 1.0, %v1916
  %v1918 = vrcp.pop %v1901
  %v1919 = vmul.f32 %v1901, %v1918
  %v1920 = vsub.f32 1.0, %v1919
  %v1921 = vmul.f32 %v1918, %v1920
  %v1922 = vadd.f32 %v1918, %v1921
  %vm1923 = vweird.f32 %v1901
  %vm1924 = vweird.f32 %v1918
  %vm1925 = vmor %vm1923, %vm1924
  %v1926 = vsel %vm1925, %v1918, %v1922
  %v1927 = vand.u32 2147483647, %v1901
  %vm1928 = vcmp.eq.f32.partialorder %v1927, 8.507059e+37
  %v1929 = vand.u32 %v1901, 2147483648
  %v1930 = vor.u32 1.1754944e-38, %v1929
  %v1931 = vsel %vm1928, %v1930, %v1926
  %v1932 = vmul.f32 1.0, %v1931
  %v1933 = vrcp.pop %v1902
  %v1934 = vmul.f32 %v1902, %v1933
  %v1935 = vsub.f32 1.0, %v1934
  %v1936 = vmul.f32 %v1933, %v1935
  %v1937 = vadd.f32 %v1933, %v1936
  %vm1938 = vweird.f32 %v1902
  %vm1939 = vweird.f32 %v1933
  %vm1940 = vmor %vm1938, %vm1939
  %v1941 = vsel %vm1940, %v1933, %v1937
  %v1942 = vand.u32 2147483647, %v1902
  %vm1943 = vcmp.eq.f32.partialorder %v1942, 8.507059e+37
  %v1944 = vand.u32 %v1902, 2147483648
  %v1945 = vor.u32 1.1754944e-38, %v1944
  %v1946 = vsel %vm1943, %v1945, %v1941
  %v1947 = vmul.f32 1.0, %v1946
  %v1948 = vtanh.pop %v1890
  %v1949 = vmul.f32 %v1932, %v1697
  %v1950 = vmul.f32 %v1917, %v1948
  %v1951 = vadd.f32 %v1949, %v1950
  %v1952 = vtanh.pop %v1951
  %v1953 = vmul.f32 %v1947, %v1952
  %s1954 = scalar_lea.vmem %s0, 96
  %v1955 = vld [vmem:[%s1954] sm:$0xff]
  %v1956 = vld [vmem:[%s1954 + $0x8] sm:$0xff]
  %v1957 = vunpack.c.l.bf16 %v1955
  %v1958 = vunpack.c.h.bf16 %v1955
  %v1959 = vunpack.c.l.bf16 %v1956
  %v1960 = vunpack.c.h.bf16 %v1956
  %v1961 = vpack.c.bf16 %v1826, %v1826
  %1962 = vmatpush.bf16.msra.mxu0 %v243
  %1963 = vmatpush.bf16.msra.mxu0 %v239
  %1964 = vmatpush.bf16.msra.mxu0 %v235
  %1965 = vmatpush.bf16.msra.mxu0 %v231
  %1966 = vmatpush.bf16.msra.mxu0 %v227
  %1967 = vmatpush.bf16.msra.mxu0 %v223
  %1968 = vmatpush.bf16.msra.mxu0 %v219
  %1969 = vmatpush.bf16.msra.mxu0 %v215
  %1970 = vmatmul.bf16.gmra.mxu0 %v1961
  %v1971 = vpop.f32.mrf.mxu0
  %v1972 = vadd.f32 0.0, %v1971
  %v1973 = vpop.f32.mrf.mxu0
  %1974 = vdwg.mxu0
  %1975 = vmatpush.bf16.msra.mxu0 %v244
  %1976 = vmatpush.bf16.msra.mxu0 %v240
  %1977 = vmatpush.bf16.msra.mxu0 %v236
  %1978 = vmatpush.bf16.msra.mxu0 %v232
  %1979 = vmatpush.bf16.msra.mxu0 %v228
  %1980 = vmatpush.bf16.msra.mxu0 %v224
  %1981 = vmatpush.bf16.msra.mxu0 %v220
  %1982 = vmatpush.bf16.msra.mxu0 %v216
  %1983 = vmatmul.bf16.gmra.mxu0 %v1961
  %v1984 = vpop.f32.mrf.mxu0
  %v1985 = vadd.f32 0.0, %v1984
  %v1986 = vpop.f32.mrf.mxu0
  %1987 = vdwg.mxu0
  %1988 = vmatpush.bf16.msra.mxu0 %v245
  %1989 = vmatpush.bf16.msra.mxu0 %v241
  %1990 = vmatpush.bf16.msra.mxu0 %v237
  %1991 = vmatpush.bf16.msra.mxu0 %v233
  %1992 = vmatpush.bf16.msra.mxu0 %v229
  %1993 = vmatpush.bf16.msra.mxu0 %v225
  %1994 = vmatpush.bf16.msra.mxu0 %v221
  %1995 = vmatpush.bf16.msra.mxu0 %v217
  %1996 = vmatmul.bf16.gmra.mxu0 %v1961
  %v1997 = vpop.f32.mrf.mxu0
  %v1998 = vadd.f32 0.0, %v1997
  %v1999 = vpop.f32.mrf.mxu0
  %2000 = vdwg.mxu0
  %2001 = vmatpush.bf16.msra.mxu0 %v246
  %2002 = vmatpush.bf16.msra.mxu0 %v242
  %2003 = vmatpush.bf16.msra.mxu0 %v238
  %2004 = vmatpush.bf16.msra.mxu0 %v234
  %2005 = vmatpush.bf16.msra.mxu0 %v230
  %2006 = vmatpush.bf16.msra.mxu0 %v226
  %2007 = vmatpush.bf16.msra.mxu0 %v222
  %2008 = vmatpush.bf16.msra.mxu0 %v218
  %2009 = vmatmul.bf16.gmra.mxu0 %v1961
  %v2010 = vpop.f32.mrf.mxu0
  %v2011 = vadd.f32 0.0, %v2010
  %v2012 = vpop.f32.mrf.mxu0
  %2013 = vdwg.mxu0
  %v2014 = vadd.f32 %v1957, %v1972
  %v2015 = vadd.f32 %v1958, %v1985
  %v2016 = vadd.f32 %v1959, %v1998
  %v2017 = vadd.f32 %v1960, %v2011
  %v2018 = vxor.u32 %v2014, 2147483648
  %v2019 = vxor.u32 %v2015, 2147483648
  %v2020 = vxor.u32 %v2016, 2147483648
  %v2021 = vmul.f32 %v2018, 1.442695
  %v2022 = vpow.pop %v2021
  %v2023 = vmul.f32 %v2019, 1.442695
  %v2024 = vpow.pop %v2023
  %v2025 = vmul.f32 %v2020, 1.442695
  %v2026 = vpow.pop %v2025
  %v2027 = vadd.f32 %v2022, 1.0
  %v2028 = vadd.f32 %v2024, 1.0
  %v2029 = vadd.f32 %v2026, 1.0
  %v2030 = vrcp.pop %v2027
  %v2031 = vmul.f32 %v2027, %v2030
  %v2032 = vsub.f32 1.0, %v2031
  %v2033 = vmul.f32 %v2030, %v2032
  %v2034 = vadd.f32 %v2030, %v2033
  %vm2035 = vweird.f32 %v2027
  %vm2036 = vweird.f32 %v2030
  %vm2037 = vmor %vm2035, %vm2036
  %v2038 = vsel %vm2037, %v2030, %v2034
  %v2039 = vand.u32 2147483647, %v2027
  %vm2040 = vcmp.eq.f32.partialorder %v2039, 8.507059e+37
  %v2041 = vand.u32 %v2027, 2147483648
  %v2042 = vor.u32 1.1754944e-38, %v2041
  %v2043 = vsel %vm2040, %v2042, %v2038
  %v2044 = vmul.f32 1.0, %v2043
  %v2045 = vrcp.pop %v2028
  %v2046 = vmul.f32 %v2028, %v2045
  %v2047 = vsub.f32 1.0, %v2046
  %v2048 = vmul.f32 %v2045, %v2047
  %v2049 = vadd.f32 %v2045, %v2048
  %vm2050 = vweird.f32 %v2028
  %vm2051 = vweird.f32 %v2045
  %vm2052 = vmor %vm2050, %vm2051
  %v2053 = vsel %vm2052, %v2045, %v2049
  %v2054 = vand.u32 2147483647, %v2028
  %vm2055 = vcmp.eq.f32.partialorder %v2054, 8.507059e+37
  %v2056 = vand.u32 %v2028, 2147483648
  %v2057 = vor.u32 1.1754944e-38, %v2056
  %v2058 = vsel %vm2055, %v2057, %v2053
  %v2059 = vmul.f32 1.0, %v2058
  %v2060 = vrcp.pop %v2029
  %v2061 = vmul.f32 %v2029, %v2060
  %v2062 = vsub.f32 1.0, %v2061
  %v2063 = vmul.f32 %v2060, %v2062
  %v2064 = vadd.f32 %v2060, %v2063
  %vm2065 = vweird.f32 %v2029
  %vm2066 = vweird.f32 %v2060
  %vm2067 = vmor %vm2065, %vm2066
  %v2068 = vsel %vm2067, %v2060, %v2064
  %v2069 = vand.u32 2147483647, %v2029
  %vm2070 = vcmp.eq.f32.partialorder %v2069, 8.507059e+37
  %v2071 = vand.u32 %v2029, 2147483648
  %v2072 = vor.u32 1.1754944e-38, %v2071
  %v2073 = vsel %vm2070, %v2072, %v2068
  %v2074 = vmul.f32 1.0, %v2073
  %v2075 = vtanh.pop %v2017
  %v2076 = vmul.f32 %v2059, %v1824
  %v2077 = vmul.f32 %v2044, %v2075
  %v2078 = vadd.f32 %v2076, %v2077
  %v2079 = vtanh.pop %v2078
  %v2080 = vmul.f32 %v2074, %v2079
  %s2081 = scalar_lea.vmem %s1, 96
  %v2082 = vld [vmem:[%s2081] sm:$0xff]
  %v2083 = vld [vmem:[%s2081 + $0x8] sm:$0xff]
  %v2084 = vunpack.c.l.bf16 %v2082
  %v2085 = vunpack.c.h.bf16 %v2082
  %v2086 = vunpack.c.l.bf16 %v2083
  %v2087 = vunpack.c.h.bf16 %v2083
  %v2088 = vpack.c.bf16 %v1953, %v1953
  %2089 = vmatpush.bf16.msra.mxu0 %v529
  %2090 = vmatpush.bf16.msra.mxu0 %v525
  %2091 = vmatpush.bf16.msra.mxu0 %v521
  %2092 = vmatpush.bf16.msra.mxu0 %v517
  %2093 = vmatpush.bf16.msra.mxu0 %v513
  %2094 = vmatpush.bf16.msra.mxu0 %v509
  %2095 = vmatpush.bf16.msra.mxu0 %v505
  %2096 = vmatpush.bf16.msra.mxu0 %v501
  %2097 = vmatmul.bf16.gmra.mxu0 %v2088
  %v2098 = vpop.f32.mrf.mxu0
  %v2099 = vadd.f32 0.0, %v2098
  %v2100 = vpop.f32.mrf.mxu0
  %2101 = vdwg.mxu0
  %2102 = vmatpush.bf16.msra.mxu0 %v530
  %2103 = vmatpush.bf16.msra.mxu0 %v526
  %2104 = vmatpush.bf16.msra.mxu0 %v522
  %2105 = vmatpush.bf16.msra.mxu0 %v518
  %2106 = vmatpush.bf16.msra.mxu0 %v514
  %2107 = vmatpush.bf16.msra.mxu0 %v510
  %2108 = vmatpush.bf16.msra.mxu0 %v506
  %2109 = vmatpush.bf16.msra.mxu0 %v502
  %2110 = vmatmul.bf16.gmra.mxu0 %v2088
  %v2111 = vpop.f32.mrf.mxu0
  %v2112 = vadd.f32 0.0, %v2111
  %v2113 = vpop.f32.mrf.mxu0
  %2114 = vdwg.mxu0
  %2115 = vmatpush.bf16.msra.mxu0 %v531
  %2116 = vmatpush.bf16.msra.mxu0 %v527
  %2117 = vmatpush.bf16.msra.mxu0 %v523
  %2118 = vmatpush.bf16.msra.mxu0 %v519
  %2119 = vmatpush.bf16.msra.mxu0 %v515
  %2120 = vmatpush.bf16.msra.mxu0 %v511
  %2121 = vmatpush.bf16.msra.mxu0 %v507
  %2122 = vmatpush.bf16.msra.mxu0 %v503
  %2123 = vmatmul.bf16.gmra.mxu0 %v2088
  %v2124 = vpop.f32.mrf.mxu0
  %v2125 = vadd.f32 0.0, %v2124
  %v2126 = vpop.f32.mrf.mxu0
  %2127 = vdwg.mxu0
  %2128 = vmatpush.bf16.msra.mxu0 %v532
  %2129 = vmatpush.bf16.msra.mxu0 %v528
  %2130 = vmatpush.bf16.msra.mxu0 %v524
  %2131 = vmatpush.bf16.msra.mxu0 %v520
  %2132 = vmatpush.bf16.msra.mxu0 %v516
  %2133 = vmatpush.bf16.msra.mxu0 %v512
  %2134 = vmatpush.bf16.msra.mxu0 %v508
  %2135 = vmatpush.bf16.msra.mxu0 %v504
  %2136 = vmatmul.bf16.gmra.mxu0 %v2088
  %v2137 = vpop.f32.mrf.mxu0
  %v2138 = vadd.f32 0.0, %v2137
  %v2139 = vpop.f32.mrf.mxu0
  %2140 = vdwg.mxu0
  %v2141 = vadd.f32 %v2084, %v2099
  %v2142 = vadd.f32 %v2085, %v2112
  %v2143 = vadd.f32 %v2086, %v2125
  %v2144 = vadd.f32 %v2087, %v2138
  %v2145 = vxor.u32 %v2141, 2147483648
  %v2146 = vxor.u32 %v2142, 2147483648
  %v2147 = vxor.u32 %v2143, 2147483648
  %v2148 = vmul.f32 %v2145, 1.442695
  %v2149 = vpow.pop %v2148
  %v2150 = vmul.f32 %v2146, 1.442695
  %v2151 = vpow.pop %v2150
  %v2152 = vmul.f32 %v2147, 1.442695
  %v2153 = vpow.pop %v2152
  %v2154 = vadd.f32 %v2149, 1.0
  %v2155 = vadd.f32 %v2151, 1.0
  %v2156 = vadd.f32 %v2153, 1.0
  %v2157 = vrcp.pop %v2154
  %v2158 = vmul.f32 %v2154, %v2157
  %v2159 = vsub.f32 1.0, %v2158
  %v2160 = vmul.f32 %v2157, %v2159
  %v2161 = vadd.f32 %v2157, %v2160
  %vm2162 = vweird.f32 %v2154
  %vm2163 = vweird.f32 %v2157
  %vm2164 = vmor %vm2162, %vm2163
  %v2165 = vsel %vm2164, %v2157, %v2161
  %v2166 = vand.u32 2147483647, %v2154
  %vm2167 = vcmp.eq.f32.partialorder %v2166, 8.507059e+37
  %v2168 = vand.u32 %v2154, 2147483648
  %v2169 = vor.u32 1.1754944e-38, %v2168
  %v2170 = vsel %vm2167, %v2169, %v2165
  %v2171 = vmul.f32 1.0, %v2170
  %v2172 = vrcp.pop %v2155
  %v2173 = vmul.f32 %v2155, %v2172
  %v2174 = vsub.f32 1.0, %v2173
  %v2175 = vmul.f32 %v2172, %v2174
  %v2176 = vadd.f32 %v2172, %v2175
  %vm2177 = vweird.f32 %v2155
  %vm2178 = vweird.f32 %v2172
  %vm2179 = vmor %vm2177, %vm2178
  %v2180 = vsel %vm2179, %v2172, %v2176
  %v2181 = vand.u32 2147483647, %v2155
  %vm2182 = vcmp.eq.f32.partialorder %v2181, 8.507059e+37
  %v2183 = vand.u32 %v2155, 2147483648
  %v2184 = vor.u32 1.1754944e-38, %v2183
  %v2185 = vsel %vm2182, %v2184, %v2180
  %v2186 = vmul.f32 1.0, %v2185
  %v2187 = vrcp.pop %v2156
  %v2188 = vmul.f32 %v2156, %v2187
  %v2189 = vsub.f32 1.0, %v2188
  %v2190 = vmul.f32 %v2187, %v2189
  %v2191 = vadd.f32 %v2187, %v2190
  %vm2192 = vweird.f32 %v2156
  %vm2193 = vweird.f32 %v2187
  %vm2194 = vmor %vm2192, %vm2193
  %v2195 = vsel %vm2194, %v2187, %v2191
  %v2196 = vand.u32 2147483647, %v2156
  %vm2197 = vcmp.eq.f32.partialorder %v2196, 8.507059e+37
  %v2198 = vand.u32 %v2156, 2147483648
  %v2199 = vor.u32 1.1754944e-38, %v2198
  %v2200 = vsel %vm2197, %v2199, %v2195
  %v2201 = vmul.f32 1.0, %v2200
  %v2202 = vtanh.pop %v2144
  %v2203 = vmul.f32 %v2186, %v1951
  %v2204 = vmul.f32 %v2171, %v2202
  %v2205 = vadd.f32 %v2203, %v2204
  %v2206 = vtanh.pop %v2205
  %v2207 = vmul.f32 %v2201, %v2206
  %s2208 = scalar_lea.vmem %s0, 112
  %v2209 = vld [vmem:[%s2208] sm:$0xff]
  %v2210 = vld [vmem:[%s2208 + $0x8] sm:$0xff]
  %v2211 = vunpack.c.l.bf16 %v2209
  %v2212 = vunpack.c.h.bf16 %v2209
  %v2213 = vunpack.c.l.bf16 %v2210
  %v2214 = vunpack.c.h.bf16 %v2210
  %v2215 = vpack.c.bf16 %v2080, %v2080
  %2216 = vmatpush.bf16.msra.mxu0 %v243
  %2217 = vmatpush.bf16.msra.mxu0 %v239
  %2218 = vmatpush.bf16.msra.mxu0 %v235
  %2219 = vmatpush.bf16.msra.mxu0 %v231
  %2220 = vmatpush.bf16.msra.mxu0 %v227
  %2221 = vmatpush.bf16.msra.mxu0 %v223
  %2222 = vmatpush.bf16.msra.mxu0 %v219
  %2223 = vmatpush.bf16.msra.mxu0 %v215
  %2224 = vmatmul.bf16.gmra.mxu0 %v2215
  %v2225 = vpop.f32.mrf.mxu0
  %v2226 = vadd.f32 0.0, %v2225
  %v2227 = vpop.f32.mrf.mxu0
  %2228 = vdwg.mxu0
  %2229 = vmatpush.bf16.msra.mxu0 %v244
  %2230 = vmatpush.bf16.msra.mxu0 %v240
  %2231 = vmatpush.bf16.msra.mxu0 %v236
  %2232 = vmatpush.bf16.msra.mxu0 %v232
  %2233 = vmatpush.bf16.msra.mxu0 %v228
  %2234 = vmatpush.bf16.msra.mxu0 %v224
  %2235 = vmatpush.bf16.msra.mxu0 %v220
  %2236 = vmatpush.bf16.msra.mxu0 %v216
  %2237 = vmatmul.bf16.gmra.mxu0 %v2215
  %v2238 = vpop.f32.mrf.mxu0
  %v2239 = vadd.f32 0.0, %v2238
  %v2240 = vpop.f32.mrf.mxu0
  %2241 = vdwg.mxu0
  %2242 = vmatpush.bf16.msra.mxu0 %v245
  %2243 = vmatpush.bf16.msra.mxu0 %v241
  %2244 = vmatpush.bf16.msra.mxu0 %v237
  %2245 = vmatpush.bf16.msra.mxu0 %v233
  %2246 = vmatpush.bf16.msra.mxu0 %v229
  %2247 = vmatpush.bf16.msra.mxu0 %v225
  %2248 = vmatpush.bf16.msra.mxu0 %v221
  %2249 = vmatpush.bf16.msra.mxu0 %v217
  %2250 = vmatmul.bf16.gmra.mxu0 %v2215
  %v2251 = vpop.f32.mrf.mxu0
  %v2252 = vadd.f32 0.0, %v2251
  %v2253 = vpop.f32.mrf.mxu0
  %2254 = vdwg.mxu0
  %2255 = vmatpush.bf16.msra.mxu0 %v246
  %2256 = vmatpush.bf16.msra.mxu0 %v242
  %2257 = vmatpush.bf16.msra.mxu0 %v238
  %2258 = vmatpush.bf16.msra.mxu0 %v234
  %2259 = vmatpush.bf16.msra.mxu0 %v230
  %2260 = vmatpush.bf16.msra.mxu0 %v226
  %2261 = vmatpush.bf16.msra.mxu0 %v222
  %2262 = vmatpush.bf16.msra.mxu0 %v218
  %2263 = vmatmul.bf16.gmra.mxu0 %v2215
  %v2264 = vpop.f32.mrf.mxu0
  %v2265 = vadd.f32 0.0, %v2264
  %v2266 = vpop.f32.mrf.mxu0
  %2267 = vdwg.mxu0
  %v2268 = vadd.f32 %v2211, %v2226
  %v2269 = vadd.f32 %v2212, %v2239
  %v2270 = vadd.f32 %v2213, %v2252
  %v2271 = vadd.f32 %v2214, %v2265
  %v2272 = vxor.u32 %v2268, 2147483648
  %v2273 = vxor.u32 %v2269, 2147483648
  %v2274 = vxor.u32 %v2270, 2147483648
  %v2275 = vmul.f32 %v2272, 1.442695
  %v2276 = vpow.pop %v2275
  %v2277 = vmul.f32 %v2273, 1.442695
  %v2278 = vpow.pop %v2277
  %v2279 = vmul.f32 %v2274, 1.442695
  %v2280 = vpow.pop %v2279
  %v2281 = vadd.f32 %v2276, 1.0
  %v2282 = vadd.f32 %v2278, 1.0
  %v2283 = vadd.f32 %v2280, 1.0
  %v2284 = vrcp.pop %v2281
  %v2285 = vmul.f32 %v2281, %v2284
  %v2286 = vsub.f32 1.0, %v2285
  %v2287 = vmul.f32 %v2284, %v2286
  %v2288 = vadd.f32 %v2284, %v2287
  %vm2289 = vweird.f32 %v2281
  %vm2290 = vweird.f32 %v2284
  %vm2291 = vmor %vm2289, %vm2290
  %v2292 = vsel %vm2291, %v2284, %v2288
  %v2293 = vand.u32 2147483647, %v2281
  %vm2294 = vcmp.eq.f32.partialorder %v2293, 8.507059e+37
  %v2295 = vand.u32 %v2281, 2147483648
  %v2296 = vor.u32 1.1754944e-38, %v2295
  %v2297 = vsel %vm2294, %v2296, %v2292
  %v2298 = vmul.f32 1.0, %v2297
  %v2299 = vrcp.pop %v2282
  %v2300 = vmul.f32 %v2282, %v2299
  %v2301 = vsub.f32 1.0, %v2300
  %v2302 = vmul.f32 %v2299, %v2301
  %v2303 = vadd.f32 %v2299, %v2302
  %vm2304 = vweird.f32 %v2282
  %vm2305 = vweird.f32 %v2299
  %vm2306 = vmor %vm2304, %vm2305
  %v2307 = vsel %vm2306, %v2299, %v2303
  %v2308 = vand.u32 2147483647, %v2282
  %vm2309 = vcmp.eq.f32.partialorder %v2308, 8.507059e+37
  %v2310 = vand.u32 %v2282, 2147483648
  %v2311 = vor.u32 1.1754944e-38, %v2310
  %v2312 = vsel %vm2309, %v2311, %v2307
  %v2313 = vmul.f32 1.0, %v2312
  %v2314 = vrcp.pop %v2283
  %v2315 = vmul.f32 %v2283, %v2314
  %v2316 = vsub.f32 1.0, %v2315
  %v2317 = vmul.f32 %v2314, %v2316
  %v2318 = vadd.f32 %v2314, %v2317
  %vm2319 = vweird.f32 %v2283
  %vm2320 = vweird.f32 %v2314
  %vm2321 = vmor %vm2319, %vm2320
  %v2322 = vsel %vm2321, %v2314, %v2318
  %v2323 = vand.u32 2147483647, %v2283
  %vm2324 = vcmp.eq.f32.partialorder %v2323, 8.507059e+37
  %v2325 = vand.u32 %v2283, 2147483648
  %v2326 = vor.u32 1.1754944e-38, %v2325
  %v2327 = vsel %vm2324, %v2326, %v2322
  %v2328 = vmul.f32 1.0, %v2327
  %v2329 = vtanh.pop %v2271
  %v2330 = vmul.f32 %v2313, %v2078
  %v2331 = vmul.f32 %v2298, %v2329
  %v2332 = vadd.f32 %v2330, %v2331
  %v2333 = vtanh.pop %v2332
  %v2334 = vmul.f32 %v2328, %v2333
  %s2335 = scalar_lea.vmem %s1, 112
  %v2336 = vld [vmem:[%s2335] sm:$0xff]
  %v2337 = vld [vmem:[%s2335 + $0x8] sm:$0xff]
  %v2338 = vunpack.c.l.bf16 %v2336
  %v2339 = vunpack.c.h.bf16 %v2336
  %v2340 = vunpack.c.l.bf16 %v2337
  %v2341 = vunpack.c.h.bf16 %v2337
  %v2342 = vpack.c.bf16 %v2207, %v2207
  %2343 = vmatpush.bf16.msra.mxu0 %v529
  %2344 = vmatpush.bf16.msra.mxu0 %v525
  %2345 = vmatpush.bf16.msra.mxu0 %v521
  %2346 = vmatpush.bf16.msra.mxu0 %v517
  %2347 = vmatpush.bf16.msra.mxu0 %v513
  %2348 = vmatpush.bf16.msra.mxu0 %v509
  %2349 = vmatpush.bf16.msra.mxu0 %v505
  %2350 = vmatpush.bf16.msra.mxu0 %v501
  %2351 = vmatmul.bf16.gmra.mxu0 %v2342
  %v2352 = vpop.f32.mrf.mxu0
  %v2353 = vadd.f32 0.0, %v2352
  %v2354 = vpop.f32.mrf.mxu0
  %2355 = vdwg.mxu0
  %2356 = vmatpush.bf16.msra.mxu0 %v530
  %2357 = vmatpush.bf16.msra.mxu0 %v526
  %2358 = vmatpush.bf16.msra.mxu0 %v522
  %2359 = vmatpush.bf16.msra.mxu0 %v518
  %2360 = vmatpush.bf16.msra.mxu0 %v514
  %2361 = vmatpush.bf16.msra.mxu0 %v510
  %2362 = vmatpush.bf16.msra.mxu0 %v506
  %2363 = vmatpush.bf16.msra.mxu0 %v502
  %2364 = vmatmul.bf16.gmra.mxu0 %v2342
  %v2365 = vpop.f32.mrf.mxu0
  %v2366 = vadd.f32 0.0, %v2365
  %v2367 = vpop.f32.mrf.mxu0
  %2368 = vdwg.mxu0
  %2369 = vmatpush.bf16.msra.mxu0 %v531
  %2370 = vmatpush.bf16.msra.mxu0 %v527
  %2371 = vmatpush.bf16.msra.mxu0 %v523
  %2372 = vmatpush.bf16.msra.mxu0 %v519
  %2373 = vmatpush.bf16.msra.mxu0 %v515
  %2374 = vmatpush.bf16.msra.mxu0 %v511
  %2375 = vmatpush.bf16.msra.mxu0 %v507
  %2376 = vmatpush.bf16.msra.mxu0 %v503
  %2377 = vmatmul.bf16.gmra.mxu0 %v2342
  %v2378 = vpop.f32.mrf.mxu0
  %v2379 = vadd.f32 0.0, %v2378
  %v2380 = vpop.f32.mrf.mxu0
  %2381 = vdwg.mxu0
  %2382 = vmatpush.bf16.msra.mxu0 %v532
  %2383 = vmatpush.bf16.msra.mxu0 %v528
  %2384 = vmatpush.bf16.msra.mxu0 %v524
  %2385 = vmatpush.bf16.msra.mxu0 %v520
  %2386 = vmatpush.bf16.msra.mxu0 %v516
  %2387 = vmatpush.bf16.msra.mxu0 %v512
  %2388 = vmatpush.bf16.msra.mxu0 %v508
  %2389 = vmatpush.bf16.msra.mxu0 %v504
  %2390 = vmatmul.bf16.gmra.mxu0 %v2342
  %v2391 = vpop.f32.mrf.mxu0
  %v2392 = vadd.f32 0.0, %v2391
  %v2393 = vpop.f32.mrf.mxu0
  %2394 = vdwg.mxu0
  %v2395 = vadd.f32 %v2338, %v2353
  %v2396 = vadd.f32 %v2339, %v2366
  %v2397 = vadd.f32 %v2340, %v2379
  %v2398 = vadd.f32 %v2341, %v2392
  %v2399 = vxor.u32 %v2395, 2147483648
  %v2400 = vxor.u32 %v2396, 2147483648
  %v2401 = vxor.u32 %v2397, 2147483648
  %v2402 = vmul.f32 %v2399, 1.442695
  %v2403 = vpow.pop %v2402
  %v2404 = vmul.f32 %v2400, 1.442695
  %v2405 = vpow.pop %v2404
  %v2406 = vmul.f32 %v2401, 1.442695
  %v2407 = vpow.pop %v2406
  %v2408 = vadd.f32 %v2403, 1.0
  %v2409 = vadd.f32 %v2405, 1.0
  %v2410 = vadd.f32 %v2407, 1.0
  %v2411 = vrcp.pop %v2408
  %v2412 = vmul.f32 %v2408, %v2411
  %v2413 = vsub.f32 1.0, %v2412
  %v2414 = vmul.f32 %v2411, %v2413
  %v2415 = vadd.f32 %v2411, %v2414
  %vm2416 = vweird.f32 %v2408
  %vm2417 = vweird.f32 %v2411
  %vm2418 = vmor %vm2416, %vm2417
  %v2419 = vsel %vm2418, %v2411, %v2415
  %v2420 = vand.u32 2147483647, %v2408
  %vm2421 = vcmp.eq.f32.partialorder %v2420, 8.507059e+37
  %v2422 = vand.u32 %v2408, 2147483648
  %v2423 = vor.u32 1.1754944e-38, %v2422
  %v2424 = vsel %vm2421, %v2423, %v2419
  %v2425 = vmul.f32 1.0, %v2424
  %v2426 = vrcp.pop %v2409
  %v2427 = vmul.f32 %v2409, %v2426
  %v2428 = vsub.f32 1.0, %v2427
  %v2429 = vmul.f32 %v2426, %v2428
  %v2430 = vadd.f32 %v2426, %v2429
  %vm2431 = vweird.f32 %v2409
  %vm2432 = vweird.f32 %v2426
  %vm2433 = vmor %vm2431, %vm2432
  %v2434 = vsel %vm2433, %v2426, %v2430
  %v2435 = vand.u32 2147483647, %v2409
  %vm2436 = vcmp.eq.f32.partialorder %v2435, 8.507059e+37
  %v2437 = vand.u32 %v2409, 2147483648
  %v2438 = vor.u32 1.1754944e-38, %v2437
  %v2439 = vsel %vm2436, %v2438, %v2434
  %v2440 = vmul.f32 1.0, %v2439
  %v2441 = vrcp.pop %v2410
  %v2442 = vmul.f32 %v2410, %v2441
  %v2443 = vsub.f32 1.0, %v2442
  %v2444 = vmul.f32 %v2441, %v2443
  %v2445 = vadd.f32 %v2441, %v2444
  %vm2446 = vweird.f32 %v2410
  %vm2447 = vweird.f32 %v2441
  %vm2448 = vmor %vm2446, %vm2447
  %v2449 = vsel %vm2448, %v2441, %v2445
  %v2450 = vand.u32 2147483647, %v2410
  %vm2451 = vcmp.eq.f32.partialorder %v2450, 8.507059e+37
  %v2452 = vand.u32 %v2410, 2147483648
  %v2453 = vor.u32 1.1754944e-38, %v2452
  %v2454 = vsel %vm2451, %v2453, %v2449
  %v2455 = vmul.f32 1.0, %v2454
  %v2456 = vtanh.pop %v2398
  %v2457 = vmul.f32 %v2440, %v2205
  %v2458 = vmul.f32 %v2425, %v2456
  %v2459 = vadd.f32 %v2457, %v2458
  %v2460 = vtanh.pop %v2459
  %v2461 = vmul.f32 %v2455, %v2460
  %2462 = vst [vmem:[#allocation2] sm:$0xff] %v2334
  %2463 = vst [vmem:[#allocation3] sm:$0xff] %v2332
  %2464 = vst [vmem:[#allocation4] sm:$0xff] %v2461
  %2465 = vst [vmem:[#allocation5] sm:$0xff] %v2459
  // Predicated region
  $region46: #{bilstm_classifier_forward.1} parent=0 // pred_check
    %p2466 = pneg %p36
  $region47: #{bilstm_classifier_forward.1} parent=0 // pred_check_branch
    %2468 = sbr.rel (%p2466) target = $region49
  $region48: #{bilstm_classifier_forward.1} parent=0 // pred_region
    %v2469 = vld [vmem:[%s4] sm:$0xff]
    %v2470 = vld [vmem:[%s4 + $0x8] sm:$0xf]
    %v2471 = vld [vmem:[%s4 + $0xc] sm:$0xff]
    %v2472 = vld [vmem:[%s4 + $0x14] sm:$0xf]
    %v2473 = vld [vmem:[%s4 + $0x18] sm:$0xff]
    %v2474 = vld [vmem:[%s4 + $0x20] sm:$0xf]
    %v2475 = vld [vmem:[%s4 + $0x24] sm:$0xff]
    %v2476 = vld [vmem:[%s4 + $0x2c] sm:$0xf]
    %v2477 = vld [vmem:[%s4 + $0x30] sm:$0xff]
    %v2478 = vld [vmem:[%s4 + $0x38] sm:$0xf]
    %v2479 = vld [vmem:[%s4 + $0x3c] sm:$0xff]
    %v2480 = vld [vmem:[%s4 + $0x44] sm:$0xf]
    %v2481 = vld [vmem:[%s4 + $0x48] sm:$0xff]
    %v2482 = vld [vmem:[%s4 + $0x50] sm:$0xf]
    %v2483 = vld [vmem:[%s4 + $0x54] sm:$0xff]
    %v2484 = vld [vmem:[%s4 + $0x5c] sm:$0xf]
    %v2485 = vld [vmem:[%s4 + $0x60] sm:$0xff]
    %v2486 = vld [vmem:[%s4 + $0x68] sm:$0xf]
    %v2487 = vld [vmem:[%s4 + $0x6c] sm:$0xff]
    %v2488 = vld [vmem:[%s4 + $0x74] sm:$0xf]
    %v2489 = vld [vmem:[%s4 + $0x78] sm:$0xff]
    %v2490 = vld [vmem:[%s4 + $0x80] sm:$0xf]
    %v2491 = vld [vmem:[%s4 + $0x84] sm:$0xff]
    %v2492 = vld [vmem:[%s4 + $0x8c] sm:$0xf]
    %v2493 = vld [vmem:[%s4 + $0x90] sm:$0xff]
    %v2494 = vld [vmem:[%s4 + $0x98] sm:$0xf]
    %v2495 = vld [vmem:[%s4 + $0x9c] sm:$0xff]
    %v2496 = vld [vmem:[%s4 + $0xa4] sm:$0xf]
    %v2497 = vld [vmem:[%s4 + $0xa8] sm:$0xff]
    %v2498 = vld [vmem:[%s4 + $0xb0] sm:$0xf]
    %v2499 = vld [vmem:[%s4 + $0xb4] sm:$0xff]
    %v2500 = vld [vmem:[%s4 + $0xbc] sm:$0xf]
    %v2501 = vld [vmem:[%s4 + $0xc0] sm:$0xff]
    %v2502 = vld [vmem:[%s4 + $0xc8] sm:$0xf]
    %v2503 = vld [vmem:[%s4 + $0xcc] sm:$0xff]
    %v2504 = vld [vmem:[%s4 + $0xd4] sm:$0xf]
    %v2505 = vld [vmem:[%s4 + $0xd8] sm:$0xff]
    %v2506 = vld [vmem:[%s4 + $0xe0] sm:$0xf]
    %v2507 = vld [vmem:[%s4 + $0xe4] sm:$0xff]
    %v2508 = vld [vmem:[%s4 + $0xec] sm:$0xf]
    %v2509 = vld [vmem:[%s4 + $0xf0] sm:$0xff]
    %v2510 = vld [vmem:[%s4 + $0xf8] sm:$0xf]
    %v2511 = vld [vmem:[%s4 + $0xfc] sm:$0xff]
    %v2512 = vld [vmem:[%s4 + $0x104] sm:$0xf]
    %v2513 = vld [vmem:[%s4 + $0x108] sm:$0xff]
    %v2514 = vld [vmem:[%s4 + $0x110] sm:$0xf]
    %v2515 = vld [vmem:[%s4 + $0x114] sm:$0xff]
    %v2516 = vld [vmem:[%s4 + $0x11c] sm:$0xf]
    %v2517 = vld [vmem:[%s4 + $0x120] sm:$0xff]
    %v2518 = vld [vmem:[%s4 + $0x128] sm:$0xf]
    %v2519 = vld [vmem:[%s4 + $0x12c] sm:$0xff]
    %v2520 = vld [vmem:[%s4 + $0x134] sm:$0xf]
    %v2521 = vld [vmem:[%s4 + $0x138] sm:$0xff]
    %v2522 = vld [vmem:[%s4 + $0x140] sm:$0xf]
    %v2523 = vld [vmem:[%s4 + $0x144] sm:$0xff]
    %v2524 = vld [vmem:[%s4 + $0x14c] sm:$0xf]
    %v2525 = vld [vmem:[%s4 + $0x150] sm:$0xff]
    %v2526 = vld [vmem:[%s4 + $0x158] sm:$0xf]
    %v2527 = vld [vmem:[%s4 + $0x15c] sm:$0xff]
    %v2528 = vld [vmem:[%s4 + $0x164] sm:$0xf]
    %v2529 = vld [vmem:[%s4 + $0x168] sm:$0xff]
    %v2530 = vld [vmem:[%s4 + $0x170] sm:$0xf]
    %v2531 = vld [vmem:[%s4 + $0x174] sm:$0xff]
    %v2532 = vld [vmem:[%s4 + $0x17c] sm:$0xf]
    %v2533 = vpack.c.bf16 %v2334, %v2334
    %v2534 = vpack.c.bf16 %v2461, %v2461
    %v2567 = vunpack.c.l.b16 %v2501
    %v2568 = vunpack.c.h.b16 %v2501
    %v2569 = vunpack.c.l.b16 %v2502
    %v2570 = vunpack.c.l.b16 %v2503
    %v2571 = vunpack.c.h.b16 %v2503
    %v2572 = vunpack.c.l.b16 %v2504
    %v2573 = vunpack.c.l.b16 %v2505
    %v2574 = vunpack.c.h.b16 %v2505
    %v2575 = vunpack.c.l.b16 %v2506
    %v2576 = vunpack.c.l.b16 %v2507
    %v2577 = vunpack.c.h.b16 %v2507
    %v2578 = vunpack.c.l.b16 %v2508
    %v2579 = vunpack.c.l.b16 %v2509
    %v2580 = vunpack.c.h.b16 %v2509
    %v2581 = vunpack.c.l.b16 %v2510
    %v2582 = vunpack.c.l.b16 %v2511
    %v2583 = vunpack.c.h.b16 %v2511
    %v2584 = vunpack.c.l.b16 %v2512
    %v2585 = vunpack.c.l.b16 %v2513
    %v2586 = vunpack.c.h.b16 %v2513
    %v2587 = vunpack.c.l.b16 %v2514
    %v2588 = vunpack.c.l.b16 %v2515
    %v2589 = vunpack.c.h.b16 %v2515
    %v2590 = vunpack.c.l.b16 %v2516
    %v2591 = vunpack.c.l.b16 %v2517
    %v2592 = vunpack.c.h.b16 %v2517
    %v2593 = vunpack.c.l.b16 %v2518
    %v2594 = vunpack.c.l.b16 %v2519
    %v2595 = vunpack.c.h.b16 %v2519
    %v2596 = vunpack.c.l.b16 %v2520
    %v2597 = vunpack.c.l.b16 %v2521
    %v2598 = vunpack.c.h.b16 %v2521
    %v2599 = vunpack.c.l.b16 %v2522
    %v2600 = vunpack.c.l.b16 %v2523
    %v2601 = vunpack.c.h.b16 %v2523
    %v2602 = vunpack.c.l.b16 %v2524
    %v2603 = vunpack.c.l.b16 %v2525
    %v2604 = vunpack.c.h.b16 %v2525
    %v2605 = vunpack.c.l.b16 %v2526
    %v2606 = vunpack.c.l.b16 %v2527
    %v2607 = vunpack.c.h.b16 %v2527
    %v2608 = vunpack.c.l.b16 %v2528
    %v2609 = vunpack.c.l.b16 %v2529
    %v2610 = vunpack.c.h.b16 %v2529
    %v2611 = vunpack.c.l.b16 %v2530
    %v2612 = vunpack.c.l.b16 %v2531
    %v2613 = vunpack.c.h.b16 %v2531
    %v2614 = vunpack.c.l.b16 %v2532
    %v2615 = vpack.c.b16 %v2570, %v2567
    %v2616 = vpack.c.b16 %v2571, %v2568
    %v2617 = vpack.c.b16 %v2572, %v2569
    %v2618 = vpack.c.b16 %v2576, %v2573
    %v2619 = vpack.c.b16 %v2577, %v2574
    %v2620 = vpack.c.b16 %v2578, %v2575
    %v2621 = vpack.c.b16 %v2582, %v2579
    %v2622 = vpack.c.b16 %v2583, %v2580
    %v2623 = vpack.c.b16 %v2584, %v2581
    %v2624 = vpack.c.b16 %v2588, %v2585
    %v2625 = vpack.c.b16 %v2589, %v2586
    %v2626 = vpack.c.b16 %v2590, %v2587
    %v2627 = vpack.c.b16 %v2594, %v2591
    %v2628 = vpack.c.b16 %v2595, %v2592
    %v2629 = vpack.c.b16 %v2596, %v2593
    %v2630 = vpack.c.b16 %v2600, %v2597
    %v2631 = vpack.c.b16 %v2601, %v2598
    %v2632 = vpack.c.b16 %v2602, %v2599
    %v2633 = vpack.c.b16 %v2606, %v2603
    %v2634 = vpack.c.b16 %v2607, %v2604
    %v2635 = vpack.c.b16 %v2608, %v2605
    %v2636 = vpack.c.b16 %v2612, %v2609
    %v2637 = vpack.c.b16 %v2613, %v2610
    %v2638 = vpack.c.b16 %v2614, %v2611
    %2663 = vmatpush.bf16.msra.mxu0 %v2636
    %2664 = vmatpush.bf16.msra.mxu0 %v2633
    %2665 = vmatpush.bf16.msra.mxu0 %v2630
    %2666 = vmatpush.bf16.msra.mxu0 %v2627
    %2667 = vmatpush.bf16.msra.mxu0 %v2624
    %2668 = vmatpush.bf16.msra.mxu0 %v2621
    %2669 = vmatpush.bf16.msra.mxu0 %v2618
    %2670 = vmatpush.bf16.msra.mxu0 %v2615
    %2671 = vmatmul.bf16.gmra.mxu0 %v2534
    %v2672 = vpop.f32.mrf.mxu0
    %v2673 = vadd.f32 0.0, %v2672
    %v2674 = vpop.f32.mrf.mxu0
    %2675 = vdwg.mxu0
    %2676 = vmatpush.bf16.msra.mxu0 %v2637
    %2677 = vmatpush.bf16.msra.mxu0 %v2634
    %2678 = vmatpush.bf16.msra.mxu0 %v2631
    %2679 = vmatpush.bf16.msra.mxu0 %v2628
    %2680 = vmatpush.bf16.msra.mxu0 %v2625
    %2681 = vmatpush.bf16.msra.mxu0 %v2622
    %2682 = vmatpush.bf16.msra.mxu0 %v2619
    %2683 = vmatpush.bf16.msra.mxu0 %v2616
    %2684 = vmatmul.bf16.gmra.mxu0 %v2534
    %v2685 = vpop.f32.mrf.mxu0
    %v2686 = vadd.f32 0.0, %v2685
    %v2687 = vpop.f32.mrf.mxu0
    %2688 = vdwg.mxu0
    %2689 = vmatpush.bf16.msra.mxu0 %v2638
    %2690 = vmatpush.bf16.msra.mxu0 %v2635
    %2691 = vmatpush.bf16.msra.mxu0 %v2632
    %2692 = vmatpush.bf16.msra.mxu0 %v2629
    %2693 = vmatpush.bf16.msra.mxu0 %v2626
    %2694 = vmatpush.bf16.msra.mxu0 %v2623
    %2695 = vmatpush.bf16.msra.mxu0 %v2620
    %2696 = vmatpush.bf16.msra.mxu0 %v2617
    %2697 = vmatmul.bf16.gmra.mxu0 %v2534
    %v2698 = vpop.f32.mrf.mxu0
    %v2699 = vadd.f32 0.0, %v2698
    %v2700 = vpop.f32.mrf.mxu0
    %2701 = vdwg.mxu0
    %v2734 = vunpack.c.l.b16 %v2469
    %v2735 = vunpack.c.h.b16 %v2469
    %v2736 = vunpack.c.l.b16 %v2470
    %v2737 = vunpack.c.l.b16 %v2471
    %v2738 = vunpack.c.h.b16 %v2471
    %v2739 = vunpack.c.l.b16 %v2472
    %v2740 = vunpack.c.l.b16 %v2473
    %v2741 = vunpack.c.h.b16 %v2473
    %v2742 = vunpack.c.l.b16 %v2474
    %v2743 = vunpack.c.l.b16 %v2475
    %v2744 = vunpack.c.h.b16 %v2475
    %v2745 = vunpack.c.l.b16 %v2476
    %v2746 = vunpack.c.l.b16 %v2477
    %v2747 = vunpack.c.h.b16 %v2477
    %v2748 = vunpack.c.l.b16 %v2478
    %v2749 = vunpack.c.l.b16 %v2479
    %v2750 = vunpack.c.h.b16 %v2479
    %v2751 = vunpack.c.l.b16 %v2480
    %v2752 = vunpack.c.l.b16 %v2481
    %v2753 = vunpack.c.h.b16 %v2481
    %v2754 = vunpack.c.l.b16 %v2482
    %v2755 = vunpack.c.l.b16 %v2483
    %v2756 = vunpack.c.h.b16 %v2483
    %v2757 = vunpack.c.l.b16 %v2484
    %v2758 = vunpack.c.l.b16 %v2485
    %v2759 = vunpack.c.h.b16 %v2485
    %v2760 = vunpack.c.l.b16 %v2486
    %v2761 = vunpack.c.l.b16 %v2487
    %v2762 = vunpack.c.h.b16 %v2487
    %v2763 = vunpack.c.l.b16 %v2488
    %v2764 = vunpack.c.l.b16 %v2489
    %v2765 = vunpack.c.h.b16 %v2489
    %v2766 = vunpack.c.l.b16 %v2490
    %v2767 = vunpack.c.l.b16 %v2491
    %v2768 = vunpack.c.h.b16 %v2491
    %v2769 = vunpack.c.l.b16 %v2492
    %v2770 = vunpack.c.l.b16 %v2493
    %v2771 = vunpack.c.h.b16 %v2493
    %v2772 = vunpack.c.l.b16 %v2494
    %v2773 = vunpack.c.l.b16 %v2495
    %v2774 = vunpack.c.h.b16 %v2495
    %v2775 = vunpack.c.l.b16 %v2496
    %v2776 = vunpack.c.l.b16 %v2497
    %v2777 = vunpack.c.h.b16 %v2497
    %v2778 = vunpack.c.l.b16 %v2498
    %v2779 = vunpack.c.l.b16 %v2499
    %v2780 = vunpack.c.h.b16 %v2499
    %v2781 = vunpack.c.l.b16 %v2500
    %v2782 = vpack.c.b16 %v2737, %v2734
    %v2783 = vpack.c.b16 %v2738, %v2735
    %v2784 = vpack.c.b16 %v2739, %v2736
    %v2785 = vpack.c.b16 %v2743, %v2740
    %v2786 = vpack.c.b16 %v2744, %v2741
    %v2787 = vpack.c.b16 %v2745, %v2742
    %v2788 = vpack.c.b16 %v2749, %v2746
    %v2789 = vpack.c.b16 %v2750, %v2747
    %v2790 = vpack.c.b16 %v2751, %v2748
    %v2791 = vpack.c.b16 %v2755, %v2752
    %v2792 = vpack.c.b16 %v2756, %v2753
    %v2793 = vpack.c.b16 %v2757, %v2754
    %v2794 = vpack.c.b16 %v2761, %v2758
    %v2795 = vpack.c.b16 %v2762, %v2759
    %v2796 = vpack.c.b16 %v2763, %v2760
    %v2797 = vpack.c.b16 %v2767, %v2764
    %v2798 = vpack.c.b16 %v2768, %v2765
    %v2799 = vpack.c.b16 %v2769, %v2766
    %v2800 = vpack.c.b16 %v2773, %v2770
    %v2801 = vpack.c.b16 %v2774, %v2771
    %v2802 = vpack.c.b16 %v2775, %v2772
    %v2803 = vpack.c.b16 %v2779, %v2776
    %v2804 = vpack.c.b16 %v2780, %v2777
    %v2805 = vpack.c.b16 %v2781, %v2778
    %2830 = vmatpush.bf16.msra.mxu0 %v2803
    %2831 = vmatpush.bf16.msra.mxu0 %v2800
    %2832 = vmatpush.bf16.msra.mxu0 %v2797
    %2833 = vmatpush.bf16.msra.mxu0 %v2794
    %2834 = vmatpush.bf16.msra.mxu0 %v2791
    %2835 = vmatpush.bf16.msra.mxu0 %v2788
    %2836 = vmatpush.bf16.msra.mxu0 %v2785
    %2837 = vmatpush.bf16.msra.mxu0 %v2782
    %2838 = vmatmul.bf16.gmra.mxu0 %v2533
    %v2839 = vpop.f32.mrf.mxu0
    %v2840 = vadd.f32 %v2673, %v2839
    %v2841 = vpop.f32.mrf.mxu0
    %2842 = vdwg.mxu0
    %2843 = vmatpush.bf16.msra.mxu0 %v2804
    %2844 = vmatpush.bf16.msra.mxu0 %v2801
    %2845 = vmatpush.bf16.msra.mxu0 %v2798
    %2846 = vmatpush.bf16.msra.mxu0 %v2795
    %2847 = vmatpush.bf16.msra.mxu0 %v2792
    %2848 = vmatpush.bf16.msra.mxu0 %v2789
    %2849 = vmatpush.bf16.msra.mxu0 %v2786
    %2850 = vmatpush.bf16.msra.mxu0 %v2783
    %2851 = vmatmul.bf16.gmra.mxu0 %v2533
    %v2852 = vpop.f32.mrf.mxu0
    %v2853 = vadd.f32 %v2686, %v2852
    %v2854 = vpop.f32.mrf.mxu0
    %2855 = vdwg.mxu0
    %2856 = vmatpush.bf16.msra.mxu0 %v2805
    %2857 = vmatpush.bf16.msra.mxu0 %v2802
    %2858 = vmatpush.bf16.msra.mxu0 %v2799
    %2859 = vmatpush.bf16.msra.mxu0 %v2796
    %2860 = vmatpush.bf16.msra.mxu0 %v2793
    %2861 = vmatpush.bf16.msra.mxu0 %v2790
    %2862 = vmatpush.bf16.msra.mxu0 %v2787
    %2863 = vmatpush.bf16.msra.mxu0 %v2784
    %2864 = vmatmul.bf16.gmra.mxu0 %v2533
    %v2865 = vpop.f32.mrf.mxu0
    %v2866 = vadd.f32 %v2699, %v2865
    %v2867 = vpop.f32.mrf.mxu0
    %2868 = vdwg.mxu0
    %v2869 = vld [vmem:[%s5] sm:$0x7]
    %v2871 = vperm.slane %v2869, 0
    %v2872 = vperm.slane %v2869, 1
    %v2873 = vperm.slane %v2869, 2
    %v2877 = vadd.f32 %v2840, %v2871
    %v2878 = vadd.f32 %v2853, %v2872
    %v2879 = vadd.f32 %v2866, %v2873
    %v2880 = vxor.u32 %v2877, 2147483648
    %v2881 = vxor.u32 %v2878, 2147483648
    %v2882 = vmul.f32 %v2880, 1.442695
    %v2883 = vpow.pop %v2882
    %v2884 = vmul.f32 %v2881, 1.442695
    %v2885 = vpow.pop %v2884
    %v2886 = vadd.f32 %v2883, 1.0
    %v2887 = vadd.f32 %v2885, 1.0
    %v2888 = vrcp.pop %v2886
    %v2889 = vmul.f32 %v2886, %v2888
    %v2890 = vsub.f32 1.0, %v2889
    %v2891 = vmul.f32 %v2888, %v2890
    %v2892 = vadd.f32 %v2888, %v2891
    %vm2893 = vweird.f32 %v2886
    %vm2894 = vweird.f32 %v2888
    %vm2895 = vmor %vm2893, %vm2894
    %v2896 = vsel %vm2895, %v2888, %v2892
    %v2897 = vand.u32 2147483647, %v2886
    %vm2898 = vcmp.eq.f32.partialorder %v2897, 8.507059e+37
    %v2899 = vand.u32 %v2886, 2147483648
    %v2900 = vor.u32 1.1754944e-38, %v2899
    %v2901 = vsel %vm2898, %v2900, %v2896
    %v2902 = vmul.f32 1.0, %v2901
    %v2903 = vrcp.pop %v2887
    %v2904 = vmul.f32 %v2887, %v2903
    %v2905 = vsub.f32 1.0, %v2904
    %v2906 = vmul.f32 %v2903, %v2905
    %v2907 = vadd.f32 %v2903, %v2906
    %vm2908 = vweird.f32 %v2887
    %vm2909 = vweird.f32 %v2903
    %vm2910 = vmor %vm2908, %vm2909
    %v2911 = vsel %vm2910, %v2903, %v2907
    %v2912 = vand.u32 2147483647, %v2887
    %vm2913 = vcmp.eq.f32.partialorder %v2912, 8.507059e+37
    %v2914 = vand.u32 %v2887, 2147483648
    %v2915 = vor.u32 1.1754944e-38, %v2914
    %v2916 = vsel %vm2913, %v2915, %v2911
    %v2917 = vmul.f32 1.0, %v2916
    %v2918 = vtanh.pop %v2879
    %v2919 = vmul.f32 %v2902, %v2918
    %v2920 = vtanh.pop %v2919
    %v2921 = vmul.f32 %v2917, %v2920
    %v2922 = vpack.c.bf16 %v2921, %v2921
    %v2923 = vld [vmem:[%s6] sm:$0xf]
    %v2924 = vld [vmem:[%s6 + $0x4] sm:$0xf]
    %v2925 = vld [vmem:[%s6 + $0x8] sm:$0xf]
    %v2926 = vld [vmem:[%s6 + $0xc] sm:$0xf]
    %v2927 = vld [vmem:[%s6 + $0x10] sm:$0xf]
    %v2928 = vld [vmem:[%s6 + $0x14] sm:$0xf]
    %v2929 = vld [vmem:[%s6 + $0x18] sm:$0xf]
    %v2930 = vld [vmem:[%s6 + $0x1c] sm:$0xf]
    %v2931 = vld [vmem:[%s6 + $0x20] sm:$0xf]
    %v2932 = vld [vmem:[%s6 + $0x24] sm:$0xf]
    %v2933 = vld [vmem:[%s6 + $0x28] sm:$0xf]
    %v2934 = vld [vmem:[%s6 + $0x2c] sm:$0xf]
    %v2935 = vld [vmem:[%s6 + $0x30] sm:$0xf]
    %v2936 = vld [vmem:[%s6 + $0x34] sm:$0xf]
    %v2937 = vld [vmem:[%s6 + $0x38] sm:$0xf]
    %v2938 = vld [vmem:[%s6 + $0x3c] sm:$0xf]
    %v2939 = vld [vmem:[%s7] sm:$0x1]
    %v2941 = vperm.slane %v2939, 0
    %v2959 = vunpack.c.l.b16 %v2923
    %v2960 = vunpack.c.l.b16 %v2924
    %v2961 = vunpack.c.l.b16 %v2925
    %v2962 = vunpack.c.l.b16 %v2926
    %v2963 = vunpack.c.l.b16 %v2927
    %v2964 = vunpack.c.l.b16 %v2928
    %v2965 = vunpack.c.l.b16 %v2929
    %v2966 = vunpack.c.l.b16 %v2930
    %v2967 = vunpack.c.l.b16 %v2931
    %v2968 = vunpack.c.l.b16 %v2932
    %v2969 = vunpack.c.l.b16 %v2933
    %v2970 = vunpack.c.l.b16 %v2934
    %v2971 = vunpack.c.l.b16 %v2935
    %v2972 = vunpack.c.l.b16 %v2936
    %v2973 = vunpack.c.l.b16 %v2937
    %v2974 = vunpack.c.l.b16 %v2938
    %v2975 = vpack.c.b16 %v2960, %v2959
    %v2976 = vpack.c.b16 %v2962, %v2961
    %v2977 = vpack.c.b16 %v2964, %v2963
    %v2978 = vpack.c.b16 %v2966, %v2965
    %v2979 = vpack.c.b16 %v2968, %v2967
    %v2980 = vpack.c.b16 %v2970, %v2969
    %v2981 = vpack.c.b16 %v2972, %v2971
    %v2982 = vpack.c.b16 %v2974, %v2973
    %2991 = vmatpush.bf16.msra.mxu0 %v2982
    %2992 = vmatpush.bf16.msra.mxu0 %v2981
    %2993 = vmatpush.bf16.msra.mxu0 %v2980
    %2994 = vmatpush.bf16.msra.mxu0 %v2979
    %2995 = vmatpush.bf16.msra.mxu0 %v2978
    %2996 = vmatpush.bf16.msra.mxu0 %v2977
    %2997 = vmatpush.bf16.msra.mxu0 %v2976
    %2998 = vmatpush.bf16.msra.mxu0 %v2975
    %2999 = vmatmul.bf16.gmra.mxu0 %v2922
    %v3000 = vpop.f32.mrf.mxu0
    %v3001 = vadd.f32 %v2941, %v3000
    %v3002 = vpop.f32.mrf.mxu0
    %3003 = vdwg.mxu0
    %v3004 = vmax.f32 %v3001, 0.0
    %v3005 = vpack.c.bf16 %v3004, %v3004
    %v3006 = vld [vmem:[%s8] sm:$0xf]
    %v3007 = vld [vmem:[%s8 + $0x4] sm:$0xf]
    %v3008 = vld [vmem:[%s8 + $0x8] sm:$0xf]
    %v3009 = vld [vmem:[%s8 + $0xc] sm:$0xf]
    %v3010 = vld [vmem:[%s8 + $0x10] sm:$0xf]
    %v3011 = vld [vmem:[%s8 + $0x14] sm:$0xf]
    %v3012 = vld [vmem:[%s8 + $0x18] sm:$0xf]
    %v3013 = vld [vmem:[%s8 + $0x1c] sm:$0xf]
    %v3014 = vld [vmem:[%s9] sm:$0x1]
    %v3016 = vperm.slane %v3014, 0
    %v3026 = vunpack.c.l.b16 %v3006
    %v3027 = vunpack.c.l.b16 %v3007
    %v3028 = vunpack.c.l.b16 %v3008
    %v3029 = vunpack.c.l.b16 %v3009
    %v3030 = vunpack.c.l.b16 %v3010
    %v3031 = vunpack.c.l.b16 %v3011
    %v3032 = vunpack.c.l.b16 %v3012
    %v3033 = vunpack.c.l.b16 %v3013
    %v3034 = vpack.c.b16 %v3027, %v3026
    %v3035 = vpack.c.b16 %v3029, %v3028
    %v3036 = vpack.c.b16 %v3031, %v3030
    %v3037 = vpack.c.b16 %v3033, %v3032
    %vm3042 = vcmask 523264
    %v3044 = vsel %vm3042, %v3005, 0
    %3046 = vmatpush.bf16.msra.mxu0 0
    %3047 = vmatpush.bf16.msra.mxu0 0
    %3048 = vmatpush.bf16.msra.mxu0 0
    %3049 = vmatpush.bf16.msra.mxu0 0
    %3050 = vmatpush.bf16.msra.mxu0 %v3037
    %3051 = vmatpush.bf16.msra.mxu0 %v3036
    %3052 = vmatpush.bf16.msra.mxu0 %v3035
    %3053 = vmatpush.bf16.msra.mxu0 %v3034
    %3054 = vmatmul.bf16.gmra.mxu0 %v3044
    %v3055 = vpop.f32.mrf.mxu0
    %v3056 = vadd.f32 %v3016, %v3055
    %v3057 = vpop.f32.mrf.mxu0
    %3058 = vdwg.mxu0
    %3059 = vst [vmem:[%s10] sm:$0xff] %v3056
  $region49: #{bilstm_classifier_forward.1} parent=0 // pred_fallthru
    _
  // Predicated region
  $region50: #{bilstm_classifier_forward.1} parent=0 // pred_check
    _
  $region51: #{bilstm_classifier_forward.1} parent=0 // pred_check_branch
    %3061 = sbr.rel (0) target = $region53
  $region52: #{bilstm_classifier_forward.1} parent=0 // pred_region
    _
  $region53: #{bilstm_classifier_forward.1} parent=0 // pred_fallthru
    _
  // Predicated region
  $region54: #{bilstm_classifier_forward.1} parent=0 // pred_check
    _
  $region55: #{bilstm_classifier_forward.1} parent=0 // pred_check_branch
    %3063 = sbr.rel (0) target = $region57
  $region56: #{bilstm_classifier_forward.1} parent=0 // pred_region
    _
  $region57: #{bilstm_classifier_forward.1} parent=0 // pred_fallthru
    _

</llo_original>
